<compile_context>
chip_gen: v7x
topology: tpu7x:2x2x1
jax: 0.10.0
libtpu: 0.0.40
codegen_flags: <defaults>
</compile_context>

<pallas_src>
import functools

import jax
import jax.numpy as jnp
from jax import lax
from jax.experimental import pallas as pl
from jax.experimental.pallas import tpu as pltpu

# Static model geometry (implied by the PyTorch module + 16x16 input).
K1, K2 = 5, 5
CIN, C1, C2 = 1, 20, 20
H_IN, W_IN = 16, 16
HO1, WO1 = H_IN - K1 + 1, W_IN - K1 + 1     # 12, 12
HO2, WO2 = HO1 - K2 + 1, WO1 - K2 + 1       # 8, 8

MAX_BATCH_TILE = 32                         # even -> lane-dense (20, Bt*64) out
VMEM_LIMIT_BYTES = 48 * 1024 * 1024         # < v7x 64 MiB physical, > v5e default


def _fused_conv_relu_kernel(x_ref, w1_ref, b1_ref, w2_ref, b2_ref, o_ref, *,
                            mxu_dtype):
    """relu(conv2(relu(conv1(x)))) for one batch tile, fully on-chip.

    x_ref : (Bt, 16, 16)   raw input tile (Cin == 1)
    w1_ref: (25, 20)       conv1 weight, rows ordered kh*5+kw
    b1_ref: (1, 20)
    w2_ref: (25, 20, 20)   conv2 weight, (kh*5+kw, cin, cout)
    b2_ref: (20, 1)
    o_ref : (20, Bt*64)    channel-major, 128-lane-dense output
    """
    bt = x_ref.shape[0]
    x = x_ref[...]                                             # (Bt, 16, 16) f32

    # ---- conv1: in-kernel im2col (Cin == 1) + ONE MXU matmul ---------------
    p1 = jnp.stack(
        [x[:, kh:kh + HO1, kw:kw + WO1]
         for kh in range(K1) for kw in range(K1)],
        axis=-1).reshape(bt * HO1 * WO1, K1 * K1)              # (Bt*144, 25)
    h1 = jnp.dot(p1, w1_ref[...], preferred_element_type=jnp.float32)
    h1 = jnp.maximum(h1 + b1_ref[...], 0.0)                    # (Bt*144, 20) f32
    h1 = h1.reshape(bt, HO1, WO1, C1)                          # never leaves chip

    # ---- conv2: 25 per-tap MXU matmuls, f32 accumulation, channel-major ----
    # bf16 operands for the MXU (review: v6e/v7x win); elementwise stays f32.
    h1_m = h1.astype(mxu_dtype)
    w2_m = w2_ref[...].astype(mxu_dtype)                       # (25, 20, 20)
    acc = jnp.zeros((C2, bt * HO2 * WO2), jnp.float32)
    for kh in range(K2):                    # static python loops -> unrolled
        for kw in range(K2):
            win = h1_m[:, kh:kh + HO2, kw:kw + WO2, :].reshape(
                bt * HO2 * WO2, C1)                            # (Bt*64, 20)
            # acc[cout, r] += sum_cin w2[tap, cin, cout] * win[r, cin]
            acc = acc + lax.dot_general(
                w2_m[kh * K2 + kw], win,
                dimension_numbers=(((0,), (1,)), ((), ())),
                preferred_element_type=jnp.float32)            # (20, Bt*64)

    out = jnp.maximum(acc + b2_ref[...], 0.0)
    o_ref[...] = out.astype(o_ref.dtype)


def fused_conv_relu(x_nchw, w1, b1, w2, b2, *, conv2_mxu_dtype=jnp.bfloat16):
    """x_nchw: (B, 1, 16, 16) f32 -> (B, 20, 8, 8) f32 = relu(conv2(relu(conv1(x))))."""
    B = x_nchw.shape[0]
    # CIN == 1: NCHW -> (B, H, W) is a pure reshape, no transpose.
    x = x_nchw.reshape(B, H_IN, W_IN)

    # Batch tile: even (keeps the (20, Bt*64) store lane-dense) and VMEM-bounded.
    bt = min(MAX_BATCH_TILE, B)
    bt += bt & 1
    nb = -(-B // bt)
    b_pad = nb * bt
    if b_pad != B:
        x = jnp.concatenate(
            [x, jnp.zeros((b_pad - B, H_IN, W_IN), x.dtype)], axis=0)

    w1r = w1.reshape(K1 * K1 * CIN, C1)      # (25, 20)
    b1r = b1.reshape(1, C1)
    w2r = w2.reshape(K2 * K2, C1, C2)        # (25, 20, 20) tap-major
    b2c = b2.reshape(C2, 1)

    kernel = functools.partial(_fused_conv_relu_kernel, mxu_dtype=conv2_mxu_dtype)
    out_cm = pl.pallas_call(
        kernel,
        out_shape=jax.ShapeDtypeStruct((C2, b_pad * HO2 * WO2), x_nchw.dtype),
        grid=(nb,),
        in_specs=[
            pl.BlockSpec((bt, H_IN, W_IN), lambda b: (b, 0, 0)),
            pl.BlockSpec((K1 * K1 * CIN, C1), lambda b: (0, 0)),
            pl.BlockSpec((1, C1), lambda b: (0, 0)),
            pl.BlockSpec((K2 * K2, C1, C2), lambda b: (0, 0, 0)),
            pl.BlockSpec((C2, 1), lambda b: (0, 0)),
        ],
        out_specs=pl.BlockSpec((C2, bt * HO2 * WO2), lambda b: (0, b)),
        compiler_params=pltpu.CompilerParams(
            dimension_semantics=("parallel",),       # megacore sharding on v7x
            vmem_limit_bytes=VMEM_LIMIT_BYTES),
    )(x, w1r, b1r, w2r, b2c)

    # (20, Bp*64) -> NCHW (B, 20, 8, 8): tiny wrapper-side layout plumbing.
    out = out_cm.reshape(C2, b_pad, HO2, WO2).transpose(1, 0, 2, 3)
    return out[:B]


def init_params(key):
    """Deterministic PyTorch-style (uniform +/- 1/sqrt(fan_in)) initialization."""
    ks = jax.random.split(key, 6)

    def conv_init(kw_key, kb_key, cin, cout, k):
        bound = float(cin * k * k) ** -0.5
        w = jax.random.uniform(kw_key, (k, k, cin, cout), jnp.float32, -bound, bound)
        b = jax.random.uniform(kb_key, (cout,), jnp.float32, -bound, bound)
        return w, b

    w1, b1 = conv_init(ks[0], ks[1], 1, 20, 5)     # conv1
    w2, b2 = conv_init(ks[2], ks[3], 20, 20, 5)    # conv2
    w3, b3 = conv_init(ks[4], ks[5], 20, 10, 4)    # self.conv (unused in forward)
    return dict(w1=w1, b1=b1, w2=w2, b2=b2, w3=w3, b3=b3)


@functools.partial(jax.jit, static_argnames=("conv2_mxu_dtype",))
def model_forward(params, x_nchw, conv2_mxu_dtype=jnp.bfloat16):
    # PyTorch forward: x = relu(conv1(x)); return relu(conv2(x))
    # TODO(synk): params["w3"]/["b3"] (self.conv) are registered in __init__ but
    # never used in forward, mirroring the PyTorch module.
    return fused_conv_relu(x_nchw, params["w1"], params["b1"],
                           params["w2"], params["b2"],
                           conv2_mxu_dtype=conv2_mxu_dtype)


def _reference_forward(params, x_nchw):
    """Pure-XLA reference (NCHW activations, HWIO weights) for correctness."""
    dn = ("NCHW", "HWIO", "NCHW")
    h = lax.conv_general_dilated(x_nchw, params["w1"], (1, 1), "VALID",
                                 dimension_numbers=dn,
                                 precision=lax.Precision.HIGHEST)
    h = jnp.maximum(h + params["b1"][None, :, None, None], 0.0)
    o = lax.conv_general_dilated(h, params["w2"], (1, 1), "VALID",
                                 dimension_numbers=dn,
                                 precision=lax.Precision.HIGHEST)
    return jnp.maximum(o + params["b2"][None, :, None, None], 0.0)


if __name__ == "__main__":
    key = jax.random.PRNGKey(0)
    pkey, xkey = jax.random.split(key)
    params = init_params(pkey)

    # NCHW input like PyTorch: Conv2d(1, 20, 5) implies 1 input channel.
    x = jax.random.normal(xkey, (2, 1, 16, 16), jnp.float32)

    # Default (production) path: bf16 MXU operands for conv2, f32 accumulate.
    out = model_forward(params, x)
    jax.block_until_ready(out)

    assert out.shape == (2, 20, 8, 8), out.shape
    assert bool(jnp.all(out >= 0.0))  # ReLU output

    ref = _reference_forward(params, x)

    # Exact-parity check of the f32 MXU path (tight tolerance).
    out_f32 = model_forward(params, x, conv2_mxu_dtype=jnp.float32)
    assert bool(jnp.allclose(out_f32, ref, rtol=1e-4, atol=1e-4)), \
        float(jnp.max(jnp.abs(out_f32 - ref)))

    # bf16-operand path: relaxed tolerance (review: expect ~1e-2-level diffs).
    assert bool(jnp.allclose(out, ref, rtol=2e-2, atol=2e-2)), \
        float(jnp.max(jnp.abs(out - ref)))

    print("KERNEL_OK")
</pallas_src>

<mosaic_0001>
module attributes {stable_mosaic.version = 11 : i64} {
  func.func @_fused_conv_relu_kernel(%arg0: i32, %arg1: memref<2x16x16xf32, #tpu.memory_space<vmem>>, %arg2: memref<25x20xf32, #tpu.memory_space<vmem>>, %arg3: memref<1x20xf32, #tpu.memory_space<vmem>>, %arg4: memref<25x20x20xf32, #tpu.memory_space<vmem>>, %arg5: memref<20x1xf32, #tpu.memory_space<vmem>>, %arg6: memref<20x128xf32, #tpu.memory_space<vmem>>) attributes {dimension_semantics = [#tpu.dimension_semantics<parallel>], iteration_bounds = array<i64: 1>, scalar_prefetch = 0 : i64, scratch_operands = 0 : i64, tpu.core_type = #tpu.core_type<tc>, window_params = [{transform_indices = @transform_0, window_bounds = array<i64: 2, 16, 16>}, {pipeline_mode = #tpu.pipeline_mode<synchronous>, transform_indices = @transform_1, window_bounds = array<i64: 25, 20>}, {pipeline_mode = #tpu.pipeline_mode<synchronous>, transform_indices = @transform_2, window_bounds = array<i64: 1, 20>}, {pipeline_mode = #tpu.pipeline_mode<synchronous>, transform_indices = @transform_3, window_bounds = array<i64: 25, 20, 20>}, {pipeline_mode = #tpu.pipeline_mode<synchronous>, transform_indices = @transform_4, window_bounds = array<i64: 20, 1>}, {transform_indices = @transform_5, window_bounds = array<i64: 20, 128>}]} {
    %c0 = arith.constant 0 : index
    %c0_0 = arith.constant 0 : index
    %c0_1 = arith.constant 0 : index
    %0 = vector.load %arg1[%c0, %c0_0, %c0_1] : memref<2x16x16xf32, #tpu.memory_space<vmem>>, vector<2x16x16xf32>
    %1 = vector.extract_strided_slice %0 {offsets = [0, 0, 0], sizes = [2, 12, 12], strides = [1, 1, 1]} : vector<2x16x16xf32> to vector<2x12x12xf32>
    %2 = vector.extract_strided_slice %0 {offsets = [0, 0, 1], sizes = [2, 12, 12], strides = [1, 1, 1]} : vector<2x16x16xf32> to vector<2x12x12xf32>
    %3 = vector.extract_strided_slice %0 {offsets = [0, 0, 2], sizes = [2, 12, 12], strides = [1, 1, 1]} : vector<2x16x16xf32> to vector<2x12x12xf32>
    %4 = vector.extract_strided_slice %0 {offsets = [0, 0, 3], sizes = [2, 12, 12], strides = [1, 1, 1]} : vector<2x16x16xf32> to vector<2x12x12xf32>
    %5 = vector.extract_strided_slice %0 {offsets = [0, 0, 4], sizes = [2, 12, 12], strides = [1, 1, 1]} : vector<2x16x16xf32> to vector<2x12x12xf32>
    %6 = vector.extract_strided_slice %0 {offsets = [0, 1, 0], sizes = [2, 12, 12], strides = [1, 1, 1]} : vector<2x16x16xf32> to vector<2x12x12xf32>
    %7 = vector.extract_strided_slice %0 {offsets = [0, 1, 1], sizes = [2, 12, 12], strides = [1, 1, 1]} : vector<2x16x16xf32> to vector<2x12x12xf32>
    %8 = vector.extract_strided_slice %0 {offsets = [0, 1, 2], sizes = [2, 12, 12], strides = [1, 1, 1]} : vector<2x16x16xf32> to vector<2x12x12xf32>
    %9 = vector.extract_strided_slice %0 {offsets = [0, 1, 3], sizes = [2, 12, 12], strides = [1, 1, 1]} : vector<2x16x16xf32> to vector<2x12x12xf32>
    %10 = vector.extract_strided_slice %0 {offsets = [0, 1, 4], sizes = [2, 12, 12], strides = [1, 1, 1]} : vector<2x16x16xf32> to vector<2x12x12xf32>
    %11 = vector.extract_strided_slice %0 {offsets = [0, 2, 0], sizes = [2, 12, 12], strides = [1, 1, 1]} : vector<2x16x16xf32> to vector<2x12x12xf32>
    %12 = vector.extract_strided_slice %0 {offsets = [0, 2, 1], sizes = [2, 12, 12], strides = [1, 1, 1]} : vector<2x16x16xf32> to vector<2x12x12xf32>
    %13 = vector.extract_strided_slice %0 {offsets = [0, 2, 2], sizes = [2, 12, 12], strides = [1, 1, 1]} : vector<2x16x16xf32> to vector<2x12x12xf32>
    %14 = vector.extract_strided_slice %0 {offsets = [0, 2, 3], sizes = [2, 12, 12], strides = [1, 1, 1]} : vector<2x16x16xf32> to vector<2x12x12xf32>
    %15 = vector.extract_strided_slice %0 {offsets = [0, 2, 4], sizes = [2, 12, 12], strides = [1, 1, 1]} : vector<2x16x16xf32> to vector<2x12x12xf32>
    %16 = vector.extract_strided_slice %0 {offsets = [0, 3, 0], sizes = [2, 12, 12], strides = [1, 1, 1]} : vector<2x16x16xf32> to vector<2x12x12xf32>
    %17 = vector.extract_strided_slice %0 {offsets = [0, 3, 1], sizes = [2, 12, 12], strides = [1, 1, 1]} : vector<2x16x16xf32> to vector<2x12x12xf32>
    %18 = vector.extract_strided_slice %0 {offsets = [0, 3, 2], sizes = [2, 12, 12], strides = [1, 1, 1]} : vector<2x16x16xf32> to vector<2x12x12xf32>
    %19 = vector.extract_strided_slice %0 {offsets = [0, 3, 3], sizes = [2, 12, 12], strides = [1, 1, 1]} : vector<2x16x16xf32> to vector<2x12x12xf32>
    %20 = vector.extract_strided_slice %0 {offsets = [0, 3, 4], sizes = [2, 12, 12], strides = [1, 1, 1]} : vector<2x16x16xf32> to vector<2x12x12xf32>
    %21 = vector.extract_strided_slice %0 {offsets = [0, 4, 0], sizes = [2, 12, 12], strides = [1, 1, 1]} : vector<2x16x16xf32> to vector<2x12x12xf32>
    %22 = vector.extract_strided_slice %0 {offsets = [0, 4, 1], sizes = [2, 12, 12], strides = [1, 1, 1]} : vector<2x16x16xf32> to vector<2x12x12xf32>
    %23 = vector.extract_strided_slice %0 {offsets = [0, 4, 2], sizes = [2, 12, 12], strides = [1, 1, 1]} : vector<2x16x16xf32> to vector<2x12x12xf32>
    %24 = vector.extract_strided_slice %0 {offsets = [0, 4, 3], sizes = [2, 12, 12], strides = [1, 1, 1]} : vector<2x16x16xf32> to vector<2x12x12xf32>
    %25 = vector.extract_strided_slice %0 {offsets = [0, 4, 4], sizes = [2, 12, 12], strides = [1, 1, 1]} : vector<2x16x16xf32> to vector<2x12x12xf32>
    %26 = vector.shape_cast %1 : vector<2x12x12xf32> to vector<2x12x12x1xf32>
    %27 = vector.shape_cast %2 : vector<2x12x12xf32> to vector<2x12x12x1xf32>
    %28 = vector.shape_cast %3 : vector<2x12x12xf32> to vector<2x12x12x1xf32>
    %29 = vector.shape_cast %4 : vector<2x12x12xf32> to vector<2x12x12x1xf32>
    %30 = vector.shape_cast %5 : vector<2x12x12xf32> to vector<2x12x12x1xf32>
    %31 = vector.shape_cast %6 : vector<2x12x12xf32> to vector<2x12x12x1xf32>
    %32 = vector.shape_cast %7 : vector<2x12x12xf32> to vector<2x12x12x1xf32>
    %33 = vector.shape_cast %8 : vector<2x12x12xf32> to vector<2x12x12x1xf32>
    %34 = vector.shape_cast %9 : vector<2x12x12xf32> to vector<2x12x12x1xf32>
    %35 = vector.shape_cast %10 : vector<2x12x12xf32> to vector<2x12x12x1xf32>
    %36 = vector.shape_cast %11 : vector<2x12x12xf32> to vector<2x12x12x1xf32>
    %37 = vector.shape_cast %12 : vector<2x12x12xf32> to vector<2x12x12x1xf32>
    %38 = vector.shape_cast %13 : vector<2x12x12xf32> to vector<2x12x12x1xf32>
    %39 = vector.shape_cast %14 : vector<2x12x12xf32> to vector<2x12x12x1xf32>
    %40 = vector.shape_cast %15 : vector<2x12x12xf32> to vector<2x12x12x1xf32>
    %41 = vector.shape_cast %16 : vector<2x12x12xf32> to vector<2x12x12x1xf32>
    %42 = vector.shape_cast %17 : vector<2x12x12xf32> to vector<2x12x12x1xf32>
    %43 = vector.shape_cast %18 : vector<2x12x12xf32> to vector<2x12x12x1xf32>
    %44 = vector.shape_cast %19 : vector<2x12x12xf32> to vector<2x12x12x1xf32>
    %45 = vector.shape_cast %20 : vector<2x12x12xf32> to vector<2x12x12x1xf32>
    %46 = vector.shape_cast %21 : vector<2x12x12xf32> to vector<2x12x12x1xf32>
    %47 = vector.shape_cast %22 : vector<2x12x12xf32> to vector<2x12x12x1xf32>
    %48 = vector.shape_cast %23 : vector<2x12x12xf32> to vector<2x12x12x1xf32>
    %49 = vector.shape_cast %24 : vector<2x12x12xf32> to vector<2x12x12x1xf32>
    %50 = vector.shape_cast %25 : vector<2x12x12xf32> to vector<2x12x12x1xf32>
    %51 = tpu.concatenate %26, %27, %28, %29, %30, %31, %32, %33, %34, %35, %36, %37, %38, %39, %40, %41 in 3 : vector<2x12x12x1xf32>, vector<2x12x12x1xf32>, vector<2x12x12x1xf32>, vector<2x12x12x1xf32>, vector<2x12x12x1xf32>, vector<2x12x12x1xf32>, vector<2x12x12x1xf32>, vector<2x12x12x1xf32>, vector<2x12x12x1xf32>, vector<2x12x12x1xf32>, vector<2x12x12x1xf32>, vector<2x12x12x1xf32>, vector<2x12x12x1xf32>, vector<2x12x12x1xf32>, vector<2x12x12x1xf32>, vector<2x12x12x1xf32> -> vector<2x12x12x16xf32>
    %52 = tpu.concatenate %42, %43, %44, %45, %46, %47, %48, %49, %50 in 3 : vector<2x12x12x1xf32>, vector<2x12x12x1xf32>, vector<2x12x12x1xf32>, vector<2x12x12x1xf32>, vector<2x12x12x1xf32>, vector<2x12x12x1xf32>, vector<2x12x12x1xf32>, vector<2x12x12x1xf32>, vector<2x12x12x1xf32> -> vector<2x12x12x9xf32>
    %53 = tpu.concatenate %51, %52 in 3 : vector<2x12x12x16xf32>, vector<2x12x12x9xf32> -> vector<2x12x12x25xf32>
    %54 = vector.shape_cast %53 : vector<2x12x12x25xf32> to vector<288x25xf32>
    %c0_2 = arith.constant 0 : index
    %c0_3 = arith.constant 0 : index
    %55 = vector.load %arg2[%c0_2, %c0_3] : memref<25x20xf32, #tpu.memory_space<vmem>>, vector<25x20xf32>
    %cst = arith.constant dense<0.000000e+00> : vector<288x20xf32>
    %56 = tpu.matmul %54, %55, %cst {dimension_numbers = #tpu.dot_dimension_numbers<[1], [0], [0], [1], [0, 0, 1, 1], [], []>} : vector<288x25xf32>, vector<25x20xf32>, vector<288x20xf32> -> vector<288x20xf32>
    %c0_4 = arith.constant 0 : index
    %c0_5 = arith.constant 0 : index
    %57 = vector.load %arg3[%c0_4, %c0_5] : memref<1x20xf32, #tpu.memory_space<vmem>>, vector<1x20xf32>
    %58 = vector.broadcast %57 : vector<1x20xf32> to vector<288x20xf32>
    %59 = arith.addf %56, %58 : vector<288x20xf32>
    %cst_6 = arith.constant 0.000000e+00 : f32
    %60 = vector.broadcast %cst_6 : f32 to vector<288x20xf32>
    %61 = arith.maximumf %59, %60 : vector<288x20xf32>
    %62 = vector.shape_cast %61 : vector<288x20xf32> to vector<2x12x12x20xf32>
    %63 = arith.truncf %62 : vector<2x12x12x20xf32> to vector<2x12x12x20xbf16>
    %c0_7 = arith.constant 0 : index
    %c0_8 = arith.constant 0 : index
    %c0_9 = arith.constant 0 : index
    %64 = vector.load %arg4[%c0_7, %c0_8, %c0_9] : memref<25x20x20xf32, #tpu.memory_space<vmem>>, vector<25x20x20xf32>
    %65 = arith.truncf %64 : vector<25x20x20xf32> to vector<25x20x20xbf16>
    %cst_10 = arith.constant 0.000000e+00 : f32
    %66 = vector.broadcast %cst_10 : f32 to vector<20x128xf32>
    %67 = vector.extract_strided_slice %63 {offsets = [0, 0, 0, 0], sizes = [2, 8, 8, 20], strides = [1, 1, 1, 1]} : vector<2x12x12x20xbf16> to vector<2x8x8x20xbf16>
    %68 = vector.shape_cast %67 : vector<2x8x8x20xbf16> to vector<128x20xbf16>
    %69 = vector.extract_strided_slice %65 {offsets = [0, 0, 0], sizes = [1, 20, 20], strides = [1, 1, 1]} : vector<25x20x20xbf16> to vector<1x20x20xbf16>
    %70 = vector.shape_cast %69 : vector<1x20x20xbf16> to vector<20x20xbf16>
    %cst_11 = arith.constant dense<0.000000e+00> : vector<20x128xf32>
    %71 = tpu.matmul %70, %68, %cst_11 {dimension_numbers = #tpu.dot_dimension_numbers<[0], [1], [1], [0], [0, 1, 1, 0], [], []>} : vector<20x20xbf16>, vector<128x20xbf16>, vector<20x128xf32> -> vector<20x128xf32>
    %72 = arith.addf %66, %71 : vector<20x128xf32>
    %73 = vector.extract_strided_slice %63 {offsets = [0, 0, 1, 0], sizes = [2, 8, 8, 20], strides = [1, 1, 1, 1]} : vector<2x12x12x20xbf16> to vector<2x8x8x20xbf16>
    %74 = vector.shape_cast %73 : vector<2x8x8x20xbf16> to vector<128x20xbf16>
    %75 = vector.extract_strided_slice %65 {offsets = [1, 0, 0], sizes = [1, 20, 20], strides = [1, 1, 1]} : vector<25x20x20xbf16> to vector<1x20x20xbf16>
    %76 = vector.shape_cast %75 : vector<1x20x20xbf16> to vector<20x20xbf16>
    %cst_12 = arith.constant dense<0.000000e+00> : vector<20x128xf32>
    %77 = tpu.matmul %76, %74, %cst_12 {dimension_numbers = #tpu.dot_dimension_numbers<[0], [1], [1], [0], [0, 1, 1, 0], [], []>} : vector<20x20xbf16>, vector<128x20xbf16>, vector<20x128xf32> -> vector<20x128xf32>
    %78 = arith.addf %72, %77 : vector<20x128xf32>
    %79 = vector.extract_strided_slice %63 {offsets = [0, 0, 2, 0], sizes = [2, 8, 8, 20], strides = [1, 1, 1, 1]} : vector<2x12x12x20xbf16> to vector<2x8x8x20xbf16>
    %80 = vector.shape_cast %79 : vector<2x8x8x20xbf16> to vector<128x20xbf16>
    %81 = vector.extract_strided_slice %65 {offsets = [2, 0, 0], sizes = [1, 20, 20], strides = [1, 1, 1]} : vector<25x20x20xbf16> to vector<1x20x20xbf16>
    %82 = vector.shape_cast %81 : vector<1x20x20xbf16> to vector<20x20xbf16>
    %cst_13 = arith.constant dense<0.000000e+00> : vector<20x128xf32>
    %83 = tpu.matmul %82, %80, %cst_13 {dimension_numbers = #tpu.dot_dimension_numbers<[0], [1], [1], [0], [0, 1, 1, 0], [], []>} : vector<20x20xbf16>, vector<128x20xbf16>, vector<20x128xf32> -> vector<20x128xf32>
    %84 = arith.addf %78, %83 : vector<20x128xf32>
    %85 = vector.extract_strided_slice %63 {offsets = [0, 0, 3, 0], sizes = [2, 8, 8, 20], strides = [1, 1, 1, 1]} : vector<2x12x12x20xbf16> to vector<2x8x8x20xbf16>
    %86 = vector.shape_cast %85 : vector<2x8x8x20xbf16> to vector<128x20xbf16>
    %87 = vector.extract_strided_slice %65 {offsets = [3, 0, 0], sizes = [1, 20, 20], strides = [1, 1, 1]} : vector<25x20x20xbf16> to vector<1x20x20xbf16>
    %88 = vector.shape_cast %87 : vector<1x20x20xbf16> to vector<20x20xbf16>
    %cst_14 = arith.constant dense<0.000000e+00> : vector<20x128xf32>
    %89 = tpu.matmul %88, %86, %cst_14 {dimension_numbers = #tpu.dot_dimension_numbers<[0], [1], [1], [0], [0, 1, 1, 0], [], []>} : vector<20x20xbf16>, vector<128x20xbf16>, vector<20x128xf32> -> vector<20x128xf32>
    %90 = arith.addf %84, %89 : vector<20x128xf32>
    %91 = vector.extract_strided_slice %63 {offsets = [0, 0, 4, 0], sizes = [2, 8, 8, 20], strides = [1, 1, 1, 1]} : vector<2x12x12x20xbf16> to vector<2x8x8x20xbf16>
    %92 = vector.shape_cast %91 : vector<2x8x8x20xbf16> to vector<128x20xbf16>
    %93 = vector.extract_strided_slice %65 {offsets = [4, 0, 0], sizes = [1, 20, 20], strides = [1, 1, 1]} : vector<25x20x20xbf16> to vector<1x20x20xbf16>
    %94 = vector.shape_cast %93 : vector<1x20x20xbf16> to vector<20x20xbf16>
    %cst_15 = arith.constant dense<0.000000e+00> : vector<20x128xf32>
    %95 = tpu.matmul %94, %92, %cst_15 {dimension_numbers = #tpu.dot_dimension_numbers<[0], [1], [1], [0], [0, 1, 1, 0], [], []>} : vector<20x20xbf16>, vector<128x20xbf16>, vector<20x128xf32> -> vector<20x128xf32>
    %96 = arith.addf %90, %95 : vector<20x128xf32>
    %97 = vector.extract_strided_slice %63 {offsets = [0, 1, 0, 0], sizes = [2, 8, 8, 20], strides = [1, 1, 1, 1]} : vector<2x12x12x20xbf16> to vector<2x8x8x20xbf16>
    %98 = vector.shape_cast %97 : vector<2x8x8x20xbf16> to vector<128x20xbf16>
    %99 = vector.extract_strided_slice %65 {offsets = [5, 0, 0], sizes = [1, 20, 20], strides = [1, 1, 1]} : vector<25x20x20xbf16> to vector<1x20x20xbf16>
    %100 = vector.shape_cast %99 : vector<1x20x20xbf16> to vector<20x20xbf16>
    %cst_16 = arith.constant dense<0.000000e+00> : vector<20x128xf32>
    %101 = tpu.matmul %100, %98, %cst_16 {dimension_numbers = #tpu.dot_dimension_numbers<[0], [1], [1], [0], [0, 1, 1, 0], [], []>} : vector<20x20xbf16>, vector<128x20xbf16>, vector<20x128xf32> -> vector<20x128xf32>
    %102 = arith.addf %96, %101 : vector<20x128xf32>
    %103 = vector.extract_strided_slice %63 {offsets = [0, 1, 1, 0], sizes = [2, 8, 8, 20], strides = [1, 1, 1, 1]} : vector<2x12x12x20xbf16> to vector<2x8x8x20xbf16>
    %104 = vector.shape_cast %103 : vector<2x8x8x20xbf16> to vector<128x20xbf16>
    %105 = vector.extract_strided_slice %65 {offsets = [6, 0, 0], sizes = [1, 20, 20], strides = [1, 1, 1]} : vector<25x20x20xbf16> to vector<1x20x20xbf16>
    %106 = vector.shape_cast %105 : vector<1x20x20xbf16> to vector<20x20xbf16>
    %cst_17 = arith.constant dense<0.000000e+00> : vector<20x128xf32>
    %107 = tpu.matmul %106, %104, %cst_17 {dimension_numbers = #tpu.dot_dimension_numbers<[0], [1], [1], [0], [0, 1, 1, 0], [], []>} : vector<20x20xbf16>, vector<128x20xbf16>, vector<20x128xf32> -> vector<20x128xf32>
    %108 = arith.addf %102, %107 : vector<20x128xf32>
    %109 = vector.extract_strided_slice %63 {offsets = [0, 1, 2, 0], sizes = [2, 8, 8, 20], strides = [1, 1, 1, 1]} : vector<2x12x12x20xbf16> to vector<2x8x8x20xbf16>
    %110 = vector.shape_cast %109 : vector<2x8x8x20xbf16> to vector<128x20xbf16>
    %111 = vector.extract_strided_slice %65 {offsets = [7, 0, 0], sizes = [1, 20, 20], strides = [1, 1, 1]} : vector<25x20x20xbf16> to vector<1x20x20xbf16>
    %112 = vector.shape_cast %111 : vector<1x20x20xbf16> to vector<20x20xbf16>
    %cst_18 = arith.constant dense<0.000000e+00> : vector<20x128xf32>
    %113 = tpu.matmul %112, %110, %cst_18 {dimension_numbers = #tpu.dot_dimension_numbers<[0], [1], [1], [0], [0, 1, 1, 0], [], []>} : vector<20x20xbf16>, vector<128x20xbf16>, vector<20x128xf32> -> vector<20x128xf32>
    %114 = arith.addf %108, %113 : vector<20x128xf32>
    %115 = vector.extract_strided_slice %63 {offsets = [0, 1, 3, 0], sizes = [2, 8, 8, 20], strides = [1, 1, 1, 1]} : vector<2x12x12x20xbf16> to vector<2x8x8x20xbf16>
    %116 = vector.shape_cast %115 : vector<2x8x8x20xbf16> to vector<128x20xbf16>
    %117 = vector.extract_strided_slice %65 {offsets = [8, 0, 0], sizes = [1, 20, 20], strides = [1, 1, 1]} : vector<25x20x20xbf16> to vector<1x20x20xbf16>
    %118 = vector.shape_cast %117 : vector<1x20x20xbf16> to vector<20x20xbf16>
    %cst_19 = arith.constant dense<0.000000e+00> : vector<20x128xf32>
    %119 = tpu.matmul %118, %116, %cst_19 {dimension_numbers = #tpu.dot_dimension_numbers<[0], [1], [1], [0], [0, 1, 1, 0], [], []>} : vector<20x20xbf16>, vector<128x20xbf16>, vector<20x128xf32> -> vector<20x128xf32>
    %120 = arith.addf %114, %119 : vector<20x128xf32>
    %121 = vector.extract_strided_slice %63 {offsets = [0, 1, 4, 0], sizes = [2, 8, 8, 20], strides = [1, 1, 1, 1]} : vector<2x12x12x20xbf16> to vector<2x8x8x20xbf16>
    %122 = vector.shape_cast %121 : vector<2x8x8x20xbf16> to vector<128x20xbf16>
    %123 = vector.extract_strided_slice %65 {offsets = [9, 0, 0], sizes = [1, 20, 20], strides = [1, 1, 1]} : vector<25x20x20xbf16> to vector<1x20x20xbf16>
    %124 = vector.shape_cast %123 : vector<1x20x20xbf16> to vector<20x20xbf16>
    %cst_20 = arith.constant dense<0.000000e+00> : vector<20x128xf32>
    %125 = tpu.matmul %124, %122, %cst_20 {dimension_numbers = #tpu.dot_dimension_numbers<[0], [1], [1], [0], [0, 1, 1, 0], [], []>} : vector<20x20xbf16>, vector<128x20xbf16>, vector<20x128xf32> -> vector<20x128xf32>
    %126 = arith.addf %120, %125 : vector<20x128xf32>
    %127 = vector.extract_strided_slice %63 {offsets = [0, 2, 0, 0], sizes = [2, 8, 8, 20], strides = [1, 1, 1, 1]} : vector<2x12x12x20xbf16> to vector<2x8x8x20xbf16>
    %128 = vector.shape_cast %127 : vector<2x8x8x20xbf16> to vector<128x20xbf16>
    %129 = vector.extract_strided_slice %65 {offsets = [10, 0, 0], sizes = [1, 20, 20], strides = [1, 1, 1]} : vector<25x20x20xbf16> to vector<1x20x20xbf16>
    %130 = vector.shape_cast %129 : vector<1x20x20xbf16> to vector<20x20xbf16>
    %cst_21 = arith.constant dense<0.000000e+00> : vector<20x128xf32>
    %131 = tpu.matmul %130, %128, %cst_21 {dimension_numbers = #tpu.dot_dimension_numbers<[0], [1], [1], [0], [0, 1, 1, 0], [], []>} : vector<20x20xbf16>, vector<128x20xbf16>, vector<20x128xf32> -> vector<20x128xf32>
    %132 = arith.addf %126, %131 : vector<20x128xf32>
    %133 = vector.extract_strided_slice %63 {offsets = [0, 2, 1, 0], sizes = [2, 8, 8, 20], strides = [1, 1, 1, 1]} : vector<2x12x12x20xbf16> to vector<2x8x8x20xbf16>
    %134 = vector.shape_cast %133 : vector<2x8x8x20xbf16> to vector<128x20xbf16>
    %135 = vector.extract_strided_slice %65 {offsets = [11, 0, 0], sizes = [1, 20, 20], strides = [1, 1, 1]} : vector<25x20x20xbf16> to vector<1x20x20xbf16>
    %136 = vector.shape_cast %135 : vector<1x20x20xbf16> to vector<20x20xbf16>
    %cst_22 = arith.constant dense<0.000000e+00> : vector<20x128xf32>
    %137 = tpu.matmul %136, %134, %cst_22 {dimension_numbers = #tpu.dot_dimension_numbers<[0], [1], [1], [0], [0, 1, 1, 0], [], []>} : vector<20x20xbf16>, vector<128x20xbf16>, vector<20x128xf32> -> vector<20x128xf32>
    %138 = arith.addf %132, %137 : vector<20x128xf32>
    %139 = vector.extract_strided_slice %63 {offsets = [0, 2, 2, 0], sizes = [2, 8, 8, 20], strides = [1, 1, 1, 1]} : vector<2x12x12x20xbf16> to vector<2x8x8x20xbf16>
    %140 = vector.shape_cast %139 : vector<2x8x8x20xbf16> to vector<128x20xbf16>
    %141 = vector.extract_strided_slice %65 {offsets = [12, 0, 0], sizes = [1, 20, 20], strides = [1, 1, 1]} : vector<25x20x20xbf16> to vector<1x20x20xbf16>
    %142 = vector.shape_cast %141 : vector<1x20x20xbf16> to vector<20x20xbf16>
    %cst_23 = arith.constant dense<0.000000e+00> : vector<20x128xf32>
    %143 = tpu.matmul %142, %140, %cst_23 {dimension_numbers = #tpu.dot_dimension_numbers<[0], [1], [1], [0], [0, 1, 1, 0], [], []>} : vector<20x20xbf16>, vector<128x20xbf16>, vector<20x128xf32> -> vector<20x128xf32>
    %144 = arith.addf %138, %143 : vector<20x128xf32>
    %145 = vector.extract_strided_slice %63 {offsets = [0, 2, 3, 0], sizes = [2, 8, 8, 20], strides = [1, 1, 1, 1]} : vector<2x12x12x20xbf16> to vector<2x8x8x20xbf16>
    %146 = vector.shape_cast %145 : vector<2x8x8x20xbf16> to vector<128x20xbf16>
    %147 = vector.extract_strided_slice %65 {offsets = [13, 0, 0], sizes = [1, 20, 20], strides = [1, 1, 1]} : vector<25x20x20xbf16> to vector<1x20x20xbf16>
    %148 = vector.shape_cast %147 : vector<1x20x20xbf16> to vector<20x20xbf16>
    %cst_24 = arith.constant dense<0.000000e+00> : vector<20x128xf32>
    %149 = tpu.matmul %148, %146, %cst_24 {dimension_numbers = #tpu.dot_dimension_numbers<[0], [1], [1], [0], [0, 1, 1, 0], [], []>} : vector<20x20xbf16>, vector<128x20xbf16>, vector<20x128xf32> -> vector<20x128xf32>
    %150 = arith.addf %144, %149 : vector<20x128xf32>
    %151 = vector.extract_strided_slice %63 {offsets = [0, 2, 4, 0], sizes = [2, 8, 8, 20], strides = [1, 1, 1, 1]} : vector<2x12x12x20xbf16> to vector<2x8x8x20xbf16>
    %152 = vector.shape_cast %151 : vector<2x8x8x20xbf16> to vector<128x20xbf16>
    %153 = vector.extract_strided_slice %65 {offsets = [14, 0, 0], sizes = [1, 20, 20], strides = [1, 1, 1]} : vector<25x20x20xbf16> to vector<1x20x20xbf16>
    %154 = vector.shape_cast %153 : vector<1x20x20xbf16> to vector<20x20xbf16>
    %cst_25 = arith.constant dense<0.000000e+00> : vector<20x128xf32>
    %155 = tpu.matmul %154, %152, %cst_25 {dimension_numbers = #tpu.dot_dimension_numbers<[0], [1], [1], [0], [0, 1, 1, 0], [], []>} : vector<20x20xbf16>, vector<128x20xbf16>, vector<20x128xf32> -> vector<20x128xf32>
    %156 = arith.addf %150, %155 : vector<20x128xf32>
    %157 = vector.extract_strided_slice %63 {offsets = [0, 3, 0, 0], sizes = [2, 8, 8, 20], strides = [1, 1, 1, 1]} : vector<2x12x12x20xbf16> to vector<2x8x8x20xbf16>
    %158 = vector.shape_cast %157 : vector<2x8x8x20xbf16> to vector<128x20xbf16>
    %159 = vector.extract_strided_slice %65 {offsets = [15, 0, 0], sizes = [1, 20, 20], strides = [1, 1, 1]} : vector<25x20x20xbf16> to vector<1x20x20xbf16>
    %160 = vector.shape_cast %159 : vector<1x20x20xbf16> to vector<20x20xbf16>
    %cst_26 = arith.constant dense<0.000000e+00> : vector<20x128xf32>
    %161 = tpu.matmul %160, %158, %cst_26 {dimension_numbers = #tpu.dot_dimension_numbers<[0], [1], [1], [0], [0, 1, 1, 0], [], []>} : vector<20x20xbf16>, vector<128x20xbf16>, vector<20x128xf32> -> vector<20x128xf32>
    %162 = arith.addf %156, %161 : vector<20x128xf32>
    %163 = vector.extract_strided_slice %63 {offsets = [0, 3, 1, 0], sizes = [2, 8, 8, 20], strides = [1, 1, 1, 1]} : vector<2x12x12x20xbf16> to vector<2x8x8x20xbf16>
    %164 = vector.shape_cast %163 : vector<2x8x8x20xbf16> to vector<128x20xbf16>
    %165 = vector.extract_strided_slice %65 {offsets = [16, 0, 0], sizes = [1, 20, 20], strides = [1, 1, 1]} : vector<25x20x20xbf16> to vector<1x20x20xbf16>
    %166 = vector.shape_cast %165 : vector<1x20x20xbf16> to vector<20x20xbf16>
    %cst_27 = arith.constant dense<0.000000e+00> : vector<20x128xf32>
    %167 = tpu.matmul %166, %164, %cst_27 {dimension_numbers = #tpu.dot_dimension_numbers<[0], [1], [1], [0], [0, 1, 1, 0], [], []>} : vector<20x20xbf16>, vector<128x20xbf16>, vector<20x128xf32> -> vector<20x128xf32>
    %168 = arith.addf %162, %167 : vector<20x128xf32>
    %169 = vector.extract_strided_slice %63 {offsets = [0, 3, 2, 0], sizes = [2, 8, 8, 20], strides = [1, 1, 1, 1]} : vector<2x12x12x20xbf16> to vector<2x8x8x20xbf16>
    %170 = vector.shape_cast %169 : vector<2x8x8x20xbf16> to vector<128x20xbf16>
    %171 = vector.extract_strided_slice %65 {offsets = [17, 0, 0], sizes = [1, 20, 20], strides = [1, 1, 1]} : vector<25x20x20xbf16> to vector<1x20x20xbf16>
    %172 = vector.shape_cast %171 : vector<1x20x20xbf16> to vector<20x20xbf16>
    %cst_28 = arith.constant dense<0.000000e+00> : vector<20x128xf32>
    %173 = tpu.matmul %172, %170, %cst_28 {dimension_numbers = #tpu.dot_dimension_numbers<[0], [1], [1], [0], [0, 1, 1, 0], [], []>} : vector<20x20xbf16>, vector<128x20xbf16>, vector<20x128xf32> -> vector<20x128xf32>
    %174 = arith.addf %168, %173 : vector<20x128xf32>
    %175 = vector.extract_strided_slice %63 {offsets = [0, 3, 3, 0], sizes = [2, 8, 8, 20], strides = [1, 1, 1, 1]} : vector<2x12x12x20xbf16> to vector<2x8x8x20xbf16>
    %176 = vector.shape_cast %175 : vector<2x8x8x20xbf16> to vector<128x20xbf16>
    %177 = vector.extract_strided_slice %65 {offsets = [18, 0, 0], sizes = [1, 20, 20], strides = [1, 1, 1]} : vector<25x20x20xbf16> to vector<1x20x20xbf16>
    %178 = vector.shape_cast %177 : vector<1x20x20xbf16> to vector<20x20xbf16>
    %cst_29 = arith.constant dense<0.000000e+00> : vector<20x128xf32>
    %179 = tpu.matmul %178, %176, %cst_29 {dimension_numbers = #tpu.dot_dimension_numbers<[0], [1], [1], [0], [0, 1, 1, 0], [], []>} : vector<20x20xbf16>, vector<128x20xbf16>, vector<20x128xf32> -> vector<20x128xf32>
    %180 = arith.addf %174, %179 : vector<20x128xf32>
    %181 = vector.extract_strided_slice %63 {offsets = [0, 3, 4, 0], sizes = [2, 8, 8, 20], strides = [1, 1, 1, 1]} : vector<2x12x12x20xbf16> to vector<2x8x8x20xbf16>
    %182 = vector.shape_cast %181 : vector<2x8x8x20xbf16> to vector<128x20xbf16>
    %183 = vector.extract_strided_slice %65 {offsets = [19, 0, 0], sizes = [1, 20, 20], strides = [1, 1, 1]} : vector<25x20x20xbf16> to vector<1x20x20xbf16>
    %184 = vector.shape_cast %183 : vector<1x20x20xbf16> to vector<20x20xbf16>
    %cst_30 = arith.constant dense<0.000000e+00> : vector<20x128xf32>
    %185 = tpu.matmul %184, %182, %cst_30 {dimension_numbers = #tpu.dot_dimension_numbers<[0], [1], [1], [0], [0, 1, 1, 0], [], []>} : vector<20x20xbf16>, vector<128x20xbf16>, vector<20x128xf32> -> vector<20x128xf32>
    %186 = arith.addf %180, %185 : vector<20x128xf32>
    %187 = vector.extract_strided_slice %63 {offsets = [0, 4, 0, 0], sizes = [2, 8, 8, 20], strides = [1, 1, 1, 1]} : vector<2x12x12x20xbf16> to vector<2x8x8x20xbf16>
    %188 = vector.shape_cast %187 : vector<2x8x8x20xbf16> to vector<128x20xbf16>
    %189 = vector.extract_strided_slice %65 {offsets = [20, 0, 0], sizes = [1, 20, 20], strides = [1, 1, 1]} : vector<25x20x20xbf16> to vector<1x20x20xbf16>
    %190 = vector.shape_cast %189 : vector<1x20x20xbf16> to vector<20x20xbf16>
    %cst_31 = arith.constant dense<0.000000e+00> : vector<20x128xf32>
    %191 = tpu.matmul %190, %188, %cst_31 {dimension_numbers = #tpu.dot_dimension_numbers<[0], [1], [1], [0], [0, 1, 1, 0], [], []>} : vector<20x20xbf16>, vector<128x20xbf16>, vector<20x128xf32> -> vector<20x128xf32>
    %192 = arith.addf %186, %191 : vector<20x128xf32>
    %193 = vector.extract_strided_slice %63 {offsets = [0, 4, 1, 0], sizes = [2, 8, 8, 20], strides = [1, 1, 1, 1]} : vector<2x12x12x20xbf16> to vector<2x8x8x20xbf16>
    %194 = vector.shape_cast %193 : vector<2x8x8x20xbf16> to vector<128x20xbf16>
    %195 = vector.extract_strided_slice %65 {offsets = [21, 0, 0], sizes = [1, 20, 20], strides = [1, 1, 1]} : vector<25x20x20xbf16> to vector<1x20x20xbf16>
    %196 = vector.shape_cast %195 : vector<1x20x20xbf16> to vector<20x20xbf16>
    %cst_32 = arith.constant dense<0.000000e+00> : vector<20x128xf32>
    %197 = tpu.matmul %196, %194, %cst_32 {dimension_numbers = #tpu.dot_dimension_numbers<[0], [1], [1], [0], [0, 1, 1, 0], [], []>} : vector<20x20xbf16>, vector<128x20xbf16>, vector<20x128xf32> -> vector<20x128xf32>
    %198 = arith.addf %192, %197 : vector<20x128xf32>
    %199 = vector.extract_strided_slice %63 {offsets = [0, 4, 2, 0], sizes = [2, 8, 8, 20], strides = [1, 1, 1, 1]} : vector<2x12x12x20xbf16> to vector<2x8x8x20xbf16>
    %200 = vector.shape_cast %199 : vector<2x8x8x20xbf16> to vector<128x20xbf16>
    %201 = vector.extract_strided_slice %65 {offsets = [22, 0, 0], sizes = [1, 20, 20], strides = [1, 1, 1]} : vector<25x20x20xbf16> to vector<1x20x20xbf16>
    %202 = vector.shape_cast %201 : vector<1x20x20xbf16> to vector<20x20xbf16>
    %cst_33 = arith.constant dense<0.000000e+00> : vector<20x128xf32>
    %203 = tpu.matmul %202, %200, %cst_33 {dimension_numbers = #tpu.dot_dimension_numbers<[0], [1], [1], [0], [0, 1, 1, 0], [], []>} : vector<20x20xbf16>, vector<128x20xbf16>, vector<20x128xf32> -> vector<20x128xf32>
    %204 = arith.addf %198, %203 : vector<20x128xf32>
    %205 = vector.extract_strided_slice %63 {offsets = [0, 4, 3, 0], sizes = [2, 8, 8, 20], strides = [1, 1, 1, 1]} : vector<2x12x12x20xbf16> to vector<2x8x8x20xbf16>
    %206 = vector.shape_cast %205 : vector<2x8x8x20xbf16> to vector<128x20xbf16>
    %207 = vector.extract_strided_slice %65 {offsets = [23, 0, 0], sizes = [1, 20, 20], strides = [1, 1, 1]} : vector<25x20x20xbf16> to vector<1x20x20xbf16>
    %208 = vector.shape_cast %207 : vector<1x20x20xbf16> to vector<20x20xbf16>
    %cst_34 = arith.constant dense<0.000000e+00> : vector<20x128xf32>
    %209 = tpu.matmul %208, %206, %cst_34 {dimension_numbers = #tpu.dot_dimension_numbers<[0], [1], [1], [0], [0, 1, 1, 0], [], []>} : vector<20x20xbf16>, vector<128x20xbf16>, vector<20x128xf32> -> vector<20x128xf32>
    %210 = arith.addf %204, %209 : vector<20x128xf32>
    %211 = vector.extract_strided_slice %63 {offsets = [0, 4, 4, 0], sizes = [2, 8, 8, 20], strides = [1, 1, 1, 1]} : vector<2x12x12x20xbf16> to vector<2x8x8x20xbf16>
    %212 = vector.shape_cast %211 : vector<2x8x8x20xbf16> to vector<128x20xbf16>
    %213 = vector.extract_strided_slice %65 {offsets = [24, 0, 0], sizes = [1, 20, 20], strides = [1, 1, 1]} : vector<25x20x20xbf16> to vector<1x20x20xbf16>
    %214 = vector.shape_cast %213 : vector<1x20x20xbf16> to vector<20x20xbf16>
    %cst_35 = arith.constant dense<0.000000e+00> : vector<20x128xf32>
    %215 = tpu.matmul %214, %212, %cst_35 {dimension_numbers = #tpu.dot_dimension_numbers<[0], [1], [1], [0], [0, 1, 1, 0], [], []>} : vector<20x20xbf16>, vector<128x20xbf16>, vector<20x128xf32> -> vector<20x128xf32>
    %216 = arith.addf %210, %215 : vector<20x128xf32>
    %c0_36 = arith.constant 0 : index
    %c0_37 = arith.constant 0 : index
    %217 = vector.load %arg5[%c0_36, %c0_37] : memref<20x1xf32, #tpu.memory_space<vmem>>, vector<20x1xf32>
    %218 = vector.broadcast %217 : vector<20x1xf32> to vector<20x128xf32>
    %219 = arith.addf %216, %218 : vector<20x128xf32>
    %cst_38 = arith.constant 0.000000e+00 : f32
    %220 = vector.broadcast %cst_38 : f32 to vector<20x128xf32>
    %221 = arith.maximumf %219, %220 : vector<20x128xf32>
    %c0_39 = arith.constant 0 : index
    %c0_40 = arith.constant 0 : index
    %222 = vector.load %arg6[%c0_39, %c0_40] : memref<20x128xf32, #tpu.memory_space<vmem>>, vector<20x128xf32>
    tpu.vector_store %arg6[%c0_39, %c0_40], %221 {strides = array<i32>} : memref<20x128xf32, #tpu.memory_space<vmem>>, vector<20x128xf32>,
    return
  }
  func.func @transform_0(%arg0: i32) -> (i32, i32, i32) {
    %c0_i32 = arith.constant 0 : i32
    %c0_i32_0 = arith.constant 0 : i32
    %c0_i32_1 = arith.constant 0 : i32
    return %arg0, %c0_i32, %c0_i32_0 : i32, i32, i32
  }
  func.func @transform_1(%arg0: i32) -> (i32, i32) {
    %c0_i32 = arith.constant 0 : i32
    %c0_i32_0 = arith.constant 0 : i32
    %c0_i32_1 = arith.constant 0 : i32
    return %c0_i32, %c0_i32_0 : i32, i32
  }
  func.func @transform_2(%arg0: i32) -> (i32, i32) {
    %c0_i32 = arith.constant 0 : i32
    %c0_i32_0 = arith.constant 0 : i32
    %c0_i32_1 = arith.constant 0 : i32
    return %c0_i32, %c0_i32_0 : i32, i32
  }
  func.func @transform_3(%arg0: i32) -> (i32, i32, i32) {
    %c0_i32 = arith.constant 0 : i32
    %c0_i32_0 = arith.constant 0 : i32
    %c0_i32_1 = arith.constant 0 : i32
    %c0_i32_2 = arith.constant 0 : i32
    return %c0_i32, %c0_i32_0, %c0_i32_1 : i32, i32, i32
  }
  func.func @transform_4(%arg0: i32) -> (i32, i32) {
    %c0_i32 = arith.constant 0 : i32
    %c0_i32_0 = arith.constant 0 : i32
    %c0_i32_1 = arith.constant 0 : i32
    return %c0_i32, %c0_i32_0 : i32, i32
  }
  func.func @transform_5(%arg0: i32) -> (i32, i32) {
    %c0_i32 = arith.constant 0 : i32
    %c0_i32_0 = arith.constant 0 : i32
    return %c0_i32, %arg0 : i32, i32
  }
}

</mosaic_0001>

<llo_original>
// kernel: model_forward.1
$region0: #{model_forward.1}
  #allocation0 [shape = 'u32[]', space=smem, size = 0x4, offset = 0x4, fixed_abs, tag = 'smem constant byte address 0x4 - core index']
  #allocation1 [shape = 'u32[144,128]{1,0:T(1,128)}', space=vmem, size = 0x12000, scoped, tag = 'internal scratch']
  %s0 = inlined_call_operand.vmem [shape: f32[2,16,16], index: 0, kind: input, shape index: {}]
  %s1 = inlined_call_operand.vmem [shape: f32[25,20], index: 1, kind: input, shape index: {}]
  %s2 = inlined_call_operand.vmem [shape: f32[1,20], index: 2, kind: input, shape index: {}]
  %s3 = inlined_call_operand.hbm [shape: f32[25,20,20], index: 3, kind: input, shape index: {}]
  %s4 = inlined_call_operand.vmem [shape: f32[20,1], index: 4, kind: input, shape index: {}]
  %s5 = inlined_call_operand.vmem [shape: f32[20,128], index: 5, kind: output, shape index: {}]
  %s6 = sld [smem:[#allocation0]]
  $region34: #{model_forward.1} parent=0
    _
  %s8 = ssub.s32 1, %s6
  %s9 = scalar_select 0, %s8, %s6
  $region1: #{model_forward.1} parent=0
    #allocation2 [shape = 'u8[307200]{0}', space=vmem, size = 0x4b000, scoped, tag = 'input window, operand 3, single buffered']
    #allocation3 [shape = 's32[1]{0}', space=sflag, size = 0x4, scoped, tag = 'scoped memory for model_forward.1']
    %10 = vsyncpa [#allocation3], 0
    // Predicated region
    $region2: #{model_forward.1} parent=1 // pred_check
      _
    $region3: #{model_forward.1} parent=1 // pred_check_branch
      %12 = sbr.rel (0) target = $region5
    $region4: #{model_forward.1} parent=1 // pred_region
      _
    $region5: #{model_forward.1} parent=1 // pred_fallthru
      _
    // Predicated region
    $region6: #{model_forward.1} parent=1 // pred_check
      _
    $region7: #{model_forward.1} parent=1 // pred_check_branch
      %14 = sbr.rel (0) target = $region9
    $region8: #{model_forward.1} parent=1 // pred_region
      _
    $region9: #{model_forward.1} parent=1 // pred_fallthru
      _
    // Predicated region
    $region10: #{model_forward.1} parent=1 // pred_check
      _
    $region11: #{model_forward.1} parent=1 // pred_check_branch
      %16 = sbr.rel (0) target = $region13
    $region12: #{model_forward.1} parent=1 // pred_region
      _
    $region13: #{model_forward.1} parent=1 // pred_fallthru
      _
    // Predicated region
    $region14: #{model_forward.1} parent=1 // pred_check
      _
    $region15: #{model_forward.1} parent=1 // pred_check_branch
      %18 = sbr.rel (0) target = $region17
    $region16: #{model_forward.1} parent=1 // pred_region
      %s20 = ssub.s32 9600, 9600
      %21 = vsyncadd [#allocation3], %s20
      %s22 = sshll.u32 [#allocation2], 4
      %s23 = int_to_ptr.vmem [resolvable:$true] %s22
      %28 = dma.hbm_to_vmem [thread:$0]  %s3, 9600, %s23, [#allocation3], 128, 128, 8
    $region17: #{model_forward.1} parent=1 // pred_fallthru
      _
    // Predicated region
    $region18: #{model_forward.1} parent=1 // pred_check
      _
    $region19: #{model_forward.1} parent=1 // pred_check_branch
      %30 = sbr.rel (0) target = $region21
    $region20: #{model_forward.1} parent=1 // pred_region
      _
    $region21: #{model_forward.1} parent=1 // pred_fallthru
      _
    // Predicated region
    $region22: #{model_forward.1} parent=1 // pred_check
      _
    $region23: #{model_forward.1} parent=1 // pred_check_branch
      %32 = sbr.rel (0) target = $region25
    $region24: #{model_forward.1} parent=1 // pred_region
      %33 = dma.done [#allocation3], 9600
    $region25: #{model_forward.1} parent=1 // pred_fallthru
      _
    %v35 = vld [vmem:[%s0] sm:$0xff]
    %v36 = vld [vmem:[%s0 + $0x8] sm:$0xff]
    %v37 = vld [vmem:[%s0 + $0x10] sm:$0xff]
    %v38 = vld [vmem:[%s0 + $0x18] sm:$0xff]
    %v39 = vlaneseq
    %v40 = vshrl.u32 %v39, 7
    %v41 = vsub.s32 0, %v40
    %v42 = vrot.slane %v35, %v41
    %44 = vbcast.lane.b32.xlu0 %v42, 256
    %v45 = vpop.permute.xlu0 %44
    %s47 = sor.u32 256, 8
    %48 = vbcast.lane.b32.xlu0 %v42, %s47
    %v49 = vpop.permute.xlu0 %48
    %v50 = vlaneseq
    %v51 = vshrl.u32 %v50, 7
    %v52 = vsub.s32 1, %v51
    %v53 = vrot.slane %v35, %v52
    %55 = vbcast.lane.b32.xlu0 %v53, 256
    %v56 = vpop.permute.xlu0 %55
    %s58 = sor.u32 256, 8
    %59 = vbcast.lane.b32.xlu0 %v53, %s58
    %v60 = vpop.permute.xlu0 %59
    %v61 = vlaneseq
    %v62 = vshrl.u32 %v61, 7
    %v63 = vsub.s32 2, %v62
    %v64 = vrot.slane %v35, %v63
    %66 = vbcast.lane.b32.xlu0 %v64, 256
    %v67 = vpop.permute.xlu0 %66
    %s69 = sor.u32 256, 8
    %70 = vbcast.lane.b32.xlu0 %v64, %s69
    %v71 = vpop.permute.xlu0 %70
    %v72 = vlaneseq
    %v73 = vshrl.u32 %v72, 7
    %v74 = vsub.s32 3, %v73
    %v75 = vrot.slane %v35, %v74
    %77 = vbcast.lane.b32.xlu0 %v75, 256
    %v78 = vpop.permute.xlu0 %77
    %s80 = sor.u32 256, 8
    %81 = vbcast.lane.b32.xlu0 %v75, %s80
    %v82 = vpop.permute.xlu0 %81
    %v83 = vlaneseq
    %v84 = vshrl.u32 %v83, 7
    %v85 = vsub.s32 4, %v84
    %v86 = vrot.slane %v35, %v85
    %88 = vbcast.lane.b32.xlu0 %v86, 256
    %v89 = vpop.permute.xlu0 %88
    %s91 = sor.u32 256, 8
    %92 = vbcast.lane.b32.xlu0 %v86, %s91
    %v93 = vpop.permute.xlu0 %92
    %v94 = vlaneseq
    %v95 = vshrl.u32 %v94, 7
    %v96 = vsub.s32 5, %v95
    %v97 = vrot.slane %v35, %v96
    %99 = vbcast.lane.b32.xlu0 %v97, 256
    %v100 = vpop.permute.xlu0 %99
    %s102 = sor.u32 256, 8
    %103 = vbcast.lane.b32.xlu0 %v97, %s102
    %v104 = vpop.permute.xlu0 %103
    %v105 = vlaneseq
    %v106 = vshrl.u32 %v105, 7
    %v107 = vsub.s32 6, %v106
    %v108 = vrot.slane %v35, %v107
    %110 = vbcast.lane.b32.xlu0 %v108, 256
    %v111 = vpop.permute.xlu0 %110
    %s113 = sor.u32 256, 8
    %114 = vbcast.lane.b32.xlu0 %v108, %s113
    %v115 = vpop.permute.xlu0 %114
    %v116 = vlaneseq
    %v117 = vshrl.u32 %v116, 7
    %v118 = vsub.s32 7, %v117
    %v119 = vrot.slane %v35, %v118
    %121 = vbcast.lane.b32.xlu0 %v119, 256
    %v122 = vpop.permute.xlu0 %121
    %s124 = sor.u32 256, 8
    %125 = vbcast.lane.b32.xlu0 %v119, %s124
    %v126 = vpop.permute.xlu0 %125
    %v127 = vlaneseq
    %v128 = vshrl.u32 %v127, 7
    %v129 = vsub.s32 0, %v128
    %v130 = vrot.slane %v36, %v129
    %132 = vbcast.lane.b32.xlu0 %v130, 256
    %v133 = vpop.permute.xlu0 %132
    %s135 = sor.u32 256, 8
    %136 = vbcast.lane.b32.xlu0 %v130, %s135
    %v137 = vpop.permute.xlu0 %136
    %v138 = vlaneseq
    %v139 = vshrl.u32 %v138, 7
    %v140 = vsub.s32 1, %v139
    %v141 = vrot.slane %v36, %v140
    %143 = vbcast.lane.b32.xlu0 %v141, 256
    %v144 = vpop.permute.xlu0 %143
    %s146 = sor.u32 256, 8
    %147 = vbcast.lane.b32.xlu0 %v141, %s146
    %v148 = vpop.permute.xlu0 %147
    %v149 = vlaneseq
    %v150 = vshrl.u32 %v149, 7
    %v151 = vsub.s32 2, %v150
    %v152 = vrot.slane %v36, %v151
    %154 = vbcast.lane.b32.xlu0 %v152, 256
    %v155 = vpop.permute.xlu0 %154
    %s157 = sor.u32 256, 8
    %158 = vbcast.lane.b32.xlu0 %v152, %s157
    %v159 = vpop.permute.xlu0 %158
    %v160 = vlaneseq
    %v161 = vshrl.u32 %v160, 7
    %v162 = vsub.s32 3, %v161
    %v163 = vrot.slane %v36, %v162
    %165 = vbcast.lane.b32.xlu0 %v163, 256
    %v166 = vpop.permute.xlu0 %165
    %s168 = sor.u32 256, 8
    %169 = vbcast.lane.b32.xlu0 %v163, %s168
    %v170 = vpop.permute.xlu0 %169
    %v171 = vlaneseq
    %v172 = vshrl.u32 %v171, 7
    %v173 = vsub.s32 0, %v172
    %v174 = vrot.slane %v37, %v173
    %176 = vbcast.lane.b32.xlu0 %v174, 256
    %v177 = vpop.permute.xlu0 %176
    %s179 = sor.u32 256, 8
    %180 = vbcast.lane.b32.xlu0 %v174, %s179
    %v181 = vpop.permute.xlu0 %180
    %v182 = vlaneseq
    %v183 = vshrl.u32 %v182, 7
    %v184 = vsub.s32 1, %v183
    %v185 = vrot.slane %v37, %v184
    %187 = vbcast.lane.b32.xlu0 %v185, 256
    %v188 = vpop.permute.xlu0 %187
    %s190 = sor.u32 256, 8
    %191 = vbcast.lane.b32.xlu0 %v185, %s190
    %v192 = vpop.permute.xlu0 %191
    %v193 = vlaneseq
    %v194 = vshrl.u32 %v193, 7
    %v195 = vsub.s32 2, %v194
    %v196 = vrot.slane %v37, %v195
    %198 = vbcast.lane.b32.xlu0 %v196, 256
    %v199 = vpop.permute.xlu0 %198
    %s201 = sor.u32 256, 8
    %202 = vbcast.lane.b32.xlu0 %v196, %s201
    %v203 = vpop.permute.xlu0 %202
    %v204 = vlaneseq
    %v205 = vshrl.u32 %v204, 7
    %v206 = vsub.s32 3, %v205
    %v207 = vrot.slane %v37, %v206
    %209 = vbcast.lane.b32.xlu0 %v207, 256
    %v210 = vpop.permute.xlu0 %209
    %s212 = sor.u32 256, 8
    %213 = vbcast.lane.b32.xlu0 %v207, %s212
    %v214 = vpop.permute.xlu0 %213
    %v215 = vlaneseq
    %v216 = vshrl.u32 %v215, 7
    %v217 = vsub.s32 4, %v216
    %v218 = vrot.slane %v37, %v217
    %220 = vbcast.lane.b32.xlu0 %v218, 256
    %v221 = vpop.permute.xlu0 %220
    %s223 = sor.u32 256, 8
    %224 = vbcast.lane.b32.xlu0 %v218, %s223
    %v225 = vpop.permute.xlu0 %224
    %v226 = vlaneseq
    %v227 = vshrl.u32 %v226, 7
    %v228 = vsub.s32 5, %v227
    %v229 = vrot.slane %v37, %v228
    %231 = vbcast.lane.b32.xlu0 %v229, 256
    %v232 = vpop.permute.xlu0 %231
    %s234 = sor.u32 256, 8
    %235 = vbcast.lane.b32.xlu0 %v229, %s234
    %v236 = vpop.permute.xlu0 %235
    %v237 = vlaneseq
    %v238 = vshrl.u32 %v237, 7
    %v239 = vsub.s32 6, %v238
    %v240 = vrot.slane %v37, %v239
    %242 = vbcast.lane.b32.xlu0 %v240, 256
    %v243 = vpop.permute.xlu0 %242
    %s245 = sor.u32 256, 8
    %246 = vbcast.lane.b32.xlu0 %v240, %s245
    %v247 = vpop.permute.xlu0 %246
    %v248 = vlaneseq
    %v249 = vshrl.u32 %v248, 7
    %v250 = vsub.s32 7, %v249
    %v251 = vrot.slane %v37, %v250
    %253 = vbcast.lane.b32.xlu0 %v251, 256
    %v254 = vpop.permute.xlu0 %253
    %s256 = sor.u32 256, 8
    %257 = vbcast.lane.b32.xlu0 %v251, %s256
    %v258 = vpop.permute.xlu0 %257
    %v259 = vlaneseq
    %v260 = vshrl.u32 %v259, 7
    %v261 = vsub.s32 0, %v260
    %v262 = vrot.slane %v38, %v261
    %264 = vbcast.lane.b32.xlu0 %v262, 256
    %v265 = vpop.permute.xlu0 %264
    %s267 = sor.u32 256, 8
    %268 = vbcast.lane.b32.xlu0 %v262, %s267
    %v269 = vpop.permute.xlu0 %268
    %v270 = vlaneseq
    %v271 = vshrl.u32 %v270, 7
    %v272 = vsub.s32 1, %v271
    %v273 = vrot.slane %v38, %v272
    %275 = vbcast.lane.b32.xlu0 %v273, 256
    %v276 = vpop.permute.xlu0 %275
    %s278 = sor.u32 256, 8
    %279 = vbcast.lane.b32.xlu0 %v273, %s278
    %v280 = vpop.permute.xlu0 %279
    %v281 = vlaneseq
    %v282 = vshrl.u32 %v281, 7
    %v283 = vsub.s32 2, %v282
    %v284 = vrot.slane %v38, %v283
    %286 = vbcast.lane.b32.xlu0 %v284, 256
    %v287 = vpop.permute.xlu0 %286
    %s289 = sor.u32 256, 8
    %290 = vbcast.lane.b32.xlu0 %v284, %s289
    %v291 = vpop.permute.xlu0 %290
    %v292 = vlaneseq
    %v293 = vshrl.u32 %v292, 7
    %v294 = vsub.s32 3, %v293
    %v295 = vrot.slane %v38, %v294
    %297 = vbcast.lane.b32.xlu0 %v295, 256
    %v298 = vpop.permute.xlu0 %297
    %s300 = sor.u32 256, 8
    %301 = vbcast.lane.b32.xlu0 %v295, %s300
    %v302 = vpop.permute.xlu0 %301
    %s304 = sor.u32 256, 1
    %305 = vbcast.lane.b32.xlu0 %v42, %s304
    %v306 = vpop.permute.xlu0 %305
    %s308 = sor.u32 256, 9
    %309 = vbcast.lane.b32.xlu0 %v42, %s308
    %v310 = vpop.permute.xlu0 %309
    %s312 = sor.u32 256, 1
    %313 = vbcast.lane.b32.xlu0 %v53, %s312
    %v314 = vpop.permute.xlu0 %313
    %s316 = sor.u32 256, 9
    %317 = vbcast.lane.b32.xlu0 %v53, %s316
    %v318 = vpop.permute.xlu0 %317
    %s320 = sor.u32 256, 1
    %321 = vbcast.lane.b32.xlu0 %v64, %s320
    %v322 = vpop.permute.xlu0 %321
    %s324 = sor.u32 256, 9
    %325 = vbcast.lane.b32.xlu0 %v64, %s324
    %v326 = vpop.permute.xlu0 %325
    %s328 = sor.u32 256, 1
    %329 = vbcast.lane.b32.xlu0 %v75, %s328
    %v330 = vpop.permute.xlu0 %329
    %s332 = sor.u32 256, 9
    %333 = vbcast.lane.b32.xlu0 %v75, %s332
    %v334 = vpop.permute.xlu0 %333
    %s336 = sor.u32 256, 1
    %337 = vbcast.lane.b32.xlu0 %v86, %s336
    %v338 = vpop.permute.xlu0 %337
    %s340 = sor.u32 256, 9
    %341 = vbcast.lane.b32.xlu0 %v86, %s340
    %v342 = vpop.permute.xlu0 %341
    %s344 = sor.u32 256, 1
    %345 = vbcast.lane.b32.xlu0 %v97, %s344
    %v346 = vpop.permute.xlu0 %345
    %s348 = sor.u32 256, 9
    %349 = vbcast.lane.b32.xlu0 %v97, %s348
    %v350 = vpop.permute.xlu0 %349
    %s352 = sor.u32 256, 1
    %353 = vbcast.lane.b32.xlu0 %v108, %s352
    %v354 = vpop.permute.xlu0 %353
    %s356 = sor.u32 256, 9
    %357 = vbcast.lane.b32.xlu0 %v108, %s356
    %v358 = vpop.permute.xlu0 %357
    %s360 = sor.u32 256, 1
    %361 = vbcast.lane.b32.xlu0 %v119, %s360
    %v362 = vpop.permute.xlu0 %361
    %s364 = sor.u32 256, 9
    %365 = vbcast.lane.b32.xlu0 %v119, %s364
    %v366 = vpop.permute.xlu0 %365
    %s368 = sor.u32 256, 1
    %369 = vbcast.lane.b32.xlu0 %v130, %s368
    %v370 = vpop.permute.xlu0 %369
    %s372 = sor.u32 256, 9
    %373 = vbcast.lane.b32.xlu0 %v130, %s372
    %v374 = vpop.permute.xlu0 %373
    %s376 = sor.u32 256, 1
    %377 = vbcast.lane.b32.xlu0 %v141, %s376
    %v378 = vpop.permute.xlu0 %377
    %s380 = sor.u32 256, 9
    %381 = vbcast.lane.b32.xlu0 %v141, %s380
    %v382 = vpop.permute.xlu0 %381
    %s384 = sor.u32 256, 1
    %385 = vbcast.lane.b32.xlu0 %v152, %s384
    %v386 = vpop.permute.xlu0 %385
    %s388 = sor.u32 256, 9
    %389 = vbcast.lane.b32.xlu0 %v152, %s388
    %v390 = vpop.permute.xlu0 %389
    %s392 = sor.u32 256, 1
    %393 = vbcast.lane.b32.xlu0 %v163, %s392
    %v394 = vpop.permute.xlu0 %393
    %s396 = sor.u32 256, 9
    %397 = vbcast.lane.b32.xlu0 %v163, %s396
    %v398 = vpop.permute.xlu0 %397
    %s400 = sor.u32 256, 1
    %401 = vbcast.lane.b32.xlu0 %v174, %s400
    %v402 = vpop.permute.xlu0 %401
    %s404 = sor.u32 256, 9
    %405 = vbcast.lane.b32.xlu0 %v174, %s404
    %v406 = vpop.permute.xlu0 %405
    %s408 = sor.u32 256, 1
    %409 = vbcast.lane.b32.xlu0 %v185, %s408
    %v410 = vpop.permute.xlu0 %409
    %s412 = sor.u32 256, 9
    %413 = vbcast.lane.b32.xlu0 %v185, %s412
    %v414 = vpop.permute.xlu0 %413
    %s416 = sor.u32 256, 1
    %417 = vbcast.lane.b32.xlu0 %v196, %s416
    %v418 = vpop.permute.xlu0 %417
    %s420 = sor.u32 256, 9
    %421 = vbcast.lane.b32.xlu0 %v196, %s420
    %v422 = vpop.permute.xlu0 %421
    %s424 = sor.u32 256, 1
    %425 = vbcast.lane.b32.xlu0 %v207, %s424
    %v426 = vpop.permute.xlu0 %425
    %s428 = sor.u32 256, 9
    %429 = vbcast.lane.b32.xlu0 %v207, %s428
    %v430 = vpop.permute.xlu0 %429
    %s432 = sor.u32 256, 1
    %433 = vbcast.lane.b32.xlu0 %v218, %s432
    %v434 = vpop.permute.xlu0 %433
    %s436 = sor.u32 256, 9
    %437 = vbcast.lane.b32.xlu0 %v218, %s436
    %v438 = vpop.permute.xlu0 %437
    %s440 = sor.u32 256, 1
    %441 = vbcast.lane.b32.xlu0 %v229, %s440
    %v442 = vpop.permute.xlu0 %441
    %s444 = sor.u32 256, 9
    %445 = vbcast.lane.b32.xlu0 %v229, %s444
    %v446 = vpop.permute.xlu0 %445
    %s448 = sor.u32 256, 1
    %449 = vbcast.lane.b32.xlu0 %v240, %s448
    %v450 = vpop.permute.xlu0 %449
    %s452 = sor.u32 256, 9
    %453 = vbcast.lane.b32.xlu0 %v240, %s452
    %v454 = vpop.permute.xlu0 %453
    %s456 = sor.u32 256, 1
    %457 = vbcast.lane.b32.xlu0 %v251, %s456
    %v458 = vpop.permute.xlu0 %457
    %s460 = sor.u32 256, 9
    %461 = vbcast.lane.b32.xlu0 %v251, %s460
    %v462 = vpop.permute.xlu0 %461
    %s464 = sor.u32 256, 1
    %465 = vbcast.lane.b32.xlu0 %v262, %s464
    %v466 = vpop.permute.xlu0 %465
    %s468 = sor.u32 256, 9
    %469 = vbcast.lane.b32.xlu0 %v262, %s468
    %v470 = vpop.permute.xlu0 %469
    %s472 = sor.u32 256, 1
    %473 = vbcast.lane.b32.xlu0 %v273, %s472
    %v474 = vpop.permute.xlu0 %473
    %s476 = sor.u32 256, 9
    %477 = vbcast.lane.b32.xlu0 %v273, %s476
    %v478 = vpop.permute.xlu0 %477
    %s480 = sor.u32 256, 1
    %481 = vbcast.lane.b32.xlu0 %v284, %s480
    %v482 = vpop.permute.xlu0 %481
    %s484 = sor.u32 256, 9
    %485 = vbcast.lane.b32.xlu0 %v284, %s484
    %v486 = vpop.permute.xlu0 %485
    %s488 = sor.u32 256, 1
    %489 = vbcast.lane.b32.xlu0 %v295, %s488
    %v490 = vpop.permute.xlu0 %489
    %s492 = sor.u32 256, 9
    %493 = vbcast.lane.b32.xlu0 %v295, %s492
    %v494 = vpop.permute.xlu0 %493
    %s496 = sor.u32 256, 2
    %497 = vbcast.lane.b32.xlu0 %v42, %s496
    %v498 = vpop.permute.xlu0 %497
    %s500 = sor.u32 256, 10
    %501 = vbcast.lane.b32.xlu0 %v42, %s500
    %v502 = vpop.permute.xlu0 %501
    %s504 = sor.u32 256, 2
    %505 = vbcast.lane.b32.xlu0 %v53, %s504
    %v506 = vpop.permute.xlu0 %505
    %s508 = sor.u32 256, 10
    %509 = vbcast.lane.b32.xlu0 %v53, %s508
    %v510 = vpop.permute.xlu0 %509
    %s512 = sor.u32 256, 2
    %513 = vbcast.lane.b32.xlu0 %v64, %s512
    %v514 = vpop.permute.xlu0 %513
    %s516 = sor.u32 256, 10
    %517 = vbcast.lane.b32.xlu0 %v64, %s516
    %v518 = vpop.permute.xlu0 %517
    %s520 = sor.u32 256, 2
    %521 = vbcast.lane.b32.xlu0 %v75, %s520
    %v522 = vpop.permute.xlu0 %521
    %s524 = sor.u32 256, 10
    %525 = vbcast.lane.b32.xlu0 %v75, %s524
    %v526 = vpop.permute.xlu0 %525
    %s528 = sor.u32 256, 2
    %529 = vbcast.lane.b32.xlu0 %v86, %s528
    %v530 = vpop.permute.xlu0 %529
    %s532 = sor.u32 256, 10
    %533 = vbcast.lane.b32.xlu0 %v86, %s532
    %v534 = vpop.permute.xlu0 %533
    %s536 = sor.u32 256, 2
    %537 = vbcast.lane.b32.xlu0 %v97, %s536
    %v538 = vpop.permute.xlu0 %537
    %s540 = sor.u32 256, 10
    %541 = vbcast.lane.b32.xlu0 %v97, %s540
    %v542 = vpop.permute.xlu0 %541
    %s544 = sor.u32 256, 2
    %545 = vbcast.lane.b32.xlu0 %v108, %s544
    %v546 = vpop.permute.xlu0 %545
    %s548 = sor.u32 256, 10
    %549 = vbcast.lane.b32.xlu0 %v108, %s548
    %v550 = vpop.permute.xlu0 %549
    %s552 = sor.u32 256, 2
    %553 = vbcast.lane.b32.xlu0 %v119, %s552
    %v554 = vpop.permute.xlu0 %553
    %s556 = sor.u32 256, 10
    %557 = vbcast.lane.b32.xlu0 %v119, %s556
    %v558 = vpop.permute.xlu0 %557
    %s560 = sor.u32 256, 2
    %561 = vbcast.lane.b32.xlu0 %v130, %s560
    %v562 = vpop.permute.xlu0 %561
    %s564 = sor.u32 256, 10
    %565 = vbcast.lane.b32.xlu0 %v130, %s564
    %v566 = vpop.permute.xlu0 %565
    %s568 = sor.u32 256, 2
    %569 = vbcast.lane.b32.xlu0 %v141, %s568
    %v570 = vpop.permute.xlu0 %569
    %s572 = sor.u32 256, 10
    %573 = vbcast.lane.b32.xlu0 %v141, %s572
    %v574 = vpop.permute.xlu0 %573
    %s576 = sor.u32 256, 2
    %577 = vbcast.lane.b32.xlu0 %v152, %s576
    %v578 = vpop.permute.xlu0 %577
    %s580 = sor.u32 256, 10
    %581 = vbcast.lane.b32.xlu0 %v152, %s580
    %v582 = vpop.permute.xlu0 %581
    %s584 = sor.u32 256, 2
    %585 = vbcast.lane.b32.xlu0 %v163, %s584
    %v586 = vpop.permute.xlu0 %585
    %s588 = sor.u32 256, 10
    %589 = vbcast.lane.b32.xlu0 %v163, %s588
    %v590 = vpop.permute.xlu0 %589
    %s592 = sor.u32 256, 2
    %593 = vbcast.lane.b32.xlu0 %v174, %s592
    %v594 = vpop.permute.xlu0 %593
    %s596 = sor.u32 256, 10
    %597 = vbcast.lane.b32.xlu0 %v174, %s596
    %v598 = vpop.permute.xlu0 %597
    %s600 = sor.u32 256, 2
    %601 = vbcast.lane.b32.xlu0 %v185, %s600
    %v602 = vpop.permute.xlu0 %601
    %s604 = sor.u32 256, 10
    %605 = vbcast.lane.b32.xlu0 %v185, %s604
    %v606 = vpop.permute.xlu0 %605
    %s608 = sor.u32 256, 2
    %609 = vbcast.lane.b32.xlu0 %v196, %s608
    %v610 = vpop.permute.xlu0 %609
    %s612 = sor.u32 256, 10
    %613 = vbcast.lane.b32.xlu0 %v196, %s612
    %v614 = vpop.permute.xlu0 %613
    %s616 = sor.u32 256, 2
    %617 = vbcast.lane.b32.xlu0 %v207, %s616
    %v618 = vpop.permute.xlu0 %617
    %s620 = sor.u32 256, 10
    %621 = vbcast.lane.b32.xlu0 %v207, %s620
    %v622 = vpop.permute.xlu0 %621
    %s624 = sor.u32 256, 2
    %625 = vbcast.lane.b32.xlu0 %v218, %s624
    %v626 = vpop.permute.xlu0 %625
    %s628 = sor.u32 256, 10
    %629 = vbcast.lane.b32.xlu0 %v218, %s628
    %v630 = vpop.permute.xlu0 %629
    %s632 = sor.u32 256, 2
    %633 = vbcast.lane.b32.xlu0 %v229, %s632
    %v634 = vpop.permute.xlu0 %633
    %s636 = sor.u32 256, 10
    %637 = vbcast.lane.b32.xlu0 %v229, %s636
    %v638 = vpop.permute.xlu0 %637
    %s640 = sor.u32 256, 2
    %641 = vbcast.lane.b32.xlu0 %v240, %s640
    %v642 = vpop.permute.xlu0 %641
    %s644 = sor.u32 256, 10
    %645 = vbcast.lane.b32.xlu0 %v240, %s644
    %v646 = vpop.permute.xlu0 %645
    %s648 = sor.u32 256, 2
    %649 = vbcast.lane.b32.xlu0 %v251, %s648
    %v650 = vpop.permute.xlu0 %649
    %s652 = sor.u32 256, 10
    %653 = vbcast.lane.b32.xlu0 %v251, %s652
    %v654 = vpop.permute.xlu0 %653
    %s656 = sor.u32 256, 2
    %657 = vbcast.lane.b32.xlu0 %v262, %s656
    %v658 = vpop.permute.xlu0 %657
    %s660 = sor.u32 256, 10
    %661 = vbcast.lane.b32.xlu0 %v262, %s660
    %v662 = vpop.permute.xlu0 %661
    %s664 = sor.u32 256, 2
    %665 = vbcast.lane.b32.xlu0 %v273, %s664
    %v666 = vpop.permute.xlu0 %665
    %s668 = sor.u32 256, 10
    %669 = vbcast.lane.b32.xlu0 %v273, %s668
    %v670 = vpop.permute.xlu0 %669
    %s672 = sor.u32 256, 2
    %673 = vbcast.lane.b32.xlu0 %v284, %s672
    %v674 = vpop.permute.xlu0 %673
    %s676 = sor.u32 256, 10
    %677 = vbcast.lane.b32.xlu0 %v284, %s676
    %v678 = vpop.permute.xlu0 %677
    %s680 = sor.u32 256, 2
    %681 = vbcast.lane.b32.xlu0 %v295, %s680
    %v682 = vpop.permute.xlu0 %681
    %s684 = sor.u32 256, 10
    %685 = vbcast.lane.b32.xlu0 %v295, %s684
    %v686 = vpop.permute.xlu0 %685
    %s688 = sor.u32 256, 3
    %689 = vbcast.lane.b32.xlu0 %v42, %s688
    %v690 = vpop.permute.xlu0 %689
    %s692 = sor.u32 256, 11
    %693 = vbcast.lane.b32.xlu0 %v42, %s692
    %v694 = vpop.permute.xlu0 %693
    %s696 = sor.u32 256, 3
    %697 = vbcast.lane.b32.xlu0 %v53, %s696
    %v698 = vpop.permute.xlu0 %697
    %s700 = sor.u32 256, 11
    %701 = vbcast.lane.b32.xlu0 %v53, %s700
    %v702 = vpop.permute.xlu0 %701
    %s704 = sor.u32 256, 3
    %705 = vbcast.lane.b32.xlu0 %v64, %s704
    %v706 = vpop.permute.xlu0 %705
    %s708 = sor.u32 256, 11
    %709 = vbcast.lane.b32.xlu0 %v64, %s708
    %v710 = vpop.permute.xlu0 %709
    %s712 = sor.u32 256, 3
    %713 = vbcast.lane.b32.xlu0 %v75, %s712
    %v714 = vpop.permute.xlu0 %713
    %s716 = sor.u32 256, 11
    %717 = vbcast.lane.b32.xlu0 %v75, %s716
    %v718 = vpop.permute.xlu0 %717
    %s720 = sor.u32 256, 3
    %721 = vbcast.lane.b32.xlu0 %v86, %s720
    %v722 = vpop.permute.xlu0 %721
    %s724 = sor.u32 256, 11
    %725 = vbcast.lane.b32.xlu0 %v86, %s724
    %v726 = vpop.permute.xlu0 %725
    %s728 = sor.u32 256, 3
    %729 = vbcast.lane.b32.xlu0 %v97, %s728
    %v730 = vpop.permute.xlu0 %729
    %s732 = sor.u32 256, 11
    %733 = vbcast.lane.b32.xlu0 %v97, %s732
    %v734 = vpop.permute.xlu0 %733
    %s736 = sor.u32 256, 3
    %737 = vbcast.lane.b32.xlu0 %v108, %s736
    %v738 = vpop.permute.xlu0 %737
    %s740 = sor.u32 256, 11
    %741 = vbcast.lane.b32.xlu0 %v108, %s740
    %v742 = vpop.permute.xlu0 %741
    %s744 = sor.u32 256, 3
    %745 = vbcast.lane.b32.xlu0 %v119, %s744
    %v746 = vpop.permute.xlu0 %745
    %s748 = sor.u32 256, 11
    %749 = vbcast.lane.b32.xlu0 %v119, %s748
    %v750 = vpop.permute.xlu0 %749
    %s752 = sor.u32 256, 3
    %753 = vbcast.lane.b32.xlu0 %v130, %s752
    %v754 = vpop.permute.xlu0 %753
    %s756 = sor.u32 256, 11
    %757 = vbcast.lane.b32.xlu0 %v130, %s756
    %v758 = vpop.permute.xlu0 %757
    %s760 = sor.u32 256, 3
    %761 = vbcast.lane.b32.xlu0 %v141, %s760
    %v762 = vpop.permute.xlu0 %761
    %s764 = sor.u32 256, 11
    %765 = vbcast.lane.b32.xlu0 %v141, %s764
    %v766 = vpop.permute.xlu0 %765
    %s768 = sor.u32 256, 3
    %769 = vbcast.lane.b32.xlu0 %v152, %s768
    %v770 = vpop.permute.xlu0 %769
    %s772 = sor.u32 256, 11
    %773 = vbcast.lane.b32.xlu0 %v152, %s772
    %v774 = vpop.permute.xlu0 %773
    %s776 = sor.u32 256, 3
    %777 = vbcast.lane.b32.xlu0 %v163, %s776
    %v778 = vpop.permute.xlu0 %777
    %s780 = sor.u32 256, 11
    %781 = vbcast.lane.b32.xlu0 %v163, %s780
    %v782 = vpop.permute.xlu0 %781
    %s784 = sor.u32 256, 3
    %785 = vbcast.lane.b32.xlu0 %v174, %s784
    %v786 = vpop.permute.xlu0 %785
    %s788 = sor.u32 256, 11
    %789 = vbcast.lane.b32.xlu0 %v174, %s788
    %v790 = vpop.permute.xlu0 %789
    %s792 = sor.u32 256, 3
    %793 = vbcast.lane.b32.xlu0 %v185, %s792
    %v794 = vpop.permute.xlu0 %793
    %s796 = sor.u32 256, 11
    %797 = vbcast.lane.b32.xlu0 %v185, %s796
    %v798 = vpop.permute.xlu0 %797
    %s800 = sor.u32 256, 3
    %801 = vbcast.lane.b32.xlu0 %v196, %s800
    %v802 = vpop.permute.xlu0 %801
    %s804 = sor.u32 256, 11
    %805 = vbcast.lane.b32.xlu0 %v196, %s804
    %v806 = vpop.permute.xlu0 %805
    %s808 = sor.u32 256, 3
    %809 = vbcast.lane.b32.xlu0 %v207, %s808
    %v810 = vpop.permute.xlu0 %809
    %s812 = sor.u32 256, 11
    %813 = vbcast.lane.b32.xlu0 %v207, %s812
    %v814 = vpop.permute.xlu0 %813
    %s816 = sor.u32 256, 3
    %817 = vbcast.lane.b32.xlu0 %v218, %s816
    %v818 = vpop.permute.xlu0 %817
    %s820 = sor.u32 256, 11
    %821 = vbcast.lane.b32.xlu0 %v218, %s820
    %v822 = vpop.permute.xlu0 %821
    %s824 = sor.u32 256, 3
    %825 = vbcast.lane.b32.xlu0 %v229, %s824
    %v826 = vpop.permute.xlu0 %825
    %s828 = sor.u32 256, 11
    %829 = vbcast.lane.b32.xlu0 %v229, %s828
    %v830 = vpop.permute.xlu0 %829
    %s832 = sor.u32 256, 3
    %833 = vbcast.lane.b32.xlu0 %v240, %s832
    %v834 = vpop.permute.xlu0 %833
    %s836 = sor.u32 256, 11
    %837 = vbcast.lane.b32.xlu0 %v240, %s836
    %v838 = vpop.permute.xlu0 %837
    %s840 = sor.u32 256, 3
    %841 = vbcast.lane.b32.xlu0 %v251, %s840
    %v842 = vpop.permute.xlu0 %841
    %s844 = sor.u32 256, 11
    %845 = vbcast.lane.b32.xlu0 %v251, %s844
    %v846 = vpop.permute.xlu0 %845
    %s848 = sor.u32 256, 3
    %849 = vbcast.lane.b32.xlu0 %v262, %s848
    %v850 = vpop.permute.xlu0 %849
    %s852 = sor.u32 256, 11
    %853 = vbcast.lane.b32.xlu0 %v262, %s852
    %v854 = vpop.permute.xlu0 %853
    %s856 = sor.u32 256, 3
    %857 = vbcast.lane.b32.xlu0 %v273, %s856
    %v858 = vpop.permute.xlu0 %857
    %s860 = sor.u32 256, 11
    %861 = vbcast.lane.b32.xlu0 %v273, %s860
    %v862 = vpop.permute.xlu0 %861
    %s864 = sor.u32 256, 3
    %865 = vbcast.lane.b32.xlu0 %v284, %s864
    %v866 = vpop.permute.xlu0 %865
    %s868 = sor.u32 256, 11
    %869 = vbcast.lane.b32.xlu0 %v284, %s868
    %v870 = vpop.permute.xlu0 %869
    %s872 = sor.u32 256, 3
    %873 = vbcast.lane.b32.xlu0 %v295, %s872
    %v874 = vpop.permute.xlu0 %873
    %s876 = sor.u32 256, 11
    %877 = vbcast.lane.b32.xlu0 %v295, %s876
    %v878 = vpop.permute.xlu0 %877
    %s880 = sor.u32 256, 4
    %881 = vbcast.lane.b32.xlu0 %v42, %s880
    %v882 = vpop.permute.xlu0 %881
    %s884 = sor.u32 256, 12
    %885 = vbcast.lane.b32.xlu0 %v42, %s884
    %v886 = vpop.permute.xlu0 %885
    %s888 = sor.u32 256, 4
    %889 = vbcast.lane.b32.xlu0 %v53, %s888
    %v890 = vpop.permute.xlu0 %889
    %s892 = sor.u32 256, 12
    %893 = vbcast.lane.b32.xlu0 %v53, %s892
    %v894 = vpop.permute.xlu0 %893
    %s896 = sor.u32 256, 4
    %897 = vbcast.lane.b32.xlu0 %v64, %s896
    %v898 = vpop.permute.xlu0 %897
    %s900 = sor.u32 256, 12
    %901 = vbcast.lane.b32.xlu0 %v64, %s900
    %v902 = vpop.permute.xlu0 %901
    %s904 = sor.u32 256, 4
    %905 = vbcast.lane.b32.xlu0 %v75, %s904
    %v906 = vpop.permute.xlu0 %905
    %s908 = sor.u32 256, 12
    %909 = vbcast.lane.b32.xlu0 %v75, %s908
    %v910 = vpop.permute.xlu0 %909
    %s912 = sor.u32 256, 4
    %913 = vbcast.lane.b32.xlu0 %v86, %s912
    %v914 = vpop.permute.xlu0 %913
    %s916 = sor.u32 256, 12
    %917 = vbcast.lane.b32.xlu0 %v86, %s916
    %v918 = vpop.permute.xlu0 %917
    %s920 = sor.u32 256, 4
    %921 = vbcast.lane.b32.xlu0 %v97, %s920
    %v922 = vpop.permute.xlu0 %921
    %s924 = sor.u32 256, 12
    %925 = vbcast.lane.b32.xlu0 %v97, %s924
    %v926 = vpop.permute.xlu0 %925
    %s928 = sor.u32 256, 4
    %929 = vbcast.lane.b32.xlu0 %v108, %s928
    %v930 = vpop.permute.xlu0 %929
    %s932 = sor.u32 256, 12
    %933 = vbcast.lane.b32.xlu0 %v108, %s932
    %v934 = vpop.permute.xlu0 %933
    %s936 = sor.u32 256, 4
    %937 = vbcast.lane.b32.xlu0 %v119, %s936
    %v938 = vpop.permute.xlu0 %937
    %s940 = sor.u32 256, 12
    %941 = vbcast.lane.b32.xlu0 %v119, %s940
    %v942 = vpop.permute.xlu0 %941
    %s944 = sor.u32 256, 4
    %945 = vbcast.lane.b32.xlu0 %v130, %s944
    %v946 = vpop.permute.xlu0 %945
    %s948 = sor.u32 256, 12
    %949 = vbcast.lane.b32.xlu0 %v130, %s948
    %v950 = vpop.permute.xlu0 %949
    %s952 = sor.u32 256, 4
    %953 = vbcast.lane.b32.xlu0 %v141, %s952
    %v954 = vpop.permute.xlu0 %953
    %s956 = sor.u32 256, 12
    %957 = vbcast.lane.b32.xlu0 %v141, %s956
    %v958 = vpop.permute.xlu0 %957
    %s960 = sor.u32 256, 4
    %961 = vbcast.lane.b32.xlu0 %v152, %s960
    %v962 = vpop.permute.xlu0 %961
    %s964 = sor.u32 256, 12
    %965 = vbcast.lane.b32.xlu0 %v152, %s964
    %v966 = vpop.permute.xlu0 %965
    %s968 = sor.u32 256, 4
    %969 = vbcast.lane.b32.xlu0 %v163, %s968
    %v970 = vpop.permute.xlu0 %969
    %s972 = sor.u32 256, 12
    %973 = vbcast.lane.b32.xlu0 %v163, %s972
    %v974 = vpop.permute.xlu0 %973
    %s976 = sor.u32 256, 4
    %977 = vbcast.lane.b32.xlu0 %v174, %s976
    %v978 = vpop.permute.xlu0 %977
    %s980 = sor.u32 256, 12
    %981 = vbcast.lane.b32.xlu0 %v174, %s980
    %v982 = vpop.permute.xlu0 %981
    %s984 = sor.u32 256, 4
    %985 = vbcast.lane.b32.xlu0 %v185, %s984
    %v986 = vpop.permute.xlu0 %985
    %s988 = sor.u32 256, 12
    %989 = vbcast.lane.b32.xlu0 %v185, %s988
    %v990 = vpop.permute.xlu0 %989
    %s992 = sor.u32 256, 4
    %993 = vbcast.lane.b32.xlu0 %v196, %s992
    %v994 = vpop.permute.xlu0 %993
    %s996 = sor.u32 256, 12
    %997 = vbcast.lane.b32.xlu0 %v196, %s996
    %v998 = vpop.permute.xlu0 %997
    %s1000 = sor.u32 256, 4
    %1001 = vbcast.lane.b32.xlu0 %v207, %s1000
    %v1002 = vpop.permute.xlu0 %1001
    %s1004 = sor.u32 256, 12
    %1005 = vbcast.lane.b32.xlu0 %v207, %s1004
    %v1006 = vpop.permute.xlu0 %1005
    %s1008 = sor.u32 256, 4
    %1009 = vbcast.lane.b32.xlu0 %v218, %s1008
    %v1010 = vpop.permute.xlu0 %1009
    %s1012 = sor.u32 256, 12
    %1013 = vbcast.lane.b32.xlu0 %v218, %s1012
    %v1014 = vpop.permute.xlu0 %1013
    %s1016 = sor.u32 256, 4
    %1017 = vbcast.lane.b32.xlu0 %v229, %s1016
    %v1018 = vpop.permute.xlu0 %1017
    %s1020 = sor.u32 256, 12
    %1021 = vbcast.lane.b32.xlu0 %v229, %s1020
    %v1022 = vpop.permute.xlu0 %1021
    %s1024 = sor.u32 256, 4
    %1025 = vbcast.lane.b32.xlu0 %v240, %s1024
    %v1026 = vpop.permute.xlu0 %1025
    %s1028 = sor.u32 256, 12
    %1029 = vbcast.lane.b32.xlu0 %v240, %s1028
    %v1030 = vpop.permute.xlu0 %1029
    %s1032 = sor.u32 256, 4
    %1033 = vbcast.lane.b32.xlu0 %v251, %s1032
    %v1034 = vpop.permute.xlu0 %1033
    %s1036 = sor.u32 256, 12
    %1037 = vbcast.lane.b32.xlu0 %v251, %s1036
    %v1038 = vpop.permute.xlu0 %1037
    %s1040 = sor.u32 256, 4
    %1041 = vbcast.lane.b32.xlu0 %v262, %s1040
    %v1042 = vpop.permute.xlu0 %1041
    %s1044 = sor.u32 256, 12
    %1045 = vbcast.lane.b32.xlu0 %v262, %s1044
    %v1046 = vpop.permute.xlu0 %1045
    %s1048 = sor.u32 256, 4
    %1049 = vbcast.lane.b32.xlu0 %v273, %s1048
    %v1050 = vpop.permute.xlu0 %1049
    %s1052 = sor.u32 256, 12
    %1053 = vbcast.lane.b32.xlu0 %v273, %s1052
    %v1054 = vpop.permute.xlu0 %1053
    %s1056 = sor.u32 256, 4
    %1057 = vbcast.lane.b32.xlu0 %v284, %s1056
    %v1058 = vpop.permute.xlu0 %1057
    %s1060 = sor.u32 256, 12
    %1061 = vbcast.lane.b32.xlu0 %v284, %s1060
    %v1062 = vpop.permute.xlu0 %1061
    %s1064 = sor.u32 256, 4
    %1065 = vbcast.lane.b32.xlu0 %v295, %s1064
    %v1066 = vpop.permute.xlu0 %1065
    %s1068 = sor.u32 256, 12
    %1069 = vbcast.lane.b32.xlu0 %v295, %s1068
    %v1070 = vpop.permute.xlu0 %1069
    %v1071 = vlaneseq
    %v1072 = vshrl.u32 %v1071, 7
    %v1073 = vsub.s32 4, %v1072
    %v1074 = vrot.slane %v36, %v1073
    %1076 = vbcast.lane.b32.xlu0 %v1074, 256
    %v1077 = vpop.permute.xlu0 %1076
    %s1079 = sor.u32 256, 8
    %1080 = vbcast.lane.b32.xlu0 %v1074, %s1079
    %v1081 = vpop.permute.xlu0 %1080
    %v1082 = vlaneseq
    %v1083 = vshrl.u32 %v1082, 7
    %v1084 = vsub.s32 4, %v1083
    %v1085 = vrot.slane %v38, %v1084
    %1087 = vbcast.lane.b32.xlu0 %v1085, 256
    %v1088 = vpop.permute.xlu0 %1087
    %s1090 = sor.u32 256, 8
    %1091 = vbcast.lane.b32.xlu0 %v1085, %s1090
    %v1092 = vpop.permute.xlu0 %1091
    %s1094 = sor.u32 256, 1
    %1095 = vbcast.lane.b32.xlu0 %v1074, %s1094
    %v1096 = vpop.permute.xlu0 %1095
    %s1098 = sor.u32 256, 9
    %1099 = vbcast.lane.b32.xlu0 %v1074, %s1098
    %v1100 = vpop.permute.xlu0 %1099
    %s1102 = sor.u32 256, 1
    %1103 = vbcast.lane.b32.xlu0 %v1085, %s1102
    %v1104 = vpop.permute.xlu0 %1103
    %s1106 = sor.u32 256, 9
    %1107 = vbcast.lane.b32.xlu0 %v1085, %s1106
    %v1108 = vpop.permute.xlu0 %1107
    %s1110 = sor.u32 256, 2
    %1111 = vbcast.lane.b32.xlu0 %v1074, %s1110
    %v1112 = vpop.permute.xlu0 %1111
    %s1114 = sor.u32 256, 10
    %1115 = vbcast.lane.b32.xlu0 %v1074, %s1114
    %v1116 = vpop.permute.xlu0 %1115
    %s1118 = sor.u32 256, 2
    %1119 = vbcast.lane.b32.xlu0 %v1085, %s1118
    %v1120 = vpop.permute.xlu0 %1119
    %s1122 = sor.u32 256, 10
    %1123 = vbcast.lane.b32.xlu0 %v1085, %s1122
    %v1124 = vpop.permute.xlu0 %1123
    %s1126 = sor.u32 256, 3
    %1127 = vbcast.lane.b32.xlu0 %v1074, %s1126
    %v1128 = vpop.permute.xlu0 %1127
    %s1130 = sor.u32 256, 11
    %1131 = vbcast.lane.b32.xlu0 %v1074, %s1130
    %v1132 = vpop.permute.xlu0 %1131
    %s1134 = sor.u32 256, 3
    %1135 = vbcast.lane.b32.xlu0 %v1085, %s1134
    %v1136 = vpop.permute.xlu0 %1135
    %s1138 = sor.u32 256, 11
    %1139 = vbcast.lane.b32.xlu0 %v1085, %s1138
    %v1140 = vpop.permute.xlu0 %1139
    %s1142 = sor.u32 256, 4
    %1143 = vbcast.lane.b32.xlu0 %v1074, %s1142
    %v1144 = vpop.permute.xlu0 %1143
    %s1146 = sor.u32 256, 12
    %1147 = vbcast.lane.b32.xlu0 %v1074, %s1146
    %v1148 = vpop.permute.xlu0 %1147
    %s1150 = sor.u32 256, 4
    %1151 = vbcast.lane.b32.xlu0 %v1085, %s1150
    %v1152 = vpop.permute.xlu0 %1151
    %s1154 = sor.u32 256, 12
    %1155 = vbcast.lane.b32.xlu0 %v1085, %s1154
    %v1156 = vpop.permute.xlu0 %1155
    %v1157 = vlaneseq
    %v1158 = vshrl.u32 %v1157, 7
    %v1159 = vsub.s32 5, %v1158
    %v1160 = vrot.slane %v36, %v1159
    %1162 = vbcast.lane.b32.xlu0 %v1160, 256
    %v1163 = vpop.permute.xlu0 %1162
    %s1165 = sor.u32 256, 8
    %1166 = vbcast.lane.b32.xlu0 %v1160, %s1165
    %v1167 = vpop.permute.xlu0 %1166
    %v1168 = vlaneseq
    %v1169 = vshrl.u32 %v1168, 7
    %v1170 = vsub.s32 5, %v1169
    %v1171 = vrot.slane %v38, %v1170
    %1173 = vbcast.lane.b32.xlu0 %v1171, 256
    %v1174 = vpop.permute.xlu0 %1173
    %s1176 = sor.u32 256, 8
    %1177 = vbcast.lane.b32.xlu0 %v1171, %s1176
    %v1178 = vpop.permute.xlu0 %1177
    %s1180 = sor.u32 256, 1
    %1181 = vbcast.lane.b32.xlu0 %v1160, %s1180
    %v1182 = vpop.permute.xlu0 %1181
    %s1184 = sor.u32 256, 9
    %1185 = vbcast.lane.b32.xlu0 %v1160, %s1184
    %v1186 = vpop.permute.xlu0 %1185
    %s1188 = sor.u32 256, 1
    %1189 = vbcast.lane.b32.xlu0 %v1171, %s1188
    %v1190 = vpop.permute.xlu0 %1189
    %s1192 = sor.u32 256, 9
    %1193 = vbcast.lane.b32.xlu0 %v1171, %s1192
    %v1194 = vpop.permute.xlu0 %1193
    %s1196 = sor.u32 256, 2
    %1197 = vbcast.lane.b32.xlu0 %v1160, %s1196
    %v1198 = vpop.permute.xlu0 %1197
    %s1200 = sor.u32 256, 10
    %1201 = vbcast.lane.b32.xlu0 %v1160, %s1200
    %v1202 = vpop.permute.xlu0 %1201
    %s1204 = sor.u32 256, 2
    %1205 = vbcast.lane.b32.xlu0 %v1171, %s1204
    %v1206 = vpop.permute.xlu0 %1205
    %s1208 = sor.u32 256, 10
    %1209 = vbcast.lane.b32.xlu0 %v1171, %s1208
    %v1210 = vpop.permute.xlu0 %1209
    %s1212 = sor.u32 256, 3
    %1213 = vbcast.lane.b32.xlu0 %v1160, %s1212
    %v1214 = vpop.permute.xlu0 %1213
    %s1216 = sor.u32 256, 11
    %1217 = vbcast.lane.b32.xlu0 %v1160, %s1216
    %v1218 = vpop.permute.xlu0 %1217
    %s1220 = sor.u32 256, 3
    %1221 = vbcast.lane.b32.xlu0 %v1171, %s1220
    %v1222 = vpop.permute.xlu0 %1221
    %s1224 = sor.u32 256, 11
    %1225 = vbcast.lane.b32.xlu0 %v1171, %s1224
    %v1226 = vpop.permute.xlu0 %1225
    %s1228 = sor.u32 256, 4
    %1229 = vbcast.lane.b32.xlu0 %v1160, %s1228
    %v1230 = vpop.permute.xlu0 %1229
    %s1232 = sor.u32 256, 12
    %1233 = vbcast.lane.b32.xlu0 %v1160, %s1232
    %v1234 = vpop.permute.xlu0 %1233
    %s1236 = sor.u32 256, 4
    %1237 = vbcast.lane.b32.xlu0 %v1171, %s1236
    %v1238 = vpop.permute.xlu0 %1237
    %s1240 = sor.u32 256, 12
    %1241 = vbcast.lane.b32.xlu0 %v1171, %s1240
    %v1242 = vpop.permute.xlu0 %1241
    %v1243 = vlaneseq
    %v1244 = vshrl.u32 %v1243, 7
    %v1245 = vsub.s32 6, %v1244
    %v1246 = vrot.slane %v36, %v1245
    %1248 = vbcast.lane.b32.xlu0 %v1246, 256
    %v1249 = vpop.permute.xlu0 %1248
    %s1251 = sor.u32 256, 8
    %1252 = vbcast.lane.b32.xlu0 %v1246, %s1251
    %v1253 = vpop.permute.xlu0 %1252
    %v1254 = vlaneseq
    %v1255 = vshrl.u32 %v1254, 7
    %v1256 = vsub.s32 6, %v1255
    %v1257 = vrot.slane %v38, %v1256
    %1259 = vbcast.lane.b32.xlu0 %v1257, 256
    %v1260 = vpop.permute.xlu0 %1259
    %s1262 = sor.u32 256, 8
    %1263 = vbcast.lane.b32.xlu0 %v1257, %s1262
    %v1264 = vpop.permute.xlu0 %1263
    %s1266 = sor.u32 256, 1
    %1267 = vbcast.lane.b32.xlu0 %v1246, %s1266
    %v1268 = vpop.permute.xlu0 %1267
    %s1270 = sor.u32 256, 9
    %1271 = vbcast.lane.b32.xlu0 %v1246, %s1270
    %v1272 = vpop.permute.xlu0 %1271
    %s1274 = sor.u32 256, 1
    %1275 = vbcast.lane.b32.xlu0 %v1257, %s1274
    %v1276 = vpop.permute.xlu0 %1275
    %s1278 = sor.u32 256, 9
    %1279 = vbcast.lane.b32.xlu0 %v1257, %s1278
    %v1280 = vpop.permute.xlu0 %1279
    %s1282 = sor.u32 256, 2
    %1283 = vbcast.lane.b32.xlu0 %v1246, %s1282
    %v1284 = vpop.permute.xlu0 %1283
    %s1286 = sor.u32 256, 10
    %1287 = vbcast.lane.b32.xlu0 %v1246, %s1286
    %v1288 = vpop.permute.xlu0 %1287
    %s1290 = sor.u32 256, 2
    %1291 = vbcast.lane.b32.xlu0 %v1257, %s1290
    %v1292 = vpop.permute.xlu0 %1291
    %s1294 = sor.u32 256, 10
    %1295 = vbcast.lane.b32.xlu0 %v1257, %s1294
    %v1296 = vpop.permute.xlu0 %1295
    %s1298 = sor.u32 256, 3
    %1299 = vbcast.lane.b32.xlu0 %v1246, %s1298
    %v1300 = vpop.permute.xlu0 %1299
    %s1302 = sor.u32 256, 11
    %1303 = vbcast.lane.b32.xlu0 %v1246, %s1302
    %v1304 = vpop.permute.xlu0 %1303
    %s1306 = sor.u32 256, 3
    %1307 = vbcast.lane.b32.xlu0 %v1257, %s1306
    %v1308 = vpop.permute.xlu0 %1307
    %s1310 = sor.u32 256, 11
    %1311 = vbcast.lane.b32.xlu0 %v1257, %s1310
    %v1312 = vpop.permute.xlu0 %1311
    %s1314 = sor.u32 256, 4
    %1315 = vbcast.lane.b32.xlu0 %v1246, %s1314
    %v1316 = vpop.permute.xlu0 %1315
    %s1318 = sor.u32 256, 12
    %1319 = vbcast.lane.b32.xlu0 %v1246, %s1318
    %v1320 = vpop.permute.xlu0 %1319
    %s1322 = sor.u32 256, 4
    %1323 = vbcast.lane.b32.xlu0 %v1257, %s1322
    %v1324 = vpop.permute.xlu0 %1323
    %s1326 = sor.u32 256, 12
    %1327 = vbcast.lane.b32.xlu0 %v1257, %s1326
    %v1328 = vpop.permute.xlu0 %1327
    %v1329 = vlaneseq
    %v1330 = vshrl.u32 %v1329, 7
    %v1331 = vsub.s32 7, %v1330
    %v1332 = vrot.slane %v36, %v1331
    %1334 = vbcast.lane.b32.xlu0 %v1332, 256
    %v1335 = vpop.permute.xlu0 %1334
    %s1337 = sor.u32 256, 8
    %1338 = vbcast.lane.b32.xlu0 %v1332, %s1337
    %v1339 = vpop.permute.xlu0 %1338
    %v1340 = vlaneseq
    %v1341 = vshrl.u32 %v1340, 7
    %v1342 = vsub.s32 7, %v1341
    %v1343 = vrot.slane %v38, %v1342
    %1345 = vbcast.lane.b32.xlu0 %v1343, 256
    %v1346 = vpop.permute.xlu0 %1345
    %s1348 = sor.u32 256, 8
    %1349 = vbcast.lane.b32.xlu0 %v1343, %s1348
    %v1350 = vpop.permute.xlu0 %1349
    %s1352 = sor.u32 256, 1
    %1353 = vbcast.lane.b32.xlu0 %v1332, %s1352
    %v1354 = vpop.permute.xlu0 %1353
    %s1356 = sor.u32 256, 9
    %1357 = vbcast.lane.b32.xlu0 %v1332, %s1356
    %v1358 = vpop.permute.xlu0 %1357
    %s1360 = sor.u32 256, 1
    %1361 = vbcast.lane.b32.xlu0 %v1343, %s1360
    %v1362 = vpop.permute.xlu0 %1361
    %s1364 = sor.u32 256, 9
    %1365 = vbcast.lane.b32.xlu0 %v1343, %s1364
    %v1366 = vpop.permute.xlu0 %1365
    %s1368 = sor.u32 256, 2
    %1369 = vbcast.lane.b32.xlu0 %v1332, %s1368
    %v1370 = vpop.permute.xlu0 %1369
    %s1372 = sor.u32 256, 10
    %1373 = vbcast.lane.b32.xlu0 %v1332, %s1372
    %v1374 = vpop.permute.xlu0 %1373
    %s1376 = sor.u32 256, 2
    %1377 = vbcast.lane.b32.xlu0 %v1343, %s1376
    %v1378 = vpop.permute.xlu0 %1377
    %s1380 = sor.u32 256, 10
    %1381 = vbcast.lane.b32.xlu0 %v1343, %s1380
    %v1382 = vpop.permute.xlu0 %1381
    %s1384 = sor.u32 256, 3
    %1385 = vbcast.lane.b32.xlu0 %v1332, %s1384
    %v1386 = vpop.permute.xlu0 %1385
    %s1388 = sor.u32 256, 11
    %1389 = vbcast.lane.b32.xlu0 %v1332, %s1388
    %v1390 = vpop.permute.xlu0 %1389
    %s1392 = sor.u32 256, 3
    %1393 = vbcast.lane.b32.xlu0 %v1343, %s1392
    %v1394 = vpop.permute.xlu0 %1393
    %s1396 = sor.u32 256, 11
    %1397 = vbcast.lane.b32.xlu0 %v1343, %s1396
    %v1398 = vpop.permute.xlu0 %1397
    %s1400 = sor.u32 256, 4
    %1401 = vbcast.lane.b32.xlu0 %v1332, %s1400
    %v1402 = vpop.permute.xlu0 %1401
    %s1404 = sor.u32 256, 12
    %1405 = vbcast.lane.b32.xlu0 %v1332, %s1404
    %v1406 = vpop.permute.xlu0 %1405
    %s1408 = sor.u32 256, 4
    %1409 = vbcast.lane.b32.xlu0 %v1343, %s1408
    %v1410 = vpop.permute.xlu0 %1409
    %s1412 = sor.u32 256, 12
    %1413 = vbcast.lane.b32.xlu0 %v1343, %s1412
    %v1414 = vpop.permute.xlu0 %1413
    %vm1415 = vcmask 7168
    %v1416 = vsel %vm1415, %v45, %v306
    %v1417 = vsel %vm1415, %v49, %v310
    %v1418 = vsel %vm1415, %v56, %v314
    %v1419 = vsel %vm1415, %v60, %v318
    %v1420 = vsel %vm1415, %v67, %v322
    %v1421 = vsel %vm1415, %v71, %v326
    %v1422 = vsel %vm1415, %v78, %v330
    %v1423 = vsel %vm1415, %v82, %v334
    %v1424 = vsel %vm1415, %v89, %v338
    %v1425 = vsel %vm1415, %v93, %v342
    %v1426 = vsel %vm1415, %v100, %v346
    %v1427 = vsel %vm1415, %v104, %v350
    %v1428 = vsel %vm1415, %v111, %v354
    %v1429 = vsel %vm1415, %v115, %v358
    %v1430 = vsel %vm1415, %v122, %v362
    %v1431 = vsel %vm1415, %v126, %v366
    %v1432 = vsel %vm1415, %v133, %v370
    %v1433 = vsel %vm1415, %v137, %v374
    %v1434 = vsel %vm1415, %v144, %v378
    %v1435 = vsel %vm1415, %v148, %v382
    %v1436 = vsel %vm1415, %v155, %v386
    %v1437 = vsel %vm1415, %v159, %v390
    %v1438 = vsel %vm1415, %v166, %v394
    %v1439 = vsel %vm1415, %v170, %v398
    %v1440 = vsel %vm1415, %v177, %v402
    %v1441 = vsel %vm1415, %v181, %v406
    %v1442 = vsel %vm1415, %v188, %v410
    %v1443 = vsel %vm1415, %v192, %v414
    %v1444 = vsel %vm1415, %v199, %v418
    %v1445 = vsel %vm1415, %v203, %v422
    %v1446 = vsel %vm1415, %v210, %v426
    %v1447 = vsel %vm1415, %v214, %v430
    %v1448 = vsel %vm1415, %v221, %v434
    %v1449 = vsel %vm1415, %v225, %v438
    %v1450 = vsel %vm1415, %v232, %v442
    %v1451 = vsel %vm1415, %v236, %v446
    %v1452 = vsel %vm1415, %v243, %v450
    %v1453 = vsel %vm1415, %v247, %v454
    %v1454 = vsel %vm1415, %v254, %v458
    %v1455 = vsel %vm1415, %v258, %v462
    %v1456 = vsel %vm1415, %v265, %v466
    %v1457 = vsel %vm1415, %v269, %v470
    %v1458 = vsel %vm1415, %v276, %v474
    %v1459 = vsel %vm1415, %v280, %v478
    %v1460 = vsel %vm1415, %v287, %v482
    %v1461 = vsel %vm1415, %v291, %v486
    %v1462 = vsel %vm1415, %v298, %v490
    %v1463 = vsel %vm1415, %v302, %v494
    %vm1464 = vcmask 15360
    %v1465 = vsel %vm1464, %v1416, %v498
    %v1466 = vsel %vm1464, %v1417, %v502
    %v1467 = vsel %vm1464, %v1418, %v506
    %v1468 = vsel %vm1464, %v1419, %v510
    %v1469 = vsel %vm1464, %v1420, %v514
    %v1470 = vsel %vm1464, %v1421, %v518
    %v1471 = vsel %vm1464, %v1422, %v522
    %v1472 = vsel %vm1464, %v1423, %v526
    %v1473 = vsel %vm1464, %v1424, %v530
    %v1474 = vsel %vm1464, %v1425, %v534
    %v1475 = vsel %vm1464, %v1426, %v538
    %v1476 = vsel %vm1464, %v1427, %v542
    %v1477 = vsel %vm1464, %v1428, %v546
    %v1478 = vsel %vm1464, %v1429, %v550
    %v1479 = vsel %vm1464, %v1430, %v554
    %v1480 = vsel %vm1464, %v1431, %v558
    %v1481 = vsel %vm1464, %v1432, %v562
    %v1482 = vsel %vm1464, %v1433, %v566
    %v1483 = vsel %vm1464, %v1434, %v570
    %v1484 = vsel %vm1464, %v1435, %v574
    %v1485 = vsel %vm1464, %v1436, %v578
    %v1486 = vsel %vm1464, %v1437, %v582
    %v1487 = vsel %vm1464, %v1438, %v586
    %v1488 = vsel %vm1464, %v1439, %v590
    %v1489 = vsel %vm1464, %v1440, %v594
    %v1490 = vsel %vm1464, %v1441, %v598
    %v1491 = vsel %vm1464, %v1442, %v602
    %v1492 = vsel %vm1464, %v1443, %v606
    %v1493 = vsel %vm1464, %v1444, %v610
    %v1494 = vsel %vm1464, %v1445, %v614
    %v1495 = vsel %vm1464, %v1446, %v618
    %v1496 = vsel %vm1464, %v1447, %v622
    %v1497 = vsel %vm1464, %v1448, %v626
    %v1498 = vsel %vm1464, %v1449, %v630
    %v1499 = vsel %vm1464, %v1450, %v634
    %v1500 = vsel %vm1464, %v1451, %v638
    %v1501 = vsel %vm1464, %v1452, %v642
    %v1502 = vsel %vm1464, %v1453, %v646
    %v1503 = vsel %vm1464, %v1454, %v650
    %v1504 = vsel %vm1464, %v1455, %v654
    %v1505 = vsel %vm1464, %v1456, %v658
    %v1506 = vsel %vm1464, %v1457, %v662
    %v1507 = vsel %vm1464, %v1458, %v666
    %v1508 = vsel %vm1464, %v1459, %v670
    %v1509 = vsel %vm1464, %v1460, %v674
    %v1510 = vsel %vm1464, %v1461, %v678
    %v1511 = vsel %vm1464, %v1462, %v682
    %v1512 = vsel %vm1464, %v1463, %v686
    %vm1513 = vcmask 23552
    %v1514 = vsel %vm1513, %v1465, %v690
    %v1515 = vsel %vm1513, %v1466, %v694
    %v1516 = vsel %vm1513, %v1467, %v698
    %v1517 = vsel %vm1513, %v1468, %v702
    %v1518 = vsel %vm1513, %v1469, %v706
    %v1519 = vsel %vm1513, %v1470, %v710
    %v1520 = vsel %vm1513, %v1471, %v714
    %v1521 = vsel %vm1513, %v1472, %v718
    %v1522 = vsel %vm1513, %v1473, %v722
    %v1523 = vsel %vm1513, %v1474, %v726
    %v1524 = vsel %vm1513, %v1475, %v730
    %v1525 = vsel %vm1513, %v1476, %v734
    %v1526 = vsel %vm1513, %v1477, %v738
    %v1527 = vsel %vm1513, %v1478, %v742
    %v1528 = vsel %vm1513, %v1479, %v746
    %v1529 = vsel %vm1513, %v1480, %v750
    %v1530 = vsel %vm1513, %v1481, %v754
    %v1531 = vsel %vm1513, %v1482, %v758
    %v1532 = vsel %vm1513, %v1483, %v762
    %v1533 = vsel %vm1513, %v1484, %v766
    %v1534 = vsel %vm1513, %v1485, %v770
    %v1535 = vsel %vm1513, %v1486, %v774
    %v1536 = vsel %vm1513, %v1487, %v778
    %v1537 = vsel %vm1513, %v1488, %v782
    %v1538 = vsel %vm1513, %v1489, %v786
    %v1539 = vsel %vm1513, %v1490, %v790
    %v1540 = vsel %vm1513, %v1491, %v794
    %v1541 = vsel %vm1513, %v1492, %v798
    %v1542 = vsel %vm1513, %v1493, %v802
    %v1543 = vsel %vm1513, %v1494, %v806
    %v1544 = vsel %vm1513, %v1495, %v810
    %v1545 = vsel %vm1513, %v1496, %v814
    %v1546 = vsel %vm1513, %v1497, %v818
    %v1547 = vsel %vm1513, %v1498, %v822
    %v1548 = vsel %vm1513, %v1499, %v826
    %v1549 = vsel %vm1513, %v1500, %v830
    %v1550 = vsel %vm1513, %v1501, %v834
    %v1551 = vsel %vm1513, %v1502, %v838
    %v1552 = vsel %vm1513, %v1503, %v842
    %v1553 = vsel %vm1513, %v1504, %v846
    %v1554 = vsel %vm1513, %v1505, %v850
    %v1555 = vsel %vm1513, %v1506, %v854
    %v1556 = vsel %vm1513, %v1507, %v858
    %v1557 = vsel %vm1513, %v1508, %v862
    %v1558 = vsel %vm1513, %v1509, %v866
    %v1559 = vsel %vm1513, %v1510, %v870
    %v1560 = vsel %vm1513, %v1511, %v874
    %v1561 = vsel %vm1513, %v1512, %v878
    %vm1562 = vcmask 31744
    %v1563 = vsel %vm1562, %v1514, %v882
    %v1564 = vsel %vm1562, %v1515, %v886
    %v1565 = vsel %vm1562, %v1516, %v890
    %v1566 = vsel %vm1562, %v1517, %v894
    %v1567 = vsel %vm1562, %v1518, %v898
    %v1568 = vsel %vm1562, %v1519, %v902
    %v1569 = vsel %vm1562, %v1520, %v906
    %v1570 = vsel %vm1562, %v1521, %v910
    %v1571 = vsel %vm1562, %v1522, %v914
    %v1572 = vsel %vm1562, %v1523, %v918
    %v1573 = vsel %vm1562, %v1524, %v922
    %v1574 = vsel %vm1562, %v1525, %v926
    %v1575 = vsel %vm1562, %v1526, %v930
    %v1576 = vsel %vm1562, %v1527, %v934
    %v1577 = vsel %vm1562, %v1528, %v938
    %v1578 = vsel %vm1562, %v1529, %v942
    %v1579 = vsel %vm1562, %v1530, %v946
    %v1580 = vsel %vm1562, %v1531, %v950
    %v1581 = vsel %vm1562, %v1532, %v954
    %v1582 = vsel %vm1562, %v1533, %v958
    %v1583 = vsel %vm1562, %v1534, %v962
    %v1584 = vsel %vm1562, %v1535, %v966
    %v1585 = vsel %vm1562, %v1536, %v970
    %v1586 = vsel %vm1562, %v1537, %v974
    %v1587 = vsel %vm1562, %v1538, %v978
    %v1588 = vsel %vm1562, %v1539, %v982
    %v1589 = vsel %vm1562, %v1540, %v986
    %v1590 = vsel %vm1562, %v1541, %v990
    %v1591 = vsel %vm1562, %v1542, %v994
    %v1592 = vsel %vm1562, %v1543, %v998
    %v1593 = vsel %vm1562, %v1544, %v1002
    %v1594 = vsel %vm1562, %v1545, %v1006
    %v1595 = vsel %vm1562, %v1546, %v1010
    %v1596 = vsel %vm1562, %v1547, %v1014
    %v1597 = vsel %vm1562, %v1548, %v1018
    %v1598 = vsel %vm1562, %v1549, %v1022
    %v1599 = vsel %vm1562, %v1550, %v1026
    %v1600 = vsel %vm1562, %v1551, %v1030
    %v1601 = vsel %vm1562, %v1552, %v1034
    %v1602 = vsel %vm1562, %v1553, %v1038
    %v1603 = vsel %vm1562, %v1554, %v1042
    %v1604 = vsel %vm1562, %v1555, %v1046
    %v1605 = vsel %vm1562, %v1556, %v1050
    %v1606 = vsel %vm1562, %v1557, %v1054
    %v1607 = vsel %vm1562, %v1558, %v1058
    %v1608 = vsel %vm1562, %v1559, %v1062
    %v1609 = vsel %vm1562, %v1560, %v1066
    %v1610 = vsel %vm1562, %v1561, %v1070
    %vm1611 = vcmask 39936
    %v1612 = vsel %vm1611, %v1563, %v56
    %v1613 = vsel %vm1611, %v1564, %v60
    %v1614 = vsel %vm1611, %v1565, %v67
    %v1615 = vsel %vm1611, %v1566, %v71
    %v1616 = vsel %vm1611, %v1567, %v78
    %v1617 = vsel %vm1611, %v1568, %v82
    %v1618 = vsel %vm1611, %v1569, %v89
    %v1619 = vsel %vm1611, %v1570, %v93
    %v1620 = vsel %vm1611, %v1571, %v100
    %v1621 = vsel %vm1611, %v1572, %v104
    %v1622 = vsel %vm1611, %v1573, %v111
    %v1623 = vsel %vm1611, %v1574, %v115
    %v1624 = vsel %vm1611, %v1575, %v122
    %v1625 = vsel %vm1611, %v1576, %v126
    %v1626 = vsel %vm1611, %v1577, %v133
    %v1627 = vsel %vm1611, %v1578, %v137
    %v1628 = vsel %vm1611, %v1579, %v144
    %v1629 = vsel %vm1611, %v1580, %v148
    %v1630 = vsel %vm1611, %v1581, %v155
    %v1631 = vsel %vm1611, %v1582, %v159
    %v1632 = vsel %vm1611, %v1583, %v166
    %v1633 = vsel %vm1611, %v1584, %v170
    %v1634 = vsel %vm1611, %v1585, %v1077
    %v1635 = vsel %vm1611, %v1586, %v1081
    %v1636 = vsel %vm1611, %v1587, %v188
    %v1637 = vsel %vm1611, %v1588, %v192
    %v1638 = vsel %vm1611, %v1589, %v199
    %v1639 = vsel %vm1611, %v1590, %v203
    %v1640 = vsel %vm1611, %v1591, %v210
    %v1641 = vsel %vm1611, %v1592, %v214
    %v1642 = vsel %vm1611, %v1593, %v221
    %v1643 = vsel %vm1611, %v1594, %v225
    %v1644 = vsel %vm1611, %v1595, %v232
    %v1645 = vsel %vm1611, %v1596, %v236
    %v1646 = vsel %vm1611, %v1597, %v243
    %v1647 = vsel %vm1611, %v1598, %v247
    %v1648 = vsel %vm1611, %v1599, %v254
    %v1649 = vsel %vm1611, %v1600, %v258
    %v1650 = vsel %vm1611, %v1601, %v265
    %v1651 = vsel %vm1611, %v1602, %v269
    %v1652 = vsel %vm1611, %v1603, %v276
    %v1653 = vsel %vm1611, %v1604, %v280
    %v1654 = vsel %vm1611, %v1605, %v287
    %v1655 = vsel %vm1611, %v1606, %v291
    %v1656 = vsel %vm1611, %v1607, %v298
    %v1657 = vsel %vm1611, %v1608, %v302
    %v1658 = vsel %vm1611, %v1609, %v1088
    %v1659 = vsel %vm1611, %v1610, %v1092
    %vm1660 = vcmask 48128
    %v1661 = vsel %vm1660, %v1612, %v314
    %v1662 = vsel %vm1660, %v1613, %v318
    %v1663 = vsel %vm1660, %v1614, %v322
    %v1664 = vsel %vm1660, %v1615, %v326
    %v1665 = vsel %vm1660, %v1616, %v330
    %v1666 = vsel %vm1660, %v1617, %v334
    %v1667 = vsel %vm1660, %v1618, %v338
    %v1668 = vsel %vm1660, %v1619, %v342
    %v1669 = vsel %vm1660, %v1620, %v346
    %v1670 = vsel %vm1660, %v1621, %v350
    %v1671 = vsel %vm1660, %v1622, %v354
    %v1672 = vsel %vm1660, %v1623, %v358
    %v1673 = vsel %vm1660, %v1624, %v362
    %v1674 = vsel %vm1660, %v1625, %v366
    %v1675 = vsel %vm1660, %v1626, %v370
    %v1676 = vsel %vm1660, %v1627, %v374
    %v1677 = vsel %vm1660, %v1628, %v378
    %v1678 = vsel %vm1660, %v1629, %v382
    %v1679 = vsel %vm1660, %v1630, %v386
    %v1680 = vsel %vm1660, %v1631, %v390
    %v1681 = vsel %vm1660, %v1632, %v394
    %v1682 = vsel %vm1660, %v1633, %v398
    %v1683 = vsel %vm1660, %v1634, %v1096
    %v1684 = vsel %vm1660, %v1635, %v1100
    %v1685 = vsel %vm1660, %v1636, %v410
    %v1686 = vsel %vm1660, %v1637, %v414
    %v1687 = vsel %vm1660, %v1638, %v418
    %v1688 = vsel %vm1660, %v1639, %v422
    %v1689 = vsel %vm1660, %v1640, %v426
    %v1690 = vsel %vm1660, %v1641, %v430
    %v1691 = vsel %vm1660, %v1642, %v434
    %v1692 = vsel %vm1660, %v1643, %v438
    %v1693 = vsel %vm1660, %v1644, %v442
    %v1694 = vsel %vm1660, %v1645, %v446
    %v1695 = vsel %vm1660, %v1646, %v450
    %v1696 = vsel %vm1660, %v1647, %v454
    %v1697 = vsel %vm1660, %v1648, %v458
    %v1698 = vsel %vm1660, %v1649, %v462
    %v1699 = vsel %vm1660, %v1650, %v466
    %v1700 = vsel %vm1660, %v1651, %v470
    %v1701 = vsel %vm1660, %v1652, %v474
    %v1702 = vsel %vm1660, %v1653, %v478
    %v1703 = vsel %vm1660, %v1654, %v482
    %v1704 = vsel %vm1660, %v1655, %v486
    %v1705 = vsel %vm1660, %v1656, %v490
    %v1706 = vsel %vm1660, %v1657, %v494
    %v1707 = vsel %vm1660, %v1658, %v1104
    %v1708 = vsel %vm1660, %v1659, %v1108
    %vm1709 = vcmask 56320
    %v1710 = vsel %vm1709, %v1661, %v506
    %v1711 = vsel %vm1709, %v1662, %v510
    %v1712 = vsel %vm1709, %v1663, %v514
    %v1713 = vsel %vm1709, %v1664, %v518
    %v1714 = vsel %vm1709, %v1665, %v522
    %v1715 = vsel %vm1709, %v1666, %v526
    %v1716 = vsel %vm1709, %v1667, %v530
    %v1717 = vsel %vm1709, %v1668, %v534
    %v1718 = vsel %vm1709, %v1669, %v538
    %v1719 = vsel %vm1709, %v1670, %v542
    %v1720 = vsel %vm1709, %v1671, %v546
    %v1721 = vsel %vm1709, %v1672, %v550
    %v1722 = vsel %vm1709, %v1673, %v554
    %v1723 = vsel %vm1709, %v1674, %v558
    %v1724 = vsel %vm1709, %v1675, %v562
    %v1725 = vsel %vm1709, %v1676, %v566
    %v1726 = vsel %vm1709, %v1677, %v570
    %v1727 = vsel %vm1709, %v1678, %v574
    %v1728 = vsel %vm1709, %v1679, %v578
    %v1729 = vsel %vm1709, %v1680, %v582
    %v1730 = vsel %vm1709, %v1681, %v586
    %v1731 = vsel %vm1709, %v1682, %v590
    %v1732 = vsel %vm1709, %v1683, %v1112
    %v1733 = vsel %vm1709, %v1684, %v1116
    %v1734 = vsel %vm1709, %v1685, %v602
    %v1735 = vsel %vm1709, %v1686, %v606
    %v1736 = vsel %vm1709, %v1687, %v610
    %v1737 = vsel %vm1709, %v1688, %v614
    %v1738 = vsel %vm1709, %v1689, %v618
    %v1739 = vsel %vm1709, %v1690, %v622
    %v1740 = vsel %vm1709, %v1691, %v626
    %v1741 = vsel %vm1709, %v1692, %v630
    %v1742 = vsel %vm1709, %v1693, %v634
    %v1743 = vsel %vm1709, %v1694, %v638
    %v1744 = vsel %vm1709, %v1695, %v642
    %v1745 = vsel %vm1709, %v1696, %v646
    %v1746 = vsel %vm1709, %v1697, %v650
    %v1747 = vsel %vm1709, %v1698, %v654
    %v1748 = vsel %vm1709, %v1699, %v658
    %v1749 = vsel %vm1709, %v1700, %v662
    %v1750 = vsel %vm1709, %v1701, %v666
    %v1751 = vsel %vm1709, %v1702, %v670
    %v1752 = vsel %vm1709, %v1703, %v674
    %v1753 = vsel %vm1709, %v1704, %v678
    %v1754 = vsel %vm1709, %v1705, %v682
    %v1755 = vsel %vm1709, %v1706, %v686
    %v1756 = vsel %vm1709, %v1707, %v1120
    %v1757 = vsel %vm1709, %v1708, %v1124
    %vm1758 = vcmask 64512
    %v1759 = vsel %vm1758, %v1710, %v698
    %v1760 = vsel %vm1758, %v1711, %v702
    %v1761 = vsel %vm1758, %v1712, %v706
    %v1762 = vsel %vm1758, %v1713, %v710
    %v1763 = vsel %vm1758, %v1714, %v714
    %v1764 = vsel %vm1758, %v1715, %v718
    %v1765 = vsel %vm1758, %v1716, %v722
    %v1766 = vsel %vm1758, %v1717, %v726
    %v1767 = vsel %vm1758, %v1718, %v730
    %v1768 = vsel %vm1758, %v1719, %v734
    %v1769 = vsel %vm1758, %v1720, %v738
    %v1770 = vsel %vm1758, %v1721, %v742
    %v1771 = vsel %vm1758, %v1722, %v746
    %v1772 = vsel %vm1758, %v1723, %v750
    %v1773 = vsel %vm1758, %v1724, %v754
    %v1774 = vsel %vm1758, %v1725, %v758
    %v1775 = vsel %vm1758, %v1726, %v762
    %v1776 = vsel %vm1758, %v1727, %v766
    %v1777 = vsel %vm1758, %v1728, %v770
    %v1778 = vsel %vm1758, %v1729, %v774
    %v1779 = vsel %vm1758, %v1730, %v778
    %v1780 = vsel %vm1758, %v1731, %v782
    %v1781 = vsel %vm1758, %v1732, %v1128
    %v1782 = vsel %vm1758, %v1733, %v1132
    %v1783 = vsel %vm1758, %v1734, %v794
    %v1784 = vsel %vm1758, %v1735, %v798
    %v1785 = vsel %vm1758, %v1736, %v802
    %v1786 = vsel %vm1758, %v1737, %v806
    %v1787 = vsel %vm1758, %v1738, %v810
    %v1788 = vsel %vm1758, %v1739, %v814
    %v1789 = vsel %vm1758, %v1740, %v818
    %v1790 = vsel %vm1758, %v1741, %v822
    %v1791 = vsel %vm1758, %v1742, %v826
    %v1792 = vsel %vm1758, %v1743, %v830
    %v1793 = vsel %vm1758, %v1744, %v834
    %v1794 = vsel %vm1758, %v1745, %v838
    %v1795 = vsel %vm1758, %v1746, %v842
    %v1796 = vsel %vm1758, %v1747, %v846
    %v1797 = vsel %vm1758, %v1748, %v850
    %v1798 = vsel %vm1758, %v1749, %v854
    %v1799 = vsel %vm1758, %v1750, %v858
    %v1800 = vsel %vm1758, %v1751, %v862
    %v1801 = vsel %vm1758, %v1752, %v866
    %v1802 = vsel %vm1758, %v1753, %v870
    %v1803 = vsel %vm1758, %v1754, %v874
    %v1804 = vsel %vm1758, %v1755, %v878
    %v1805 = vsel %vm1758, %v1756, %v1136
    %v1806 = vsel %vm1758, %v1757, %v1140
    %vm1807 = vcmask 72704
    %v1808 = vsel %vm1807, %v1759, %v890
    %v1809 = vsel %vm1807, %v1760, %v894
    %v1810 = vsel %vm1807, %v1761, %v898
    %v1811 = vsel %vm1807, %v1762, %v902
    %v1812 = vsel %vm1807, %v1763, %v906
    %v1813 = vsel %vm1807, %v1764, %v910
    %v1814 = vsel %vm1807, %v1765, %v914
    %v1815 = vsel %vm1807, %v1766, %v918
    %v1816 = vsel %vm1807, %v1767, %v922
    %v1817 = vsel %vm1807, %v1768, %v926
    %v1818 = vsel %vm1807, %v1769, %v930
    %v1819 = vsel %vm1807, %v1770, %v934
    %v1820 = vsel %vm1807, %v1771, %v938
    %v1821 = vsel %vm1807, %v1772, %v942
    %v1822 = vsel %vm1807, %v1773, %v946
    %v1823 = vsel %vm1807, %v1774, %v950
    %v1824 = vsel %vm1807, %v1775, %v954
    %v1825 = vsel %vm1807, %v1776, %v958
    %v1826 = vsel %vm1807, %v1777, %v962
    %v1827 = vsel %vm1807, %v1778, %v966
    %v1828 = vsel %vm1807, %v1779, %v970
    %v1829 = vsel %vm1807, %v1780, %v974
    %v1830 = vsel %vm1807, %v1781, %v1144
    %v1831 = vsel %vm1807, %v1782, %v1148
    %v1832 = vsel %vm1807, %v1783, %v986
    %v1833 = vsel %vm1807, %v1784, %v990
    %v1834 = vsel %vm1807, %v1785, %v994
    %v1835 = vsel %vm1807, %v1786, %v998
    %v1836 = vsel %vm1807, %v1787, %v1002
    %v1837 = vsel %vm1807, %v1788, %v1006
    %v1838 = vsel %vm1807, %v1789, %v1010
    %v1839 = vsel %vm1807, %v1790, %v1014
    %v1840 = vsel %vm1807, %v1791, %v1018
    %v1841 = vsel %vm1807, %v1792, %v1022
    %v1842 = vsel %vm1807, %v1793, %v1026
    %v1843 = vsel %vm1807, %v1794, %v1030
    %v1844 = vsel %vm1807, %v1795, %v1034
    %v1845 = vsel %vm1807, %v1796, %v1038
    %v1846 = vsel %vm1807, %v1797, %v1042
    %v1847 = vsel %vm1807, %v1798, %v1046
    %v1848 = vsel %vm1807, %v1799, %v1050
    %v1849 = vsel %vm1807, %v1800, %v1054
    %v1850 = vsel %vm1807, %v1801, %v1058
    %v1851 = vsel %vm1807, %v1802, %v1062
    %v1852 = vsel %vm1807, %v1803, %v1066
    %v1853 = vsel %vm1807, %v1804, %v1070
    %v1854 = vsel %vm1807, %v1805, %v1152
    %v1855 = vsel %vm1807, %v1806, %v1156
    %vm1856 = vcmask 80896
    %v1857 = vsel %vm1856, %v1808, %v67
    %v1858 = vsel %vm1856, %v1809, %v71
    %v1859 = vsel %vm1856, %v1810, %v78
    %v1860 = vsel %vm1856, %v1811, %v82
    %v1861 = vsel %vm1856, %v1812, %v89
    %v1862 = vsel %vm1856, %v1813, %v93
    %v1863 = vsel %vm1856, %v1814, %v100
    %v1864 = vsel %vm1856, %v1815, %v104
    %v1865 = vsel %vm1856, %v1816, %v111
    %v1866 = vsel %vm1856, %v1817, %v115
    %v1867 = vsel %vm1856, %v1818, %v122
    %v1868 = vsel %vm1856, %v1819, %v126
    %v1869 = vsel %vm1856, %v1820, %v133
    %v1870 = vsel %vm1856, %v1821, %v137
    %v1871 = vsel %vm1856, %v1822, %v144
    %v1872 = vsel %vm1856, %v1823, %v148
    %v1873 = vsel %vm1856, %v1824, %v155
    %v1874 = vsel %vm1856, %v1825, %v159
    %v1875 = vsel %vm1856, %v1826, %v166
    %v1876 = vsel %vm1856, %v1827, %v170
    %v1877 = vsel %vm1856, %v1828, %v1077
    %v1878 = vsel %vm1856, %v1829, %v1081
    %v1879 = vsel %vm1856, %v1830, %v1163
    %v1880 = vsel %vm1856, %v1831, %v1167
    %v1881 = vsel %vm1856, %v1832, %v199
    %v1882 = vsel %vm1856, %v1833, %v203
    %v1883 = vsel %vm1856, %v1834, %v210
    %v1884 = vsel %vm1856, %v1835, %v214
    %v1885 = vsel %vm1856, %v1836, %v221
    %v1886 = vsel %vm1856, %v1837, %v225
    %v1887 = vsel %vm1856, %v1838, %v232
    %v1888 = vsel %vm1856, %v1839, %v236
    %v1889 = vsel %vm1856, %v1840, %v243
    %v1890 = vsel %vm1856, %v1841, %v247
    %v1891 = vsel %vm1856, %v1842, %v254
    %v1892 = vsel %vm1856, %v1843, %v258
    %v1893 = vsel %vm1856, %v1844, %v265
    %v1894 = vsel %vm1856, %v1845, %v269
    %v1895 = vsel %vm1856, %v1846, %v276
    %v1896 = vsel %vm1856, %v1847, %v280
    %v1897 = vsel %vm1856, %v1848, %v287
    %v1898 = vsel %vm1856, %v1849, %v291
    %v1899 = vsel %vm1856, %v1850, %v298
    %v1900 = vsel %vm1856, %v1851, %v302
    %v1901 = vsel %vm1856, %v1852, %v1088
    %v1902 = vsel %vm1856, %v1853, %v1092
    %v1903 = vsel %vm1856, %v1854, %v1174
    %v1904 = vsel %vm1856, %v1855, %v1178
    %vm1905 = vcmask 89088
    %v1906 = vsel %vm1905, %v1857, %v322
    %v1907 = vsel %vm1905, %v1858, %v326
    %v1908 = vsel %vm1905, %v1859, %v330
    %v1909 = vsel %vm1905, %v1860, %v334
    %v1910 = vsel %vm1905, %v1861, %v338
    %v1911 = vsel %vm1905, %v1862, %v342
    %v1912 = vsel %vm1905, %v1863, %v346
    %v1913 = vsel %vm1905, %v1864, %v350
    %v1914 = vsel %vm1905, %v1865, %v354
    %v1915 = vsel %vm1905, %v1866, %v358
    %v1916 = vsel %vm1905, %v1867, %v362
    %v1917 = vsel %vm1905, %v1868, %v366
    %v1918 = vsel %vm1905, %v1869, %v370
    %v1919 = vsel %vm1905, %v1870, %v374
    %v1920 = vsel %vm1905, %v1871, %v378
    %v1921 = vsel %vm1905, %v1872, %v382
    %v1922 = vsel %vm1905, %v1873, %v386
    %v1923 = vsel %vm1905, %v1874, %v390
    %v1924 = vsel %vm1905, %v1875, %v394
    %v1925 = vsel %vm1905, %v1876, %v398
    %v1926 = vsel %vm1905, %v1877, %v1096
    %v1927 = vsel %vm1905, %v1878, %v1100
    %v1928 = vsel %vm1905, %v1879, %v1182
    %v1929 = vsel %vm1905, %v1880, %v1186
    %v1930 = vsel %vm1905, %v1881, %v418
    %v1931 = vsel %vm1905, %v1882, %v422
    %v1932 = vsel %vm1905, %v1883, %v426
    %v1933 = vsel %vm1905, %v1884, %v430
    %v1934 = vsel %vm1905, %v1885, %v434
    %v1935 = vsel %vm1905, %v1886, %v438
    %v1936 = vsel %vm1905, %v1887, %v442
    %v1937 = vsel %vm1905, %v1888, %v446
    %v1938 = vsel %vm1905, %v1889, %v450
    %v1939 = vsel %vm1905, %v1890, %v454
    %v1940 = vsel %vm1905, %v1891, %v458
    %v1941 = vsel %vm1905, %v1892, %v462
    %v1942 = vsel %vm1905, %v1893, %v466
    %v1943 = vsel %vm1905, %v1894, %v470
    %v1944 = vsel %vm1905, %v1895, %v474
    %v1945 = vsel %vm1905, %v1896, %v478
    %v1946 = vsel %vm1905, %v1897, %v482
    %v1947 = vsel %vm1905, %v1898, %v486
    %v1948 = vsel %vm1905, %v1899, %v490
    %v1949 = vsel %vm1905, %v1900, %v494
    %v1950 = vsel %vm1905, %v1901, %v1104
    %v1951 = vsel %vm1905, %v1902, %v1108
    %v1952 = vsel %vm1905, %v1903, %v1190
    %v1953 = vsel %vm1905, %v1904, %v1194
    %vm1954 = vcmask 97280
    %v1955 = vsel %vm1954, %v1906, %v514
    %v1956 = vsel %vm1954, %v1907, %v518
    %v1957 = vsel %vm1954, %v1908, %v522
    %v1958 = vsel %vm1954, %v1909, %v526
    %v1959 = vsel %vm1954, %v1910, %v530
    %v1960 = vsel %vm1954, %v1911, %v534
    %v1961 = vsel %vm1954, %v1912, %v538
    %v1962 = vsel %vm1954, %v1913, %v542
    %v1963 = vsel %vm1954, %v1914, %v546
    %v1964 = vsel %vm1954, %v1915, %v550
    %v1965 = vsel %vm1954, %v1916, %v554
    %v1966 = vsel %vm1954, %v1917, %v558
    %v1967 = vsel %vm1954, %v1918, %v562
    %v1968 = vsel %vm1954, %v1919, %v566
    %v1969 = vsel %vm1954, %v1920, %v570
    %v1970 = vsel %vm1954, %v1921, %v574
    %v1971 = vsel %vm1954, %v1922, %v578
    %v1972 = vsel %vm1954, %v1923, %v582
    %v1973 = vsel %vm1954, %v1924, %v586
    %v1974 = vsel %vm1954, %v1925, %v590
    %v1975 = vsel %vm1954, %v1926, %v1112
    %v1976 = vsel %vm1954, %v1927, %v1116
    %v1977 = vsel %vm1954, %v1928, %v1198
    %v1978 = vsel %vm1954, %v1929, %v1202
    %v1979 = vsel %vm1954, %v1930, %v610
    %v1980 = vsel %vm1954, %v1931, %v614
    %v1981 = vsel %vm1954, %v1932, %v618
    %v1982 = vsel %vm1954, %v1933, %v622
    %v1983 = vsel %vm1954, %v1934, %v626
    %v1984 = vsel %vm1954, %v1935, %v630
    %v1985 = vsel %vm1954, %v1936, %v634
    %v1986 = vsel %vm1954, %v1937, %v638
    %v1987 = vsel %vm1954, %v1938, %v642
    %v1988 = vsel %vm1954, %v1939, %v646
    %v1989 = vsel %vm1954, %v1940, %v650
    %v1990 = vsel %vm1954, %v1941, %v654
    %v1991 = vsel %vm1954, %v1942, %v658
    %v1992 = vsel %vm1954, %v1943, %v662
    %v1993 = vsel %vm1954, %v1944, %v666
    %v1994 = vsel %vm1954, %v1945, %v670
    %v1995 = vsel %vm1954, %v1946, %v674
    %v1996 = vsel %vm1954, %v1947, %v678
    %v1997 = vsel %vm1954, %v1948, %v682
    %v1998 = vsel %vm1954, %v1949, %v686
    %v1999 = vsel %vm1954, %v1950, %v1120
    %v2000 = vsel %vm1954, %v1951, %v1124
    %v2001 = vsel %vm1954, %v1952, %v1206
    %v2002 = vsel %vm1954, %v1953, %v1210
    %vm2003 = vcmask 105472
    %v2004 = vsel %vm2003, %v1955, %v706
    %v2005 = vsel %vm2003, %v1956, %v710
    %v2006 = vsel %vm2003, %v1957, %v714
    %v2007 = vsel %vm2003, %v1958, %v718
    %v2008 = vsel %vm2003, %v1959, %v722
    %v2009 = vsel %vm2003, %v1960, %v726
    %v2010 = vsel %vm2003, %v1961, %v730
    %v2011 = vsel %vm2003, %v1962, %v734
    %v2012 = vsel %vm2003, %v1963, %v738
    %v2013 = vsel %vm2003, %v1964, %v742
    %v2014 = vsel %vm2003, %v1965, %v746
    %v2015 = vsel %vm2003, %v1966, %v750
    %v2016 = vsel %vm2003, %v1967, %v754
    %v2017 = vsel %vm2003, %v1968, %v758
    %v2018 = vsel %vm2003, %v1969, %v762
    %v2019 = vsel %vm2003, %v1970, %v766
    %v2020 = vsel %vm2003, %v1971, %v770
    %v2021 = vsel %vm2003, %v1972, %v774
    %v2022 = vsel %vm2003, %v1973, %v778
    %v2023 = vsel %vm2003, %v1974, %v782
    %v2024 = vsel %vm2003, %v1975, %v1128
    %v2025 = vsel %vm2003, %v1976, %v1132
    %v2026 = vsel %vm2003, %v1977, %v1214
    %v2027 = vsel %vm2003, %v1978, %v1218
    %v2028 = vsel %vm2003, %v1979, %v802
    %v2029 = vsel %vm2003, %v1980, %v806
    %v2030 = vsel %vm2003, %v1981, %v810
    %v2031 = vsel %vm2003, %v1982, %v814
    %v2032 = vsel %vm2003, %v1983, %v818
    %v2033 = vsel %vm2003, %v1984, %v822
    %v2034 = vsel %vm2003, %v1985, %v826
    %v2035 = vsel %vm2003, %v1986, %v830
    %v2036 = vsel %vm2003, %v1987, %v834
    %v2037 = vsel %vm2003, %v1988, %v838
    %v2038 = vsel %vm2003, %v1989, %v842
    %v2039 = vsel %vm2003, %v1990, %v846
    %v2040 = vsel %vm2003, %v1991, %v850
    %v2041 = vsel %vm2003, %v1992, %v854
    %v2042 = vsel %vm2003, %v1993, %v858
    %v2043 = vsel %vm2003, %v1994, %v862
    %v2044 = vsel %vm2003, %v1995, %v866
    %v2045 = vsel %vm2003, %v1996, %v870
    %v2046 = vsel %vm2003, %v1997, %v874
    %v2047 = vsel %vm2003, %v1998, %v878
    %v2048 = vsel %vm2003, %v1999, %v1136
    %v2049 = vsel %vm2003, %v2000, %v1140
    %v2050 = vsel %vm2003, %v2001, %v1222
    %v2051 = vsel %vm2003, %v2002, %v1226
    %vm2052 = vcmask 113664
    %v2053 = vsel %vm2052, %v2004, %v898
    %v2054 = vsel %vm2052, %v2005, %v902
    %v2055 = vsel %vm2052, %v2006, %v906
    %v2056 = vsel %vm2052, %v2007, %v910
    %v2057 = vsel %vm2052, %v2008, %v914
    %v2058 = vsel %vm2052, %v2009, %v918
    %v2059 = vsel %vm2052, %v2010, %v922
    %v2060 = vsel %vm2052, %v2011, %v926
    %v2061 = vsel %vm2052, %v2012, %v930
    %v2062 = vsel %vm2052, %v2013, %v934
    %v2063 = vsel %vm2052, %v2014, %v938
    %v2064 = vsel %vm2052, %v2015, %v942
    %v2065 = vsel %vm2052, %v2016, %v946
    %v2066 = vsel %vm2052, %v2017, %v950
    %v2067 = vsel %vm2052, %v2018, %v954
    %v2068 = vsel %vm2052, %v2019, %v958
    %v2069 = vsel %vm2052, %v2020, %v962
    %v2070 = vsel %vm2052, %v2021, %v966
    %v2071 = vsel %vm2052, %v2022, %v970
    %v2072 = vsel %vm2052, %v2023, %v974
    %v2073 = vsel %vm2052, %v2024, %v1144
    %v2074 = vsel %vm2052, %v2025, %v1148
    %v2075 = vsel %vm2052, %v2026, %v1230
    %v2076 = vsel %vm2052, %v2027, %v1234
    %v2077 = vsel %vm2052, %v2028, %v994
    %v2078 = vsel %vm2052, %v2029, %v998
    %v2079 = vsel %vm2052, %v2030, %v1002
    %v2080 = vsel %vm2052, %v2031, %v1006
    %v2081 = vsel %vm2052, %v2032, %v1010
    %v2082 = vsel %vm2052, %v2033, %v1014
    %v2083 = vsel %vm2052, %v2034, %v1018
    %v2084 = vsel %vm2052, %v2035, %v1022
    %v2085 = vsel %vm2052, %v2036, %v1026
    %v2086 = vsel %vm2052, %v2037, %v1030
    %v2087 = vsel %vm2052, %v2038, %v1034
    %v2088 = vsel %vm2052, %v2039, %v1038
    %v2089 = vsel %vm2052, %v2040, %v1042
    %v2090 = vsel %vm2052, %v2041, %v1046
    %v2091 = vsel %vm2052, %v2042, %v1050
    %v2092 = vsel %vm2052, %v2043, %v1054
    %v2093 = vsel %vm2052, %v2044, %v1058
    %v2094 = vsel %vm2052, %v2045, %v1062
    %v2095 = vsel %vm2052, %v2046, %v1066
    %v2096 = vsel %vm2052, %v2047, %v1070
    %v2097 = vsel %vm2052, %v2048, %v1152
    %v2098 = vsel %vm2052, %v2049, %v1156
    %v2099 = vsel %vm2052, %v2050, %v1238
    %v2100 = vsel %vm2052, %v2051, %v1242
    %vm2101 = vcmask 121856
    %v2102 = vsel %vm2101, %v2053, %v78
    %v2103 = vsel %vm2101, %v2054, %v82
    %v2104 = vsel %vm2101, %v2055, %v89
    %v2105 = vsel %vm2101, %v2056, %v93
    %v2106 = vsel %vm2101, %v2057, %v100
    %v2107 = vsel %vm2101, %v2058, %v104
    %v2108 = vsel %vm2101, %v2059, %v111
    %v2109 = vsel %vm2101, %v2060, %v115
    %v2110 = vsel %vm2101, %v2061, %v122
    %v2111 = vsel %vm2101, %v2062, %v126
    %v2112 = vsel %vm2101, %v2063, %v133
    %v2113 = vsel %vm2101, %v2064, %v137
    %v2114 = vsel %vm2101, %v2065, %v144
    %v2115 = vsel %vm2101, %v2066, %v148
    %v2116 = vsel %vm2101, %v2067, %v155
    %v2117 = vsel %vm2101, %v2068, %v159
    %v2118 = vsel %vm2101, %v2069, %v166
    %v2119 = vsel %vm2101, %v2070, %v170
    %v2120 = vsel %vm2101, %v2071, %v1077
    %v2121 = vsel %vm2101, %v2072, %v1081
    %v2122 = vsel %vm2101, %v2073, %v1163
    %v2123 = vsel %vm2101, %v2074, %v1167
    %v2124 = vsel %vm2101, %v2075, %v1249
    %v2125 = vsel %vm2101, %v2076, %v1253
    %v2126 = vsel %vm2101, %v2077, %v210
    %v2127 = vsel %vm2101, %v2078, %v214
    %v2128 = vsel %vm2101, %v2079, %v221
    %v2129 = vsel %vm2101, %v2080, %v225
    %v2130 = vsel %vm2101, %v2081, %v232
    %v2131 = vsel %vm2101, %v2082, %v236
    %v2132 = vsel %vm2101, %v2083, %v243
    %v2133 = vsel %vm2101, %v2084, %v247
    %v2134 = vsel %vm2101, %v2085, %v254
    %v2135 = vsel %vm2101, %v2086, %v258
    %v2136 = vsel %vm2101, %v2087, %v265
    %v2137 = vsel %vm2101, %v2088, %v269
    %v2138 = vsel %vm2101, %v2089, %v276
    %v2139 = vsel %vm2101, %v2090, %v280
    %v2140 = vsel %vm2101, %v2091, %v287
    %v2141 = vsel %vm2101, %v2092, %v291
    %v2142 = vsel %vm2101, %v2093, %v298
    %v2143 = vsel %vm2101, %v2094, %v302
    %v2144 = vsel %vm2101, %v2095, %v1088
    %v2145 = vsel %vm2101, %v2096, %v1092
    %v2146 = vsel %vm2101, %v2097, %v1174
    %v2147 = vsel %vm2101, %v2098, %v1178
    %v2148 = vsel %vm2101, %v2099, %v1260
    %v2149 = vsel %vm2101, %v2100, %v1264
    %v2150 = vsel %vm1415, %v330, %v522
    %v2151 = vsel %vm1415, %v334, %v526
    %v2152 = vsel %vm1415, %v338, %v530
    %v2153 = vsel %vm1415, %v342, %v534
    %v2154 = vsel %vm1415, %v346, %v538
    %v2155 = vsel %vm1415, %v350, %v542
    %v2156 = vsel %vm1415, %v354, %v546
    %v2157 = vsel %vm1415, %v358, %v550
    %v2158 = vsel %vm1415, %v362, %v554
    %v2159 = vsel %vm1415, %v366, %v558
    %v2160 = vsel %vm1415, %v370, %v562
    %v2161 = vsel %vm1415, %v374, %v566
    %v2162 = vsel %vm1415, %v378, %v570
    %v2163 = vsel %vm1415, %v382, %v574
    %v2164 = vsel %vm1415, %v386, %v578
    %v2165 = vsel %vm1415, %v390, %v582
    %v2166 = vsel %vm1415, %v394, %v586
    %v2167 = vsel %vm1415, %v398, %v590
    %v2168 = vsel %vm1415, %v1096, %v1112
    %v2169 = vsel %vm1415, %v1100, %v1116
    %v2170 = vsel %vm1415, %v1182, %v1198
    %v2171 = vsel %vm1415, %v1186, %v1202
    %v2172 = vsel %vm1415, %v1268, %v1284
    %v2173 = vsel %vm1415, %v1272, %v1288
    %v2174 = vsel %vm1415, %v426, %v618
    %v2175 = vsel %vm1415, %v430, %v622
    %v2176 = vsel %vm1415, %v434, %v626
    %v2177 = vsel %vm1415, %v438, %v630
    %v2178 = vsel %vm1415, %v442, %v634
    %v2179 = vsel %vm1415, %v446, %v638
    %v2180 = vsel %vm1415, %v450, %v642
    %v2181 = vsel %vm1415, %v454, %v646
    %v2182 = vsel %vm1415, %v458, %v650
    %v2183 = vsel %vm1415, %v462, %v654
    %v2184 = vsel %vm1415, %v466, %v658
    %v2185 = vsel %vm1415, %v470, %v662
    %v2186 = vsel %vm1415, %v474, %v666
    %v2187 = vsel %vm1415, %v478, %v670
    %v2188 = vsel %vm1415, %v482, %v674
    %v2189 = vsel %vm1415, %v486, %v678
    %v2190 = vsel %vm1415, %v490, %v682
    %v2191 = vsel %vm1415, %v494, %v686
    %v2192 = vsel %vm1415, %v1104, %v1120
    %v2193 = vsel %vm1415, %v1108, %v1124
    %v2194 = vsel %vm1415, %v1190, %v1206
    %v2195 = vsel %vm1415, %v1194, %v1210
    %v2196 = vsel %vm1415, %v1276, %v1292
    %v2197 = vsel %vm1415, %v1280, %v1296
    %v2198 = vsel %vm1464, %v2150, %v714
    %v2199 = vsel %vm1464, %v2151, %v718
    %v2200 = vsel %vm1464, %v2152, %v722
    %v2201 = vsel %vm1464, %v2153, %v726
    %v2202 = vsel %vm1464, %v2154, %v730
    %v2203 = vsel %vm1464, %v2155, %v734
    %v2204 = vsel %vm1464, %v2156, %v738
    %v2205 = vsel %vm1464, %v2157, %v742
    %v2206 = vsel %vm1464, %v2158, %v746
    %v2207 = vsel %vm1464, %v2159, %v750
    %v2208 = vsel %vm1464, %v2160, %v754
    %v2209 = vsel %vm1464, %v2161, %v758
    %v2210 = vsel %vm1464, %v2162, %v762
    %v2211 = vsel %vm1464, %v2163, %v766
    %v2212 = vsel %vm1464, %v2164, %v770
    %v2213 = vsel %vm1464, %v2165, %v774
    %v2214 = vsel %vm1464, %v2166, %v778
    %v2215 = vsel %vm1464, %v2167, %v782
    %v2216 = vsel %vm1464, %v2168, %v1128
    %v2217 = vsel %vm1464, %v2169, %v1132
    %v2218 = vsel %vm1464, %v2170, %v1214
    %v2219 = vsel %vm1464, %v2171, %v1218
    %v2220 = vsel %vm1464, %v2172, %v1300
    %v2221 = vsel %vm1464, %v2173, %v1304
    %v2222 = vsel %vm1464, %v2174, %v810
    %v2223 = vsel %vm1464, %v2175, %v814
    %v2224 = vsel %vm1464, %v2176, %v818
    %v2225 = vsel %vm1464, %v2177, %v822
    %v2226 = vsel %vm1464, %v2178, %v826
    %v2227 = vsel %vm1464, %v2179, %v830
    %v2228 = vsel %vm1464, %v2180, %v834
    %v2229 = vsel %vm1464, %v2181, %v838
    %v2230 = vsel %vm1464, %v2182, %v842
    %v2231 = vsel %vm1464, %v2183, %v846
    %v2232 = vsel %vm1464, %v2184, %v850
    %v2233 = vsel %vm1464, %v2185, %v854
    %v2234 = vsel %vm1464, %v2186, %v858
    %v2235 = vsel %vm1464, %v2187, %v862
    %v2236 = vsel %vm1464, %v2188, %v866
    %v2237 = vsel %vm1464, %v2189, %v870
    %v2238 = vsel %vm1464, %v2190, %v874
    %v2239 = vsel %vm1464, %v2191, %v878
    %v2240 = vsel %vm1464, %v2192, %v1136
    %v2241 = vsel %vm1464, %v2193, %v1140
    %v2242 = vsel %vm1464, %v2194, %v1222
    %v2243 = vsel %vm1464, %v2195, %v1226
    %v2244 = vsel %vm1464, %v2196, %v1308
    %v2245 = vsel %vm1464, %v2197, %v1312
    %v2246 = vsel %vm1513, %v2198, %v906
    %v2247 = vsel %vm1513, %v2199, %v910
    %v2248 = vsel %vm1513, %v2200, %v914
    %v2249 = vsel %vm1513, %v2201, %v918
    %v2250 = vsel %vm1513, %v2202, %v922
    %v2251 = vsel %vm1513, %v2203, %v926
    %v2252 = vsel %vm1513, %v2204, %v930
    %v2253 = vsel %vm1513, %v2205, %v934
    %v2254 = vsel %vm1513, %v2206, %v938
    %v2255 = vsel %vm1513, %v2207, %v942
    %v2256 = vsel %vm1513, %v2208, %v946
    %v2257 = vsel %vm1513, %v2209, %v950
    %v2258 = vsel %vm1513, %v2210, %v954
    %v2259 = vsel %vm1513, %v2211, %v958
    %v2260 = vsel %vm1513, %v2212, %v962
    %v2261 = vsel %vm1513, %v2213, %v966
    %v2262 = vsel %vm1513, %v2214, %v970
    %v2263 = vsel %vm1513, %v2215, %v974
    %v2264 = vsel %vm1513, %v2216, %v1144
    %v2265 = vsel %vm1513, %v2217, %v1148
    %v2266 = vsel %vm1513, %v2218, %v1230
    %v2267 = vsel %vm1513, %v2219, %v1234
    %v2268 = vsel %vm1513, %v2220, %v1316
    %v2269 = vsel %vm1513, %v2221, %v1320
    %v2270 = vsel %vm1513, %v2222, %v1002
    %v2271 = vsel %vm1513, %v2223, %v1006
    %v2272 = vsel %vm1513, %v2224, %v1010
    %v2273 = vsel %vm1513, %v2225, %v1014
    %v2274 = vsel %vm1513, %v2226, %v1018
    %v2275 = vsel %vm1513, %v2227, %v1022
    %v2276 = vsel %vm1513, %v2228, %v1026
    %v2277 = vsel %vm1513, %v2229, %v1030
    %v2278 = vsel %vm1513, %v2230, %v1034
    %v2279 = vsel %vm1513, %v2231, %v1038
    %v2280 = vsel %vm1513, %v2232, %v1042
    %v2281 = vsel %vm1513, %v2233, %v1046
    %v2282 = vsel %vm1513, %v2234, %v1050
    %v2283 = vsel %vm1513, %v2235, %v1054
    %v2284 = vsel %vm1513, %v2236, %v1058
    %v2285 = vsel %vm1513, %v2237, %v1062
    %v2286 = vsel %vm1513, %v2238, %v1066
    %v2287 = vsel %vm1513, %v2239, %v1070
    %v2288 = vsel %vm1513, %v2240, %v1152
    %v2289 = vsel %vm1513, %v2241, %v1156
    %v2290 = vsel %vm1513, %v2242, %v1238
    %v2291 = vsel %vm1513, %v2243, %v1242
    %v2292 = vsel %vm1513, %v2244, %v1324
    %v2293 = vsel %vm1513, %v2245, %v1328
    %v2294 = vsel %vm1562, %v2246, %v89
    %v2295 = vsel %vm1562, %v2247, %v93
    %v2296 = vsel %vm1562, %v2248, %v100
    %v2297 = vsel %vm1562, %v2249, %v104
    %v2298 = vsel %vm1562, %v2250, %v111
    %v2299 = vsel %vm1562, %v2251, %v115
    %v2300 = vsel %vm1562, %v2252, %v122
    %v2301 = vsel %vm1562, %v2253, %v126
    %v2302 = vsel %vm1562, %v2254, %v133
    %v2303 = vsel %vm1562, %v2255, %v137
    %v2304 = vsel %vm1562, %v2256, %v144
    %v2305 = vsel %vm1562, %v2257, %v148
    %v2306 = vsel %vm1562, %v2258, %v155
    %v2307 = vsel %vm1562, %v2259, %v159
    %v2308 = vsel %vm1562, %v2260, %v166
    %v2309 = vsel %vm1562, %v2261, %v170
    %v2310 = vsel %vm1562, %v2262, %v1077
    %v2311 = vsel %vm1562, %v2263, %v1081
    %v2312 = vsel %vm1562, %v2264, %v1163
    %v2313 = vsel %vm1562, %v2265, %v1167
    %v2314 = vsel %vm1562, %v2266, %v1249
    %v2315 = vsel %vm1562, %v2267, %v1253
    %v2316 = vsel %vm1562, %v2268, %v1335
    %v2317 = vsel %vm1562, %v2269, %v1339
    %v2318 = vsel %vm1562, %v2270, %v221
    %v2319 = vsel %vm1562, %v2271, %v225
    %v2320 = vsel %vm1562, %v2272, %v232
    %v2321 = vsel %vm1562, %v2273, %v236
    %v2322 = vsel %vm1562, %v2274, %v243
    %v2323 = vsel %vm1562, %v2275, %v247
    %v2324 = vsel %vm1562, %v2276, %v254
    %v2325 = vsel %vm1562, %v2277, %v258
    %v2326 = vsel %vm1562, %v2278, %v265
    %v2327 = vsel %vm1562, %v2279, %v269
    %v2328 = vsel %vm1562, %v2280, %v276
    %v2329 = vsel %vm1562, %v2281, %v280
    %v2330 = vsel %vm1562, %v2282, %v287
    %v2331 = vsel %vm1562, %v2283, %v291
    %v2332 = vsel %vm1562, %v2284, %v298
    %v2333 = vsel %vm1562, %v2285, %v302
    %v2334 = vsel %vm1562, %v2286, %v1088
    %v2335 = vsel %vm1562, %v2287, %v1092
    %v2336 = vsel %vm1562, %v2288, %v1174
    %v2337 = vsel %vm1562, %v2289, %v1178
    %v2338 = vsel %vm1562, %v2290, %v1260
    %v2339 = vsel %vm1562, %v2291, %v1264
    %v2340 = vsel %vm1562, %v2292, %v1346
    %v2341 = vsel %vm1562, %v2293, %v1350
    %v2342 = vsel %vm1611, %v2294, %v338
    %v2343 = vsel %vm1611, %v2295, %v342
    %v2344 = vsel %vm1611, %v2296, %v346
    %v2345 = vsel %vm1611, %v2297, %v350
    %v2346 = vsel %vm1611, %v2298, %v354
    %v2347 = vsel %vm1611, %v2299, %v358
    %v2348 = vsel %vm1611, %v2300, %v362
    %v2349 = vsel %vm1611, %v2301, %v366
    %v2350 = vsel %vm1611, %v2302, %v370
    %v2351 = vsel %vm1611, %v2303, %v374
    %v2352 = vsel %vm1611, %v2304, %v378
    %v2353 = vsel %vm1611, %v2305, %v382
    %v2354 = vsel %vm1611, %v2306, %v386
    %v2355 = vsel %vm1611, %v2307, %v390
    %v2356 = vsel %vm1611, %v2308, %v394
    %v2357 = vsel %vm1611, %v2309, %v398
    %v2358 = vsel %vm1611, %v2310, %v1096
    %v2359 = vsel %vm1611, %v2311, %v1100
    %v2360 = vsel %vm1611, %v2312, %v1182
    %v2361 = vsel %vm1611, %v2313, %v1186
    %v2362 = vsel %vm1611, %v2314, %v1268
    %v2363 = vsel %vm1611, %v2315, %v1272
    %v2364 = vsel %vm1611, %v2316, %v1354
    %v2365 = vsel %vm1611, %v2317, %v1358
    %v2366 = vsel %vm1611, %v2318, %v434
    %v2367 = vsel %vm1611, %v2319, %v438
    %v2368 = vsel %vm1611, %v2320, %v442
    %v2369 = vsel %vm1611, %v2321, %v446
    %v2370 = vsel %vm1611, %v2322, %v450
    %v2371 = vsel %vm1611, %v2323, %v454
    %v2372 = vsel %vm1611, %v2324, %v458
    %v2373 = vsel %vm1611, %v2325, %v462
    %v2374 = vsel %vm1611, %v2326, %v466
    %v2375 = vsel %vm1611, %v2327, %v470
    %v2376 = vsel %vm1611, %v2328, %v474
    %v2377 = vsel %vm1611, %v2329, %v478
    %v2378 = vsel %vm1611, %v2330, %v482
    %v2379 = vsel %vm1611, %v2331, %v486
    %v2380 = vsel %vm1611, %v2332, %v490
    %v2381 = vsel %vm1611, %v2333, %v494
    %v2382 = vsel %vm1611, %v2334, %v1104
    %v2383 = vsel %vm1611, %v2335, %v1108
    %v2384 = vsel %vm1611, %v2336, %v1190
    %v2385 = vsel %vm1611, %v2337, %v1194
    %v2386 = vsel %vm1611, %v2338, %v1276
    %v2387 = vsel %vm1611, %v2339, %v1280
    %v2388 = vsel %vm1611, %v2340, %v1362
    %v2389 = vsel %vm1611, %v2341, %v1366
    %v2390 = vsel %vm1660, %v2342, %v530
    %v2391 = vsel %vm1660, %v2343, %v534
    %v2392 = vsel %vm1660, %v2344, %v538
    %v2393 = vsel %vm1660, %v2345, %v542
    %v2394 = vsel %vm1660, %v2346, %v546
    %v2395 = vsel %vm1660, %v2347, %v550
    %v2396 = vsel %vm1660, %v2348, %v554
    %v2397 = vsel %vm1660, %v2349, %v558
    %v2398 = vsel %vm1660, %v2350, %v562
    %v2399 = vsel %vm1660, %v2351, %v566
    %v2400 = vsel %vm1660, %v2352, %v570
    %v2401 = vsel %vm1660, %v2353, %v574
    %v2402 = vsel %vm1660, %v2354, %v578
    %v2403 = vsel %vm1660, %v2355, %v582
    %v2404 = vsel %vm1660, %v2356, %v586
    %v2405 = vsel %vm1660, %v2357, %v590
    %v2406 = vsel %vm1660, %v2358, %v1112
    %v2407 = vsel %vm1660, %v2359, %v1116
    %v2408 = vsel %vm1660, %v2360, %v1198
    %v2409 = vsel %vm1660, %v2361, %v1202
    %v2410 = vsel %vm1660, %v2362, %v1284
    %v2411 = vsel %vm1660, %v2363, %v1288
    %v2412 = vsel %vm1660, %v2364, %v1370
    %v2413 = vsel %vm1660, %v2365, %v1374
    %v2414 = vsel %vm1660, %v2366, %v626
    %v2415 = vsel %vm1660, %v2367, %v630
    %v2416 = vsel %vm1660, %v2368, %v634
    %v2417 = vsel %vm1660, %v2369, %v638
    %v2418 = vsel %vm1660, %v2370, %v642
    %v2419 = vsel %vm1660, %v2371, %v646
    %v2420 = vsel %vm1660, %v2372, %v650
    %v2421 = vsel %vm1660, %v2373, %v654
    %v2422 = vsel %vm1660, %v2374, %v658
    %v2423 = vsel %vm1660, %v2375, %v662
    %v2424 = vsel %vm1660, %v2376, %v666
    %v2425 = vsel %vm1660, %v2377, %v670
    %v2426 = vsel %vm1660, %v2378, %v674
    %v2427 = vsel %vm1660, %v2379, %v678
    %v2428 = vsel %vm1660, %v2380, %v682
    %v2429 = vsel %vm1660, %v2381, %v686
    %v2430 = vsel %vm1660, %v2382, %v1120
    %v2431 = vsel %vm1660, %v2383, %v1124
    %v2432 = vsel %vm1660, %v2384, %v1206
    %v2433 = vsel %vm1660, %v2385, %v1210
    %v2434 = vsel %vm1660, %v2386, %v1292
    %v2435 = vsel %vm1660, %v2387, %v1296
    %v2436 = vsel %vm1660, %v2388, %v1378
    %v2437 = vsel %vm1660, %v2389, %v1382
    %v2438 = vsel %vm1709, %v2390, %v722
    %v2439 = vsel %vm1709, %v2391, %v726
    %v2440 = vsel %vm1709, %v2392, %v730
    %v2441 = vsel %vm1709, %v2393, %v734
    %v2442 = vsel %vm1709, %v2394, %v738
    %v2443 = vsel %vm1709, %v2395, %v742
    %v2444 = vsel %vm1709, %v2396, %v746
    %v2445 = vsel %vm1709, %v2397, %v750
    %v2446 = vsel %vm1709, %v2398, %v754
    %v2447 = vsel %vm1709, %v2399, %v758
    %v2448 = vsel %vm1709, %v2400, %v762
    %v2449 = vsel %vm1709, %v2401, %v766
    %v2450 = vsel %vm1709, %v2402, %v770
    %v2451 = vsel %vm1709, %v2403, %v774
    %v2452 = vsel %vm1709, %v2404, %v778
    %v2453 = vsel %vm1709, %v2405, %v782
    %v2454 = vsel %vm1709, %v2406, %v1128
    %v2455 = vsel %vm1709, %v2407, %v1132
    %v2456 = vsel %vm1709, %v2408, %v1214
    %v2457 = vsel %vm1709, %v2409, %v1218
    %v2458 = vsel %vm1709, %v2410, %v1300
    %v2459 = vsel %vm1709, %v2411, %v1304
    %v2460 = vsel %vm1709, %v2412, %v1386
    %v2461 = vsel %vm1709, %v2413, %v1390
    %v2462 = vsel %vm1709, %v2414, %v818
    %v2463 = vsel %vm1709, %v2415, %v822
    %v2464 = vsel %vm1709, %v2416, %v826
    %v2465 = vsel %vm1709, %v2417, %v830
    %v2466 = vsel %vm1709, %v2418, %v834
    %v2467 = vsel %vm1709, %v2419, %v838
    %v2468 = vsel %vm1709, %v2420, %v842
    %v2469 = vsel %vm1709, %v2421, %v846
    %v2470 = vsel %vm1709, %v2422, %v850
    %v2471 = vsel %vm1709, %v2423, %v854
    %v2472 = vsel %vm1709, %v2424, %v858
    %v2473 = vsel %vm1709, %v2425, %v862
    %v2474 = vsel %vm1709, %v2426, %v866
    %v2475 = vsel %vm1709, %v2427, %v870
    %v2476 = vsel %vm1709, %v2428, %v874
    %v2477 = vsel %vm1709, %v2429, %v878
    %v2478 = vsel %vm1709, %v2430, %v1136
    %v2479 = vsel %vm1709, %v2431, %v1140
    %v2480 = vsel %vm1709, %v2432, %v1222
    %v2481 = vsel %vm1709, %v2433, %v1226
    %v2482 = vsel %vm1709, %v2434, %v1308
    %v2483 = vsel %vm1709, %v2435, %v1312
    %v2484 = vsel %vm1709, %v2436, %v1394
    %v2485 = vsel %vm1709, %v2437, %v1398
    %v2486 = vsel %vm1758, %v2438, %v914
    %v2487 = vsel %vm1758, %v2439, %v918
    %v2488 = vsel %vm1758, %v2440, %v922
    %v2489 = vsel %vm1758, %v2441, %v926
    %v2490 = vsel %vm1758, %v2442, %v930
    %v2491 = vsel %vm1758, %v2443, %v934
    %v2492 = vsel %vm1758, %v2444, %v938
    %v2493 = vsel %vm1758, %v2445, %v942
    %v2494 = vsel %vm1758, %v2446, %v946
    %v2495 = vsel %vm1758, %v2447, %v950
    %v2496 = vsel %vm1758, %v2448, %v954
    %v2497 = vsel %vm1758, %v2449, %v958
    %v2498 = vsel %vm1758, %v2450, %v962
    %v2499 = vsel %vm1758, %v2451, %v966
    %v2500 = vsel %vm1758, %v2452, %v970
    %v2501 = vsel %vm1758, %v2453, %v974
    %v2502 = vsel %vm1758, %v2454, %v1144
    %v2503 = vsel %vm1758, %v2455, %v1148
    %v2504 = vsel %vm1758, %v2456, %v1230
    %v2505 = vsel %vm1758, %v2457, %v1234
    %v2506 = vsel %vm1758, %v2458, %v1316
    %v2507 = vsel %vm1758, %v2459, %v1320
    %v2508 = vsel %vm1758, %v2460, %v1402
    %v2509 = vsel %vm1758, %v2461, %v1406
    %v2510 = vsel %vm1758, %v2462, %v1010
    %v2511 = vsel %vm1758, %v2463, %v1014
    %v2512 = vsel %vm1758, %v2464, %v1018
    %v2513 = vsel %vm1758, %v2465, %v1022
    %v2514 = vsel %vm1758, %v2466, %v1026
    %v2515 = vsel %vm1758, %v2467, %v1030
    %v2516 = vsel %vm1758, %v2468, %v1034
    %v2517 = vsel %vm1758, %v2469, %v1038
    %v2518 = vsel %vm1758, %v2470, %v1042
    %v2519 = vsel %vm1758, %v2471, %v1046
    %v2520 = vsel %vm1758, %v2472, %v1050
    %v2521 = vsel %vm1758, %v2473, %v1054
    %v2522 = vsel %vm1758, %v2474, %v1058
    %v2523 = vsel %vm1758, %v2475, %v1062
    %v2524 = vsel %vm1758, %v2476, %v1066
    %v2525 = vsel %vm1758, %v2477, %v1070
    %v2526 = vsel %vm1758, %v2478, %v1152
    %v2527 = vsel %vm1758, %v2479, %v1156
    %v2528 = vsel %vm1758, %v2480, %v1238
    %v2529 = vsel %vm1758, %v2481, %v1242
    %v2530 = vsel %vm1758, %v2482, %v1324
    %v2531 = vsel %vm1758, %v2483, %v1328
    %v2532 = vsel %vm1758, %v2484, %v1410
    %v2533 = vsel %vm1758, %v2485, %v1414
    %2582 = vrot.lane.b32.xlu0 %v2486, 16
    %v2583 = vpop.permute.xlu0 %2582
    %2584 = vrot.lane.b32.xlu0 %v2487, 16
    %v2585 = vpop.permute.xlu0 %2584
    %2586 = vrot.lane.b32.xlu0 %v2488, 16
    %v2587 = vpop.permute.xlu0 %2586
    %2588 = vrot.lane.b32.xlu0 %v2489, 16
    %v2589 = vpop.permute.xlu0 %2588
    %2590 = vrot.lane.b32.xlu0 %v2490, 16
    %v2591 = vpop.permute.xlu0 %2590
    %2592 = vrot.lane.b32.xlu0 %v2491, 16
    %v2593 = vpop.permute.xlu0 %2592
    %2594 = vrot.lane.b32.xlu0 %v2492, 16
    %v2595 = vpop.permute.xlu0 %2594
    %2596 = vrot.lane.b32.xlu0 %v2493, 16
    %v2597 = vpop.permute.xlu0 %2596
    %2598 = vrot.lane.b32.xlu0 %v2494, 16
    %v2599 = vpop.permute.xlu0 %2598
    %2600 = vrot.lane.b32.xlu0 %v2495, 16
    %v2601 = vpop.permute.xlu0 %2600
    %2602 = vrot.lane.b32.xlu0 %v2496, 16
    %v2603 = vpop.permute.xlu0 %2602
    %2604 = vrot.lane.b32.xlu0 %v2497, 16
    %v2605 = vpop.permute.xlu0 %2604
    %2606 = vrot.lane.b32.xlu0 %v2498, 16
    %v2607 = vpop.permute.xlu0 %2606
    %2608 = vrot.lane.b32.xlu0 %v2499, 16
    %v2609 = vpop.permute.xlu0 %2608
    %2610 = vrot.lane.b32.xlu0 %v2500, 16
    %v2611 = vpop.permute.xlu0 %2610
    %2612 = vrot.lane.b32.xlu0 %v2501, 16
    %v2613 = vpop.permute.xlu0 %2612
    %2614 = vrot.lane.b32.xlu0 %v2502, 16
    %v2615 = vpop.permute.xlu0 %2614
    %2616 = vrot.lane.b32.xlu0 %v2503, 16
    %v2617 = vpop.permute.xlu0 %2616
    %2618 = vrot.lane.b32.xlu0 %v2504, 16
    %v2619 = vpop.permute.xlu0 %2618
    %2620 = vrot.lane.b32.xlu0 %v2505, 16
    %v2621 = vpop.permute.xlu0 %2620
    %2622 = vrot.lane.b32.xlu0 %v2506, 16
    %v2623 = vpop.permute.xlu0 %2622
    %2624 = vrot.lane.b32.xlu0 %v2507, 16
    %v2625 = vpop.permute.xlu0 %2624
    %2626 = vrot.lane.b32.xlu0 %v2508, 16
    %v2627 = vpop.permute.xlu0 %2626
    %2628 = vrot.lane.b32.xlu0 %v2509, 16
    %v2629 = vpop.permute.xlu0 %2628
    %2630 = vrot.lane.b32.xlu0 %v2510, 16
    %v2631 = vpop.permute.xlu0 %2630
    %2632 = vrot.lane.b32.xlu0 %v2511, 16
    %v2633 = vpop.permute.xlu0 %2632
    %2634 = vrot.lane.b32.xlu0 %v2512, 16
    %v2635 = vpop.permute.xlu0 %2634
    %2636 = vrot.lane.b32.xlu0 %v2513, 16
    %v2637 = vpop.permute.xlu0 %2636
    %2638 = vrot.lane.b32.xlu0 %v2514, 16
    %v2639 = vpop.permute.xlu0 %2638
    %2640 = vrot.lane.b32.xlu0 %v2515, 16
    %v2641 = vpop.permute.xlu0 %2640
    %2642 = vrot.lane.b32.xlu0 %v2516, 16
    %v2643 = vpop.permute.xlu0 %2642
    %2644 = vrot.lane.b32.xlu0 %v2517, 16
    %v2645 = vpop.permute.xlu0 %2644
    %2646 = vrot.lane.b32.xlu0 %v2518, 16
    %v2647 = vpop.permute.xlu0 %2646
    %2648 = vrot.lane.b32.xlu0 %v2519, 16
    %v2649 = vpop.permute.xlu0 %2648
    %2650 = vrot.lane.b32.xlu0 %v2520, 16
    %v2651 = vpop.permute.xlu0 %2650
    %2652 = vrot.lane.b32.xlu0 %v2521, 16
    %v2653 = vpop.permute.xlu0 %2652
    %2654 = vrot.lane.b32.xlu0 %v2522, 16
    %v2655 = vpop.permute.xlu0 %2654
    %2656 = vrot.lane.b32.xlu0 %v2523, 16
    %v2657 = vpop.permute.xlu0 %2656
    %2658 = vrot.lane.b32.xlu0 %v2524, 16
    %v2659 = vpop.permute.xlu0 %2658
    %2660 = vrot.lane.b32.xlu0 %v2525, 16
    %v2661 = vpop.permute.xlu0 %2660
    %2662 = vrot.lane.b32.xlu0 %v2526, 16
    %v2663 = vpop.permute.xlu0 %2662
    %2664 = vrot.lane.b32.xlu0 %v2527, 16
    %v2665 = vpop.permute.xlu0 %2664
    %2666 = vrot.lane.b32.xlu0 %v2528, 16
    %v2667 = vpop.permute.xlu0 %2666
    %2668 = vrot.lane.b32.xlu0 %v2529, 16
    %v2669 = vpop.permute.xlu0 %2668
    %2670 = vrot.lane.b32.xlu0 %v2530, 16
    %v2671 = vpop.permute.xlu0 %2670
    %2672 = vrot.lane.b32.xlu0 %v2531, 16
    %v2673 = vpop.permute.xlu0 %2672
    %2674 = vrot.lane.b32.xlu0 %v2532, 16
    %v2675 = vpop.permute.xlu0 %2674
    %2676 = vrot.lane.b32.xlu0 %v2533, 16
    %v2677 = vpop.permute.xlu0 %2676
    %vm2726 = vcmask 130048
    %v2727 = vsel %vm2726, %v2102, %v2583
    %v2728 = vsel %vm2726, %v2103, %v2585
    %v2729 = vsel %vm2726, %v2104, %v2587
    %v2730 = vsel %vm2726, %v2105, %v2589
    %v2731 = vsel %vm2726, %v2106, %v2591
    %v2732 = vsel %vm2726, %v2107, %v2593
    %v2733 = vsel %vm2726, %v2108, %v2595
    %v2734 = vsel %vm2726, %v2109, %v2597
    %v2735 = vsel %vm2726, %v2110, %v2599
    %v2736 = vsel %vm2726, %v2111, %v2601
    %v2737 = vsel %vm2726, %v2112, %v2603
    %v2738 = vsel %vm2726, %v2113, %v2605
    %v2739 = vsel %vm2726, %v2114, %v2607
    %v2740 = vsel %vm2726, %v2115, %v2609
    %v2741 = vsel %vm2726, %v2116, %v2611
    %v2742 = vsel %vm2726, %v2117, %v2613
    %v2743 = vsel %vm2726, %v2118, %v2615
    %v2744 = vsel %vm2726, %v2119, %v2617
    %v2745 = vsel %vm2726, %v2120, %v2619
    %v2746 = vsel %vm2726, %v2121, %v2621
    %v2747 = vsel %vm2726, %v2122, %v2623
    %v2748 = vsel %vm2726, %v2123, %v2625
    %v2749 = vsel %vm2726, %v2124, %v2627
    %v2750 = vsel %vm2726, %v2125, %v2629
    %v2751 = vsel %vm2726, %v2126, %v2631
    %v2752 = vsel %vm2726, %v2127, %v2633
    %v2753 = vsel %vm2726, %v2128, %v2635
    %v2754 = vsel %vm2726, %v2129, %v2637
    %v2755 = vsel %vm2726, %v2130, %v2639
    %v2756 = vsel %vm2726, %v2131, %v2641
    %v2757 = vsel %vm2726, %v2132, %v2643
    %v2758 = vsel %vm2726, %v2133, %v2645
    %v2759 = vsel %vm2726, %v2134, %v2647
    %v2760 = vsel %vm2726, %v2135, %v2649
    %v2761 = vsel %vm2726, %v2136, %v2651
    %v2762 = vsel %vm2726, %v2137, %v2653
    %v2763 = vsel %vm2726, %v2138, %v2655
    %v2764 = vsel %vm2726, %v2139, %v2657
    %v2765 = vsel %vm2726, %v2140, %v2659
    %v2766 = vsel %vm2726, %v2141, %v2661
    %v2767 = vsel %vm2726, %v2142, %v2663
    %v2768 = vsel %vm2726, %v2143, %v2665
    %v2769 = vsel %vm2726, %v2144, %v2667
    %v2770 = vsel %vm2726, %v2145, %v2669
    %v2771 = vsel %vm2726, %v2146, %v2671
    %v2772 = vsel %vm2726, %v2147, %v2673
    %v2773 = vsel %vm2726, %v2148, %v2675
    %v2774 = vsel %vm2726, %v2149, %v2677
    %v2823 = vcombine.high %v2727, %v2727
    %v2824 = vcombine.high %v2729, %v2729
    %v2825 = vcombine.high %v2731, %v2731
    %v2826 = vcombine.high %v2733, %v2733
    %v2827 = vcombine.high %v2735, %v2735
    %v2828 = vcombine.high %v2737, %v2737
    %v2829 = vcombine.high %v2739, %v2739
    %v2830 = vcombine.high %v2741, %v2741
    %v2831 = vcombine.high %v2743, %v2743
    %v2832 = vcombine.high %v2745, %v2745
    %v2833 = vcombine.high %v2747, %v2747
    %v2834 = vcombine.high %v2749, %v2749
    %v2835 = vcombine.high %v2751, %v2751
    %v2836 = vcombine.high %v2753, %v2753
    %v2837 = vcombine.high %v2755, %v2755
    %v2838 = vcombine.high %v2757, %v2757
    %v2839 = vcombine.high %v2759, %v2759
    %v2840 = vcombine.high %v2761, %v2761
    %v2841 = vcombine.high %v2763, %v2763
    %v2842 = vcombine.high %v2765, %v2765
    %v2843 = vcombine.high %v2767, %v2767
    %v2844 = vcombine.high %v2769, %v2769
    %v2845 = vcombine.high %v2771, %v2771
    %v2846 = vcombine.high %v2773, %v2773
    %v2847 = vld [vmem:[%s1] sm:$0xff]
    %v2848 = vld [vmem:[%s1 + $0x8] sm:$0xff]
    %v2849 = vld [vmem:[%s1 + $0x10] sm:$0xff]
    %v2850 = vld [vmem:[%s1 + $0x18] sm:$0x1]
    %v2851 = vld [vmem:[%s2] sm:$0x1]
    %v2853 = vlaneseq
    %v2854 = vshrl.u32 %v2853, 7
    %v2855 = vsub.s32 0, %v2854
    %v2856 = vrot.slane %v2851, %v2855
    %v2858 = vcombine.low %v2727, %v2823
    %v2859 = vcombine.low %v2728, %v2729
    %v2860 = vcombine.low %v2824, %v2730
    %v2861 = vcombine.low %v2731, %v2825
    %v2862 = vcombine.low %v2732, %v2733
    %v2863 = vcombine.low %v2826, %v2734
    %v2864 = vcombine.low %v2735, %v2827
    %v2865 = vcombine.low %v2736, %v2737
    %v2866 = vcombine.low %v2828, %v2738
    %v2867 = vcombine.low %v2739, %v2829
    %v2868 = vcombine.low %v2740, %v2741
    %v2869 = vcombine.low %v2830, %v2742
    %v2870 = vcombine.low %v2743, %v2831
    %v2871 = vcombine.low %v2744, %v2745
    %v2872 = vcombine.low %v2832, %v2746
    %v2873 = vcombine.low %v2747, %v2833
    %v2874 = vcombine.low %v2748, %v2749
    %v2875 = vcombine.low %v2834, %v2750
    %v2876 = vcombine.low %v2751, %v2835
    %v2877 = vcombine.low %v2752, %v2753
    %v2878 = vcombine.low %v2836, %v2754
    %v2879 = vcombine.low %v2755, %v2837
    %v2880 = vcombine.low %v2756, %v2757
    %v2881 = vcombine.low %v2838, %v2758
    %v2882 = vcombine.low %v2759, %v2839
    %v2883 = vcombine.low %v2760, %v2761
    %v2884 = vcombine.low %v2840, %v2762
    %v2885 = vcombine.low %v2763, %v2841
    %v2886 = vcombine.low %v2764, %v2765
    %v2887 = vcombine.low %v2842, %v2766
    %v2888 = vcombine.low %v2767, %v2843
    %v2889 = vcombine.low %v2768, %v2769
    %v2890 = vcombine.low %v2844, %v2770
    %v2891 = vcombine.low %v2771, %v2845
    %v2892 = vcombine.low %v2772, %v2773
    %v2893 = vcombine.low %v2846, %v2774
    %vm2894 = vcmask 203776
    %v2895 = vsel %vm2894, %v2858, 0
    %v2897 = vsel %vm2894, %v2859, 0
    %v2899 = vsel %vm2894, %v2860, 0
    %v2901 = vsel %vm2894, %v2861, 0
    %v2903 = vsel %vm2894, %v2862, 0
    %v2905 = vsel %vm2894, %v2863, 0
    %v2907 = vsel %vm2894, %v2864, 0
    %v2909 = vsel %vm2894, %v2865, 0
    %v2911 = vsel %vm2894, %v2866, 0
    %v2913 = vsel %vm2894, %v2867, 0
    %v2915 = vsel %vm2894, %v2868, 0
    %v2917 = vsel %vm2894, %v2869, 0
    %v2919 = vsel %vm2894, %v2870, 0
    %v2921 = vsel %vm2894, %v2871, 0
    %v2923 = vsel %vm2894, %v2872, 0
    %v2925 = vsel %vm2894, %v2873, 0
    %v2927 = vsel %vm2894, %v2874, 0
    %v2929 = vsel %vm2894, %v2875, 0
    %v2931 = vsel %vm2894, %v2876, 0
    %v2933 = vsel %vm2894, %v2877, 0
    %v2935 = vsel %vm2894, %v2878, 0
    %v2937 = vsel %vm2894, %v2879, 0
    %v2939 = vsel %vm2894, %v2880, 0
    %v2941 = vsel %vm2894, %v2881, 0
    %v2943 = vsel %vm2894, %v2882, 0
    %v2945 = vsel %vm2894, %v2883, 0
    %v2947 = vsel %vm2894, %v2884, 0
    %v2949 = vsel %vm2894, %v2885, 0
    %v2951 = vsel %vm2894, %v2886, 0
    %v2953 = vsel %vm2894, %v2887, 0
    %v2955 = vsel %vm2894, %v2888, 0
    %v2957 = vsel %vm2894, %v2889, 0
    %v2959 = vsel %vm2894, %v2890, 0
    %v2961 = vsel %vm2894, %v2891, 0
    %v2963 = vsel %vm2894, %v2892, 0
    %v2965 = vsel %vm2894, %v2893, 0
    %vm2967 = vcmask 1040384
    %v2969 = vsel %vm2967, %v2850, 0
    %2971 = vmatprep.subr.mxu0 0.0
    %2972 = vmatpush1.msra.mxu0 %v2847
    %2973 = vmatprep.subr.mxu0 0.0
    %2974 = vmatpush1.msra.mxu0 %v2848
    %2975 = vmatprep.subr.mxu0 0.0
    %2976 = vmatpush1.msra.mxu0 %v2849
    %2977 = vmatprep.subr.mxu0 0.0
    %2978 = vmatpush1.msra.mxu0 %v2969
    %2979 = vmatprep.subr.mxu0 0.0
    %2980 = vmatpush1.msra.mxu0 0.0
    %2981 = vmatprep.subr.mxu0 0.0
    %2982 = vmatpush1.msra.mxu0 0.0
    %2983 = vmatprep.subr.mxu0 0.0
    %2984 = vmatpush1.msra.mxu0 0.0
    %2985 = vmatprep.subr.mxu0 0.0
    %2986 = vmatpush1.msra.mxu0 0.0
    %2987 = vmatprep.subr.mxu0 0.0
    %2988 = vmatpush1.msra.mxu0 0.0
    %2989 = vmatprep.subr.mxu0 0.0
    %2990 = vmatpush1.msra.mxu0 0.0
    %2991 = vmatprep.subr.mxu0 0.0
    %2992 = vmatpush1.msra.mxu0 0.0
    %2993 = vmatprep.subr.mxu0 0.0
    %2994 = vmatpush1.msra.mxu0 0.0
    %2995 = vmatprep.subr.mxu0 0.0
    %2996 = vmatpush1.msra.mxu0 0.0
    %2997 = vmatprep.subr.mxu0 0.0
    %2998 = vmatpush1.msra.mxu0 0.0
    %2999 = vmatprep.subr.mxu0 0.0
    %3000 = vmatpush1.msra.mxu0 0.0
    %3001 = vmatprep.subr.mxu0 0.0
    %3002 = vmatpush1.msra.mxu0 0.0
    %3003 = vmatprep.subr.mxu0 0.0
    %3004 = vmatpush1.msra.mxu0 0.0
    %3005 = vmatprep.subr.mxu0 0.0
    %3006 = vmatpush1.msra.mxu0 0.0
    %3007 = vmatprep.subr.mxu0 0.0
    %3008 = vmatpush1.msra.mxu0 0.0
    %3009 = vmatprep.subr.mxu0 0.0
    %3010 = vmatpush1.msra.mxu0 0.0
    %3011 = vmatprep.subr.mxu0 0.0
    %3012 = vmatpush1.msra.mxu0 0.0
    %3013 = vmatprep.subr.mxu0 0.0
    %3014 = vmatpush1.msra.mxu0 0.0
    %3015 = vmatprep.subr.mxu0 0.0
    %3016 = vmatpush1.msra.mxu0 0.0
    %3017 = vmatprep.subr.mxu0 0.0
    %3018 = vmatpush1.msra.mxu0 0.0
    %3019 = vmatprep.subr.mxu0 0.0
    %3020 = vmatpush1.msra.mxu0 0.0
    %3021 = vmatprep.subr.mxu0 0.0
    %3022 = vmatpush1.msra.mxu0 0.0
    %3023 = vmatprep.subr.mxu0 0.0
    %3024 = vmatpush1.msra.mxu0 0.0
    %3025 = vmatprep.subr.mxu0 0.0
    %3026 = vmatpush1.msra.mxu0 0.0
    %3027 = vmatprep.subr.mxu0 0.0
    %3028 = vmatpush1.msra.mxu0 0.0
    %3029 = vmatprep.subr.mxu0 0.0
    %3030 = vmatpush1.msra.mxu0 0.0
    %3031 = vmatprep.subr.mxu0 0.0
    %3032 = vmatpush1.msra.mxu0 0.0
    %3033 = vmatprep.subr.mxu0 0.0
    %3034 = vmatpush1.msra.mxu0 0.0
    %3035 = vmatprep.mubr.f32.mxu0 0.0
    %3036 = vmatmul.mubr.f32.gmra.mrb[0].mxu0 %v2895
    %v3037 = vpop.f32.mrb[0].mxu0
    %v3038 = vadd.f32 %v2856, %v3037
    %v3039 = vpop.f32.mrb[0].mxu0
    %3040 = vmatprep.mubr.f32.mxu0 0.0
    %3041 = vmatmul.mubr.f32.gmra.mrb[0].mxu0 %v2897
    %v3042 = vpop.f32.mrb[0].mxu0
    %v3043 = vadd.f32 %v2856, %v3042
    %v3044 = vpop.f32.mrb[0].mxu0
    %3045 = vmatprep.mubr.f32.mxu0 0.0
    %3046 = vmatmul.mubr.f32.gmra.mrb[0].mxu0 %v2899
    %v3047 = vpop.f32.mrb[0].mxu0
    %v3048 = vadd.f32 %v2856, %v3047
    %v3049 = vpop.f32.mrb[0].mxu0
    %3050 = vmatprep.mubr.f32.mxu0 0.0
    %3051 = vmatmul.mubr.f32.gmra.mrb[0].mxu0 %v2901
    %v3052 = vpop.f32.mrb[0].mxu0
    %v3053 = vadd.f32 %v2856, %v3052
    %v3054 = vpop.f32.mrb[0].mxu0
    %3055 = vmatprep.mubr.f32.mxu0 0.0
    %3056 = vmatmul.mubr.f32.gmra.mrb[0].mxu0 %v2903
    %v3057 = vpop.f32.mrb[0].mxu0
    %v3058 = vadd.f32 %v2856, %v3057
    %v3059 = vpop.f32.mrb[0].mxu0
    %3060 = vmatprep.mubr.f32.mxu0 0.0
    %3061 = vmatmul.mubr.f32.gmra.mrb[0].mxu0 %v2905
    %v3062 = vpop.f32.mrb[0].mxu0
    %v3063 = vadd.f32 %v2856, %v3062
    %v3064 = vpop.f32.mrb[0].mxu0
    %3065 = vmatprep.mubr.f32.mxu0 0.0
    %3066 = vmatmul.mubr.f32.gmra.mrb[0].mxu0 %v2907
    %v3067 = vpop.f32.mrb[0].mxu0
    %v3068 = vadd.f32 %v2856, %v3067
    %v3069 = vpop.f32.mrb[0].mxu0
    %3070 = vmatprep.mubr.f32.mxu0 0.0
    %3071 = vmatmul.mubr.f32.gmra.mrb[0].mxu0 %v2909
    %v3072 = vpop.f32.mrb[0].mxu0
    %v3073 = vadd.f32 %v2856, %v3072
    %v3074 = vpop.f32.mrb[0].mxu0
    %3075 = vmatprep.mubr.f32.mxu0 0.0
    %3076 = vmatmul.mubr.f32.gmra.mrb[0].mxu0 %v2911
    %v3077 = vpop.f32.mrb[0].mxu0
    %v3078 = vadd.f32 %v2856, %v3077
    %v3079 = vpop.f32.mrb[0].mxu0
    %3080 = vmatprep.mubr.f32.mxu0 0.0
    %3081 = vmatmul.mubr.f32.gmra.mrb[0].mxu0 %v2913
    %v3082 = vpop.f32.mrb[0].mxu0
    %v3083 = vadd.f32 %v2856, %v3082
    %v3084 = vpop.f32.mrb[0].mxu0
    %3085 = vmatprep.mubr.f32.mxu0 0.0
    %3086 = vmatmul.mubr.f32.gmra.mrb[0].mxu0 %v2915
    %v3087 = vpop.f32.mrb[0].mxu0
    %v3088 = vadd.f32 %v2856, %v3087
    %v3089 = vpop.f32.mrb[0].mxu0
    %3090 = vmatprep.mubr.f32.mxu0 0.0
    %3091 = vmatmul.mubr.f32.gmra.mrb[0].mxu0 %v2917
    %v3092 = vpop.f32.mrb[0].mxu0
    %v3093 = vadd.f32 %v2856, %v3092
    %v3094 = vpop.f32.mrb[0].mxu0
    %3095 = vmatprep.mubr.f32.mxu0 0.0
    %3096 = vmatmul.mubr.f32.gmra.mrb[0].mxu0 %v2919
    %v3097 = vpop.f32.mrb[0].mxu0
    %v3098 = vadd.f32 %v2856, %v3097
    %v3099 = vpop.f32.mrb[0].mxu0
    %3100 = vmatprep.mubr.f32.mxu0 0.0
    %3101 = vmatmul.mubr.f32.gmra.mrb[0].mxu0 %v2921
    %v3102 = vpop.f32.mrb[0].mxu0
    %v3103 = vadd.f32 %v2856, %v3102
    %v3104 = vpop.f32.mrb[0].mxu0
    %3105 = vmatprep.mubr.f32.mxu0 0.0
    %3106 = vmatmul.mubr.f32.gmra.mrb[0].mxu0 %v2923
    %v3107 = vpop.f32.mrb[0].mxu0
    %v3108 = vadd.f32 %v2856, %v3107
    %v3109 = vpop.f32.mrb[0].mxu0
    %3110 = vmatprep.mubr.f32.mxu0 0.0
    %3111 = vmatmul.mubr.f32.gmra.mrb[0].mxu0 %v2925
    %v3112 = vpop.f32.mrb[0].mxu0
    %v3113 = vadd.f32 %v2856, %v3112
    %v3114 = vpop.f32.mrb[0].mxu0
    %3115 = vmatprep.mubr.f32.mxu0 0.0
    %3116 = vmatmul.mubr.f32.gmra.mrb[0].mxu0 %v2927
    %v3117 = vpop.f32.mrb[0].mxu0
    %v3118 = vadd.f32 %v2856, %v3117
    %v3119 = vpop.f32.mrb[0].mxu0
    %3120 = vmatprep.mubr.f32.mxu0 0.0
    %3121 = vmatmul.mubr.f32.gmra.mrb[0].mxu0 %v2929
    %v3122 = vpop.f32.mrb[0].mxu0
    %v3123 = vadd.f32 %v2856, %v3122
    %v3124 = vpop.f32.mrb[0].mxu0
    %3125 = vmatprep.mubr.f32.mxu0 0.0
    %3126 = vmatmul.mubr.f32.gmra.mrb[0].mxu0 %v2931
    %v3127 = vpop.f32.mrb[0].mxu0
    %v3128 = vadd.f32 %v2856, %v3127
    %v3129 = vpop.f32.mrb[0].mxu0
    %3130 = vmatprep.mubr.f32.mxu0 0.0
    %3131 = vmatmul.mubr.f32.gmra.mrb[0].mxu0 %v2933
    %v3132 = vpop.f32.mrb[0].mxu0
    %v3133 = vadd.f32 %v2856, %v3132
    %v3134 = vpop.f32.mrb[0].mxu0
    %3135 = vmatprep.mubr.f32.mxu0 0.0
    %3136 = vmatmul.mubr.f32.gmra.mrb[0].mxu0 %v2935
    %v3137 = vpop.f32.mrb[0].mxu0
    %v3138 = vadd.f32 %v2856, %v3137
    %v3139 = vpop.f32.mrb[0].mxu0
    %3140 = vmatprep.mubr.f32.mxu0 0.0
    %3141 = vmatmul.mubr.f32.gmra.mrb[0].mxu0 %v2937
    %v3142 = vpop.f32.mrb[0].mxu0
    %v3143 = vadd.f32 %v2856, %v3142
    %v3144 = vpop.f32.mrb[0].mxu0
    %3145 = vmatprep.mubr.f32.mxu0 0.0
    %3146 = vmatmul.mubr.f32.gmra.mrb[0].mxu0 %v2939
    %v3147 = vpop.f32.mrb[0].mxu0
    %v3148 = vadd.f32 %v2856, %v3147
    %v3149 = vpop.f32.mrb[0].mxu0
    %3150 = vmatprep.mubr.f32.mxu0 0.0
    %3151 = vmatmul.mubr.f32.gmra.mrb[0].mxu0 %v2941
    %v3152 = vpop.f32.mrb[0].mxu0
    %v3153 = vadd.f32 %v2856, %v3152
    %v3154 = vpop.f32.mrb[0].mxu0
    %3155 = vmatprep.mubr.f32.mxu0 0.0
    %3156 = vmatmul.mubr.f32.gmra.mrb[0].mxu0 %v2943
    %v3157 = vpop.f32.mrb[0].mxu0
    %v3158 = vadd.f32 %v2856, %v3157
    %v3159 = vpop.f32.mrb[0].mxu0
    %3160 = vmatprep.mubr.f32.mxu0 0.0
    %3161 = vmatmul.mubr.f32.gmra.mrb[0].mxu0 %v2945
    %v3162 = vpop.f32.mrb[0].mxu0
    %v3163 = vadd.f32 %v2856, %v3162
    %v3164 = vpop.f32.mrb[0].mxu0
    %3165 = vmatprep.mubr.f32.mxu0 0.0
    %3166 = vmatmul.mubr.f32.gmra.mrb[0].mxu0 %v2947
    %v3167 = vpop.f32.mrb[0].mxu0
    %v3168 = vadd.f32 %v2856, %v3167
    %v3169 = vpop.f32.mrb[0].mxu0
    %3170 = vmatprep.mubr.f32.mxu0 0.0
    %3171 = vmatmul.mubr.f32.gmra.mrb[0].mxu0 %v2949
    %v3172 = vpop.f32.mrb[0].mxu0
    %v3173 = vadd.f32 %v2856, %v3172
    %v3174 = vpop.f32.mrb[0].mxu0
    %3175 = vmatprep.mubr.f32.mxu0 0.0
    %3176 = vmatmul.mubr.f32.gmra.mrb[0].mxu0 %v2951
    %v3177 = vpop.f32.mrb[0].mxu0
    %v3178 = vadd.f32 %v2856, %v3177
    %v3179 = vpop.f32.mrb[0].mxu0
    %3180 = vmatprep.mubr.f32.mxu0 0.0
    %3181 = vmatmul.mubr.f32.gmra.mrb[0].mxu0 %v2953
    %v3182 = vpop.f32.mrb[0].mxu0
    %v3183 = vadd.f32 %v2856, %v3182
    %v3184 = vpop.f32.mrb[0].mxu0
    %3185 = vmatprep.mubr.f32.mxu0 0.0
    %3186 = vmatmul.mubr.f32.gmra.mrb[0].mxu0 %v2955
    %v3187 = vpop.f32.mrb[0].mxu0
    %v3188 = vadd.f32 %v2856, %v3187
    %v3189 = vpop.f32.mrb[0].mxu0
    %3190 = vmatprep.mubr.f32.mxu0 0.0
    %3191 = vmatmul.mubr.f32.gmra.mrb[0].mxu0 %v2957
    %v3192 = vpop.f32.mrb[0].mxu0
    %v3193 = vadd.f32 %v2856, %v3192
    %v3194 = vpop.f32.mrb[0].mxu0
    %3195 = vmatprep.mubr.f32.mxu0 0.0
    %3196 = vmatmul.mubr.f32.gmra.mrb[0].mxu0 %v2959
    %v3197 = vpop.f32.mrb[0].mxu0
    %v3198 = vadd.f32 %v2856, %v3197
    %v3199 = vpop.f32.mrb[0].mxu0
    %3200 = vmatprep.mubr.f32.mxu0 0.0
    %3201 = vmatmul.mubr.f32.gmra.mrb[0].mxu0 %v2961
    %v3202 = vpop.f32.mrb[0].mxu0
    %v3203 = vadd.f32 %v2856, %v3202
    %v3204 = vpop.f32.mrb[0].mxu0
    %3205 = vmatprep.mubr.f32.mxu0 0.0
    %3206 = vmatmul.mubr.f32.gmra.mrb[0].mxu0 %v2963
    %v3207 = vpop.f32.mrb[0].mxu0
    %v3208 = vadd.f32 %v2856, %v3207
    %v3209 = vpop.f32.mrb[0].mxu0
    %3210 = vmatprep.mubr.f32.mxu0 0.0
    %3211 = vmatmul.mubr.f32.gmra.mrb[0].mxu0 %v2965
    %v3212 = vpop.f32.mrb[0].mxu0
    %v3213 = vadd.f32 %v2856, %v3212
    %v3214 = vpop.f32.mrb[0].mxu0
    %3215 = vdwg.mxu0
    %v3216 = vmax.f32 %v3038, 0.0
    %v3217 = vmax.f32 %v3043, 0.0
    %v3218 = vmax.f32 %v3048, 0.0
    %v3219 = vmax.f32 %v3053, 0.0
    %v3220 = vmax.f32 %v3058, 0.0
    %v3221 = vmax.f32 %v3063, 0.0
    %v3222 = vmax.f32 %v3068, 0.0
    %v3223 = vmax.f32 %v3073, 0.0
    %v3224 = vmax.f32 %v3078, 0.0
    %v3225 = vmax.f32 %v3083, 0.0
    %v3226 = vmax.f32 %v3088, 0.0
    %v3227 = vmax.f32 %v3093, 0.0
    %v3228 = vmax.f32 %v3098, 0.0
    %v3229 = vmax.f32 %v3103, 0.0
    %v3230 = vmax.f32 %v3108, 0.0
    %v3231 = vmax.f32 %v3113, 0.0
    %v3232 = vmax.f32 %v3118, 0.0
    %v3233 = vmax.f32 %v3123, 0.0
    %v3234 = vmax.f32 %v3128, 0.0
    %v3235 = vmax.f32 %v3133, 0.0
    %v3236 = vmax.f32 %v3138, 0.0
    %v3237 = vmax.f32 %v3143, 0.0
    %v3238 = vmax.f32 %v3148, 0.0
    %v3239 = vmax.f32 %v3153, 0.0
    %v3240 = vmax.f32 %v3158, 0.0
    %v3241 = vmax.f32 %v3163, 0.0
    %v3242 = vmax.f32 %v3168, 0.0
    %v3243 = vmax.f32 %v3173, 0.0
    %v3244 = vmax.f32 %v3178, 0.0
    %v3245 = vmax.f32 %v3183, 0.0
    %v3246 = vmax.f32 %v3188, 0.0
    %v3247 = vmax.f32 %v3193, 0.0
    %v3248 = vmax.f32 %v3198, 0.0
    %v3249 = vmax.f32 %v3203, 0.0
    %v3250 = vmax.f32 %v3208, 0.0
    %v3251 = vmax.f32 %v3213, 0.0
    %v3288 = vcombine.high %v3216, %v3216
    %v3289 = vcombine.high %v3217, %v3217
    %v3290 = vcombine.high %v3218, %v3218
    %v3291 = vcombine.high %v3219, %v3219
    %v3292 = vcombine.high %v3220, %v3220
    %v3293 = vcombine.high %v3221, %v3221
    %v3294 = vcombine.high %v3222, %v3222
    %v3295 = vcombine.high %v3223, %v3223
    %v3296 = vcombine.high %v3224, %v3224
    %v3297 = vcombine.high %v3225, %v3225
    %v3298 = vcombine.high %v3226, %v3226
    %v3299 = vcombine.high %v3227, %v3227
    %v3300 = vcombine.high %v3228, %v3228
    %v3301 = vcombine.high %v3229, %v3229
    %v3302 = vcombine.high %v3230, %v3230
    %v3303 = vcombine.high %v3231, %v3231
    %v3304 = vcombine.high %v3232, %v3232
    %v3305 = vcombine.high %v3233, %v3233
    %v3306 = vcombine.high %v3234, %v3234
    %v3307 = vcombine.high %v3235, %v3235
    %v3308 = vcombine.high %v3236, %v3236
    %v3309 = vcombine.high %v3237, %v3237
    %v3310 = vcombine.high %v3238, %v3238
    %v3311 = vcombine.high %v3239, %v3239
    %v3312 = vcombine.high %v3240, %v3240
    %v3313 = vcombine.high %v3241, %v3241
    %v3314 = vcombine.high %v3242, %v3242
    %v3315 = vcombine.high %v3243, %v3243
    %v3316 = vcombine.high %v3244, %v3244
    %v3317 = vcombine.high %v3245, %v3245
    %v3318 = vcombine.high %v3246, %v3246
    %v3319 = vcombine.high %v3247, %v3247
    %v3320 = vcombine.high %v3248, %v3248
    %v3321 = vcombine.high %v3249, %v3249
    %v3322 = vcombine.high %v3250, %v3250
    %v3323 = vcombine.high %v3251, %v3251
    %v3336 = vcombine.low %v3216, %v3288
    %v3337 = vcombine.low %v3289, %v3218
    %v3338 = vcombine.low %v3219, %v3291
    %v3339 = vcombine.low %v3292, %v3221
    %v3340 = vcombine.low %v3222, %v3294
    %v3341 = vcombine.low %v3295, %v3224
    %v3342 = vcombine.low %v3225, %v3297
    %v3343 = vcombine.low %v3298, %v3227
    %v3344 = vcombine.low %v3228, %v3300
    %v3345 = vcombine.low %v3301, %v3230
    %v3346 = vcombine.low %v3231, %v3303
    %v3347 = vcombine.low %v3304, %v3233
    %v3348 = vcombine.low %v3234, %v3306
    %v3349 = vcombine.low %v3307, %v3236
    %v3350 = vcombine.low %v3237, %v3309
    %v3351 = vcombine.low %v3310, %v3239
    %v3352 = vcombine.low %v3240, %v3312
    %v3353 = vcombine.low %v3313, %v3242
    %v3354 = vcombine.low %v3243, %v3315
    %v3355 = vcombine.low %v3316, %v3245
    %v3356 = vcombine.low %v3246, %v3318
    %v3357 = vcombine.low %v3319, %v3248
    %v3358 = vcombine.low %v3249, %v3321
    %v3359 = vcombine.low %v3322, %v3251
    %v3384 = vpack.c.bf16 %v3217, %v3336
    %v3385 = vpack.c.bf16 %v3290, %v3337
    %v3386 = vpack.c.bf16 %v3220, %v3338
    %v3387 = vpack.c.bf16 %v3293, %v3339
    %v3388 = vpack.c.bf16 %v3223, %v3340
    %v3389 = vpack.c.bf16 %v3296, %v3341
    %v3390 = vpack.c.bf16 %v3226, %v3342
    %v3391 = vpack.c.bf16 %v3299, %v3343
    %v3392 = vpack.c.bf16 %v3229, %v3344
    %v3393 = vpack.c.bf16 %v3302, %v3345
    %v3394 = vpack.c.bf16 %v3232, %v3346
    %v3395 = vpack.c.bf16 %v3305, %v3347
    %v3396 = vpack.c.bf16 %v3235, %v3348
    %v3397 = vpack.c.bf16 %v3308, %v3349
    %v3398 = vpack.c.bf16 %v3238, %v3350
    %v3399 = vpack.c.bf16 %v3311, %v3351
    %v3400 = vpack.c.bf16 %v3241, %v3352
    %v3401 = vpack.c.bf16 %v3314, %v3353
    %v3402 = vpack.c.bf16 %v3244, %v3354
    %v3403 = vpack.c.bf16 %v3317, %v3355
    %v3404 = vpack.c.bf16 %v3247, %v3356
    %v3405 = vpack.c.bf16 %v3320, %v3357
    %v3406 = vpack.c.bf16 %v3250, %v3358
    %v3407 = vpack.c.bf16 %v3323, %v3359
    %v3408 = vld [vmem:[#allocation2] sm:$0xff]
    %v3409 = vld [vmem:[#allocation2 + $0x8] sm:$0xff]
    %v3410 = vld [vmem:[#allocation2 + $0x10] sm:$0xf]
    %v3411 = vld [vmem:[#allocation2 + $0x18] sm:$0xff]
    %v3412 = vld [vmem:[#allocation2 + $0x20] sm:$0xff]
    %v3413 = vld [vmem:[#allocation2 + $0x28] sm:$0xf]
    %v3414 = vld [vmem:[#allocation2 + $0x30] sm:$0xff]
    %v3415 = vld [vmem:[#allocation2 + $0x38] sm:$0xff]
    %v3416 = vld [vmem:[#allocation2 + $0x40] sm:$0xf]
    %v3417 = vld [vmem:[#allocation2 + $0x48] sm:$0xff]
    %v3418 = vld [vmem:[#allocation2 + $0x50] sm:$0xff]
    %v3419 = vld [vmem:[#allocation2 + $0x58] sm:$0xf]
    %v3420 = vld [vmem:[#allocation2 + $0x60] sm:$0xff]
    %v3421 = vld [vmem:[#allocation2 + $0x68] sm:$0xff]
    %v3422 = vld [vmem:[#allocation2 + $0x70] sm:$0xf]
    %v3423 = vld [vmem:[#allocation2 + $0x78] sm:$0xff]
    %v3424 = vld [vmem:[#allocation2 + $0x80] sm:$0xff]
    %v3425 = vld [vmem:[#allocation2 + $0x88] sm:$0xf]
    %v3426 = vld [vmem:[#allocation2 + $0x90] sm:$0xff]
    %v3427 = vld [vmem:[#allocation2 + $0x98] sm:$0xff]
    %v3428 = vld [vmem:[#allocation2 + $0xa0] sm:$0xf]
    %v3429 = vld [vmem:[#allocation2 + $0xa8] sm:$0xff]
    %v3430 = vld [vmem:[#allocation2 + $0xb0] sm:$0xff]
    %v3431 = vld [vmem:[#allocation2 + $0xb8] sm:$0xf]
    %v3432 = vld [vmem:[#allocation2 + $0xc0] sm:$0xff]
    %v3433 = vld [vmem:[#allocation2 + $0xc8] sm:$0xff]
    %v3434 = vld [vmem:[#allocation2 + $0xd0] sm:$0xf]
    %v3435 = vld [vmem:[#allocation2 + $0xd8] sm:$0xff]
    %v3436 = vld [vmem:[#allocation2 + $0xe0] sm:$0xff]
    %v3437 = vld [vmem:[#allocation2 + $0xe8] sm:$0xf]
    %v3438 = vld [vmem:[#allocation2 + $0xf0] sm:$0xff]
    %v3439 = vld [vmem:[#allocation2 + $0xf8] sm:$0xff]
    %v3440 = vld [vmem:[#allocation2 + $0x100] sm:$0xf]
    %v3441 = vld [vmem:[#allocation2 + $0x108] sm:$0xff]
    %v3442 = vld [vmem:[#allocation2 + $0x110] sm:$0xff]
    %v3443 = vld [vmem:[#allocation2 + $0x118] sm:$0xf]
    %v3444 = vld [vmem:[#allocation2 + $0x120] sm:$0xff]
    %v3445 = vld [vmem:[#allocation2 + $0x128] sm:$0xff]
    %v3446 = vld [vmem:[#allocation2 + $0x130] sm:$0xf]
    %v3447 = vld [vmem:[#allocation2 + $0x138] sm:$0xff]
    %v3448 = vld [vmem:[#allocation2 + $0x140] sm:$0xff]
    %v3449 = vld [vmem:[#allocation2 + $0x148] sm:$0xf]
    %v3450 = vld [vmem:[#allocation2 + $0x150] sm:$0xff]
    %v3451 = vld [vmem:[#allocation2 + $0x158] sm:$0xff]
    %v3452 = vld [vmem:[#allocation2 + $0x160] sm:$0xf]
    %v3453 = vld [vmem:[#allocation2 + $0x168] sm:$0xff]
    %v3454 = vld [vmem:[#allocation2 + $0x170] sm:$0xff]
    %v3455 = vld [vmem:[#allocation2 + $0x178] sm:$0xf]
    %v3456 = vld [vmem:[#allocation2 + $0x180] sm:$0xff]
    %v3457 = vld [vmem:[#allocation2 + $0x188] sm:$0xff]
    %v3458 = vld [vmem:[#allocation2 + $0x190] sm:$0xf]
    %v3459 = vld [vmem:[#allocation2 + $0x198] sm:$0xff]
    %v3460 = vld [vmem:[#allocation2 + $0x1a0] sm:$0xff]
    %v3461 = vld [vmem:[#allocation2 + $0x1a8] sm:$0xf]
    %v3462 = vld [vmem:[#allocation2 + $0x1b0] sm:$0xff]
    %v3463 = vld [vmem:[#allocation2 + $0x1b8] sm:$0xff]
    %v3464 = vld [vmem:[#allocation2 + $0x1c0] sm:$0xf]
    %v3465 = vld [vmem:[#allocation2 + $0x1c8] sm:$0xff]
    %v3466 = vld [vmem:[#allocation2 + $0x1d0] sm:$0xff]
    %v3467 = vld [vmem:[#allocation2 + $0x1d8] sm:$0xf]
    %v3468 = vld [vmem:[#allocation2 + $0x1e0] sm:$0xff]
    %v3469 = vld [vmem:[#allocation2 + $0x1e8] sm:$0xff]
    %v3470 = vld [vmem:[#allocation2 + $0x1f0] sm:$0xf]
    %v3471 = vld [vmem:[#allocation2 + $0x1f8] sm:$0xff]
    %v3472 = vld [vmem:[#allocation2 + $0x200] sm:$0xff]
    %v3473 = vld [vmem:[#allocation2 + $0x208] sm:$0xf]
    %v3474 = vld [vmem:[#allocation2 + $0x210] sm:$0xff]
    %v3475 = vld [vmem:[#allocation2 + $0x218] sm:$0xff]
    %v3476 = vld [vmem:[#allocation2 + $0x220] sm:$0xf]
    %v3477 = vld [vmem:[#allocation2 + $0x228] sm:$0xff]
    %v3478 = vld [vmem:[#allocation2 + $0x230] sm:$0xff]
    %v3479 = vld [vmem:[#allocation2 + $0x238] sm:$0xf]
    %v3480 = vld [vmem:[#allocation2 + $0x240] sm:$0xff]
    %v3481 = vld [vmem:[#allocation2 + $0x248] sm:$0xff]
    %v3482 = vld [vmem:[#allocation2 + $0x250] sm:$0xf]
    %v3483 = vpack.c.bf16 %v3409, %v3408
    %v3484 = vpack.c.bf16 %v3410, %v3410
    %v3485 = vpack.c.bf16 %v3412, %v3411
    %v3486 = vpack.c.bf16 %v3413, %v3413
    %v3487 = vpack.c.bf16 %v3415, %v3414
    %v3488 = vpack.c.bf16 %v3416, %v3416
    %v3489 = vpack.c.bf16 %v3418, %v3417
    %v3490 = vpack.c.bf16 %v3419, %v3419
    %v3491 = vpack.c.bf16 %v3421, %v3420
    %v3492 = vpack.c.bf16 %v3422, %v3422
    %v3493 = vpack.c.bf16 %v3424, %v3423
    %v3494 = vpack.c.bf16 %v3425, %v3425
    %v3495 = vpack.c.bf16 %v3427, %v3426
    %v3496 = vpack.c.bf16 %v3428, %v3428
    %v3497 = vpack.c.bf16 %v3430, %v3429
    %v3498 = vpack.c.bf16 %v3431, %v3431
    %v3499 = vpack.c.bf16 %v3433, %v3432
    %v3500 = vpack.c.bf16 %v3434, %v3434
    %v3501 = vpack.c.bf16 %v3436, %v3435
    %v3502 = vpack.c.bf16 %v3437, %v3437
    %v3503 = vpack.c.bf16 %v3439, %v3438
    %v3504 = vpack.c.bf16 %v3440, %v3440
    %v3505 = vpack.c.bf16 %v3442, %v3441
    %v3506 = vpack.c.bf16 %v3443, %v3443
    %v3507 = vpack.c.bf16 %v3445, %v3444
    %v3508 = vpack.c.bf16 %v3446, %v3446
    %v3509 = vpack.c.bf16 %v3448, %v3447
    %v3510 = vpack.c.bf16 %v3449, %v3449
    %v3511 = vpack.c.bf16 %v3451, %v3450
    %v3512 = vpack.c.bf16 %v3452, %v3452
    %v3513 = vpack.c.bf16 %v3454, %v3453
    %v3514 = vpack.c.bf16 %v3455, %v3455
    %v3515 = vpack.c.bf16 %v3457, %v3456
    %v3516 = vpack.c.bf16 %v3458, %v3458
    %v3517 = vpack.c.bf16 %v3460, %v3459
    %v3518 = vpack.c.bf16 %v3461, %v3461
    %v3519 = vpack.c.bf16 %v3463, %v3462
    %v3520 = vpack.c.bf16 %v3464, %v3464
    %v3521 = vpack.c.bf16 %v3466, %v3465
    %v3522 = vpack.c.bf16 %v3467, %v3467
    %v3523 = vpack.c.bf16 %v3469, %v3468
    %v3524 = vpack.c.bf16 %v3470, %v3470
    %v3525 = vpack.c.bf16 %v3472, %v3471
    %v3526 = vpack.c.bf16 %v3473, %v3473
    %v3527 = vpack.c.bf16 %v3475, %v3474
    %v3528 = vpack.c.bf16 %v3476, %v3476
    %v3529 = vpack.c.bf16 %v3478, %v3477
    %v3530 = vpack.c.bf16 %v3479, %v3479
    %v3531 = vpack.c.bf16 %v3481, %v3480
    %v3532 = vpack.c.bf16 %v3482, %v3482
    %v3549 = vunpack.c.l.b16 %v3384
    %v3550 = vunpack.c.h.b16 %v3384
    %v3551 = vunpack.c.l.b16 %v3385
    %v3552 = vunpack.c.h.b16 %v3385
    %v3553 = vunpack.c.l.b16 %v3386
    %v3554 = vunpack.c.h.b16 %v3386
    %v3555 = vunpack.c.l.b16 %v3387
    %v3556 = vunpack.c.h.b16 %v3387
    %v3557 = vunpack.c.l.b16 %v3388
    %v3558 = vunpack.c.h.b16 %v3388
    %v3559 = vunpack.c.l.b16 %v3389
    %v3560 = vunpack.c.h.b16 %v3389
    %v3561 = vunpack.c.l.b16 %v3390
    %v3562 = vunpack.c.h.b16 %v3390
    %v3563 = vunpack.c.l.b16 %v3391
    %v3564 = vunpack.c.h.b16 %v3391
    %v3565 = vunpack.c.l.b16 %v3396
    %v3566 = vunpack.c.h.b16 %v3396
    %v3567 = vunpack.c.l.b16 %v3397
    %v3568 = vunpack.c.h.b16 %v3397
    %v3569 = vunpack.c.l.b16 %v3398
    %v3570 = vunpack.c.h.b16 %v3398
    %v3571 = vunpack.c.l.b16 %v3399
    %v3572 = vunpack.c.h.b16 %v3399
    %v3573 = vunpack.c.l.b16 %v3400
    %v3574 = vunpack.c.h.b16 %v3400
    %v3575 = vunpack.c.l.b16 %v3401
    %v3576 = vunpack.c.h.b16 %v3401
    %v3577 = vunpack.c.l.b16 %v3402
    %v3578 = vunpack.c.h.b16 %v3402
    %v3579 = vunpack.c.l.b16 %v3403
    %v3580 = vunpack.c.h.b16 %v3403
    %v3581 = vpack.c.b16 %v3549, %v3549
    %v3582 = vpack.c.b16 %v3550, %v3550
    %v3583 = vpack.c.b16 %v3551, %v3551
    %v3584 = vpack.c.b16 %v3552, %v3552
    %v3585 = vpack.c.b16 %v3553, %v3553
    %v3586 = vpack.c.b16 %v3554, %v3554
    %v3587 = vpack.c.b16 %v3555, %v3555
    %v3588 = vpack.c.b16 %v3556, %v3556
    %v3589 = vpack.c.b16 %v3557, %v3557
    %v3590 = vpack.c.b16 %v3558, %v3558
    %v3591 = vpack.c.b16 %v3559, %v3559
    %v3592 = vpack.c.b16 %v3560, %v3560
    %v3593 = vpack.c.b16 %v3561, %v3561
    %v3594 = vpack.c.b16 %v3562, %v3562
    %v3595 = vpack.c.b16 %v3563, %v3563
    %v3596 = vpack.c.b16 %v3564, %v3564
    %v3597 = vpack.c.b16 %v3565, %v3565
    %v3598 = vpack.c.b16 %v3566, %v3566
    %v3599 = vpack.c.b16 %v3567, %v3567
    %v3600 = vpack.c.b16 %v3568, %v3568
    %v3601 = vpack.c.b16 %v3569, %v3569
    %v3602 = vpack.c.b16 %v3570, %v3570
    %v3603 = vpack.c.b16 %v3571, %v3571
    %v3604 = vpack.c.b16 %v3572, %v3572
    %v3605 = vpack.c.b16 %v3573, %v3573
    %v3606 = vpack.c.b16 %v3574, %v3574
    %v3607 = vpack.c.b16 %v3575, %v3575
    %v3608 = vpack.c.b16 %v3576, %v3576
    %v3609 = vpack.c.b16 %v3577, %v3577
    %v3610 = vpack.c.b16 %v3578, %v3578
    %v3611 = vpack.c.b16 %v3579, %v3579
    %v3612 = vpack.c.b16 %v3580, %v3580
    %vm3613 = vsmask.f32 3328
    %vm3614 = vsmask.f32 7440
    %vm3615 = vmor %vm3613, %vm3614
    %v3617 = vshrl.u32 %v3581, 16
    %v3619 = vrot.slane %v3617, 4
    %v3620 = vshll.u32 %v3581, 16
    %v3622 = vrot.slane %v3620, 5
    %v3623 = vor.u32 %v3619, %v3622
    %v3624 = vrot.slane %v3623, 4
    %v3626 = vshll.u32 %v3582, 16
    %v3628 = vrot.slane %v3626, 5
    %v3629 = vsel %vm3615, %v3624, %v3628
    %v3631 = vshrl.u32 %v3583, 16
    %v3633 = vrot.slane %v3631, 4
    %v3634 = vshll.u32 %v3583, 16
    %v3636 = vrot.slane %v3634, 5
    %v3637 = vor.u32 %v3633, %v3636
    %v3638 = vrot.slane %v3637, 4
    %v3640 = vshll.u32 %v3584, 16
    %v3642 = vrot.slane %v3640, 5
    %v3643 = vsel %vm3615, %v3638, %v3642
    %v3645 = vshrl.u32 %v3585, 16
    %v3647 = vrot.slane %v3645, 4
    %v3648 = vshll.u32 %v3585, 16
    %v3650 = vrot.slane %v3648, 5
    %v3651 = vor.u32 %v3647, %v3650
    %v3652 = vrot.slane %v3651, 4
    %v3654 = vshll.u32 %v3586, 16
    %v3656 = vrot.slane %v3654, 5
    %v3657 = vsel %vm3615, %v3652, %v3656
    %v3659 = vshrl.u32 %v3587, 16
    %v3661 = vrot.slane %v3659, 4
    %v3662 = vshll.u32 %v3587, 16
    %v3664 = vrot.slane %v3662, 5
    %v3665 = vor.u32 %v3661, %v3664
    %v3666 = vrot.slane %v3665, 4
    %v3668 = vshll.u32 %v3588, 16
    %v3670 = vrot.slane %v3668, 5
    %v3671 = vsel %vm3615, %v3666, %v3670
    %v3673 = vshrl.u32 %v3589, 16
    %v3675 = vrot.slane %v3673, 4
    %v3676 = vshll.u32 %v3589, 16
    %v3678 = vrot.slane %v3676, 5
    %v3679 = vor.u32 %v3675, %v3678
    %v3680 = vrot.slane %v3679, 4
    %v3682 = vshll.u32 %v3590, 16
    %v3684 = vrot.slane %v3682, 5
    %v3685 = vsel %vm3615, %v3680, %v3684
    %v3687 = vshrl.u32 %v3591, 16
    %v3689 = vrot.slane %v3687, 4
    %v3690 = vshll.u32 %v3591, 16
    %v3692 = vrot.slane %v3690, 5
    %v3693 = vor.u32 %v3689, %v3692
    %v3694 = vrot.slane %v3693, 4
    %v3696 = vshll.u32 %v3592, 16
    %v3698 = vrot.slane %v3696, 5
    %v3699 = vsel %vm3615, %v3694, %v3698
    %v3701 = vshrl.u32 %v3593, 16
    %v3703 = vrot.slane %v3701, 4
    %v3704 = vshll.u32 %v3593, 16
    %v3706 = vrot.slane %v3704, 5
    %v3707 = vor.u32 %v3703, %v3706
    %v3708 = vrot.slane %v3707, 4
    %v3710 = vshll.u32 %v3594, 16
    %v3712 = vrot.slane %v3710, 5
    %v3713 = vsel %vm3615, %v3708, %v3712
    %v3715 = vshrl.u32 %v3595, 16
    %v3717 = vrot.slane %v3715, 4
    %v3718 = vshll.u32 %v3595, 16
    %v3720 = vrot.slane %v3718, 5
    %v3721 = vor.u32 %v3717, %v3720
    %v3722 = vrot.slane %v3721, 4
    %v3724 = vshll.u32 %v3596, 16
    %v3726 = vrot.slane %v3724, 5
    %v3727 = vsel %vm3615, %v3722, %v3726
    %v3729 = vshrl.u32 %v3597, 16
    %v3731 = vrot.slane %v3729, 4
    %v3732 = vshll.u32 %v3597, 16
    %v3734 = vrot.slane %v3732, 5
    %v3735 = vor.u32 %v3731, %v3734
    %v3736 = vrot.slane %v3735, 4
    %v3738 = vshll.u32 %v3598, 16
    %v3740 = vrot.slane %v3738, 5
    %v3741 = vsel %vm3615, %v3736, %v3740
    %v3743 = vshrl.u32 %v3599, 16
    %v3745 = vrot.slane %v3743, 4
    %v3746 = vshll.u32 %v3599, 16
    %v3748 = vrot.slane %v3746, 5
    %v3749 = vor.u32 %v3745, %v3748
    %v3750 = vrot.slane %v3749, 4
    %v3752 = vshll.u32 %v3600, 16
    %v3754 = vrot.slane %v3752, 5
    %v3755 = vsel %vm3615, %v3750, %v3754
    %v3757 = vshrl.u32 %v3601, 16
    %v3759 = vrot.slane %v3757, 4
    %v3760 = vshll.u32 %v3601, 16
    %v3762 = vrot.slane %v3760, 5
    %v3763 = vor.u32 %v3759, %v3762
    %v3764 = vrot.slane %v3763, 4
    %v3766 = vshll.u32 %v3602, 16
    %v3768 = vrot.slane %v3766, 5
    %v3769 = vsel %vm3615, %v3764, %v3768
    %v3771 = vshrl.u32 %v3603, 16
    %v3773 = vrot.slane %v3771, 4
    %v3774 = vshll.u32 %v3603, 16
    %v3776 = vrot.slane %v3774, 5
    %v3777 = vor.u32 %v3773, %v3776
    %v3778 = vrot.slane %v3777, 4
    %v3780 = vshll.u32 %v3604, 16
    %v3782 = vrot.slane %v3780, 5
    %v3783 = vsel %vm3615, %v3778, %v3782
    %v3785 = vshrl.u32 %v3605, 16
    %v3787 = vrot.slane %v3785, 4
    %v3788 = vshll.u32 %v3605, 16
    %v3790 = vrot.slane %v3788, 5
    %v3791 = vor.u32 %v3787, %v3790
    %v3792 = vrot.slane %v3791, 4
    %v3794 = vshll.u32 %v3606, 16
    %v3796 = vrot.slane %v3794, 5
    %v3797 = vsel %vm3615, %v3792, %v3796
    %v3799 = vshrl.u32 %v3607, 16
    %v3801 = vrot.slane %v3799, 4
    %v3802 = vshll.u32 %v3607, 16
    %v3804 = vrot.slane %v3802, 5
    %v3805 = vor.u32 %v3801, %v3804
    %v3806 = vrot.slane %v3805, 4
    %v3808 = vshll.u32 %v3608, 16
    %v3810 = vrot.slane %v3808, 5
    %v3811 = vsel %vm3615, %v3806, %v3810
    %v3813 = vshrl.u32 %v3609, 16
    %v3815 = vrot.slane %v3813, 4
    %v3816 = vshll.u32 %v3609, 16
    %v3818 = vrot.slane %v3816, 5
    %v3819 = vor.u32 %v3815, %v3818
    %v3820 = vrot.slane %v3819, 4
    %v3822 = vshll.u32 %v3610, 16
    %v3824 = vrot.slane %v3822, 5
    %v3825 = vsel %vm3615, %v3820, %v3824
    %v3827 = vshrl.u32 %v3611, 16
    %v3829 = vrot.slane %v3827, 4
    %v3830 = vshll.u32 %v3611, 16
    %v3832 = vrot.slane %v3830, 5
    %v3833 = vor.u32 %v3829, %v3832
    %v3834 = vrot.slane %v3833, 4
    %v3836 = vshll.u32 %v3612, 16
    %v3838 = vrot.slane %v3836, 5
    %v3839 = vsel %vm3615, %v3834, %v3838
    %3840 = vxpose.xlu0.c.b16.start [1/8] %v3485, 128
    %3841 = vxpose.xlu0.c.b16.cont [2/8] %v3486, 128
    %3842 = vxpose.xlu0.c.b16.cont [3/8] 0, 128
    %3843 = vxpose.xlu0.c.b16.cont [4/8] 0, 128
    %3844 = vxpose.xlu0.c.b16.cont [5/8] 0, 128
    %3845 = vxpose.xlu0.c.b16.cont [6/8] 0, 128
    %3846 = vxpose.xlu0.c.b16.cont [7/8] 0, 128
    %3847 = vxpose.xlu0.c.b16.end [8/8] 0, 128
    %v3848 = vpop.trf.xlu0
    %v3849 = vpop.trf.xlu0
    %v3850 = vpop.trf.xlu0
    %v3851 = vpop.trf.xlu0
    %v3852 = vpop.trf.xlu0
    %v3853 = vpop.trf.xlu0
    %v3854 = vpop.trf.xlu0
    %v3855 = vpop.trf.xlu0
    %v3856 = vunpack.c.l.b16 %v3629
    %v3857 = vunpack.c.l.b16 %v3643
    %v3858 = vunpack.c.l.b16 %v3657
    %v3859 = vunpack.c.l.b16 %v3671
    %v3860 = vunpack.c.l.b16 %v3685
    %v3861 = vunpack.c.l.b16 %v3699
    %v3862 = vunpack.c.l.b16 %v3713
    %v3863 = vunpack.c.l.b16 %v3727
    %v3864 = vunpack.c.l.b16 %v3741
    %v3865 = vunpack.c.l.b16 %v3755
    %v3866 = vunpack.c.l.b16 %v3769
    %v3867 = vunpack.c.l.b16 %v3783
    %v3868 = vunpack.c.l.b16 %v3797
    %v3869 = vunpack.c.l.b16 %v3811
    %v3870 = vunpack.c.l.b16 %v3825
    %v3871 = vunpack.c.l.b16 %v3839
    %v3872 = vpack.c.b16 %v3857, %v3856
    %v3873 = vpack.c.b16 %v3859, %v3858
    %v3874 = vpack.c.b16 %v3861, %v3860
    %v3875 = vpack.c.b16 %v3863, %v3862
    %v3876 = vpack.c.b16 %v3865, %v3864
    %v3877 = vpack.c.b16 %v3867, %v3866
    %v3878 = vpack.c.b16 %v3869, %v3868
    %v3879 = vpack.c.b16 %v3871, %v3870
    %vm3880 = vcmask 162816
    %v3882 = vsel %vm3880, %v3848, 0
    %v3885 = vsel %vm3880, %v3849, 0
    %v3888 = vsel %vm3880, %v3872, 0
    %v3891 = vsel %vm3880, %v3873, 0
    %v3894 = vsel %vm3880, %v3874, 0
    %v3897 = vsel %vm3880, %v3875, 0
    %v3900 = vsel %vm3880, %v3876, 0
    %v3903 = vsel %vm3880, %v3877, 0
    %v3906 = vsel %vm3880, %v3878, 0
    %v3909 = vsel %vm3880, %v3879, 0
    %3911 = vmatprep.subr.bf16.mxu0 0
    %3912 = vmatpush1.bf16.xpose.msra.mxu0 %v3888
    %3913 = vmatprep.subr.bf16.mxu0 0
    %3914 = vmatpush1.bf16.xpose.msra.mxu0 %v3891
    %3915 = vmatprep.subr.bf16.mxu0 0
    %3916 = vmatpush1.bf16.xpose.msra.mxu0 %v3894
    %3917 = vmatprep.subr.bf16.mxu0 0
    %3918 = vmatpush1.bf16.xpose.msra.mxu0 %v3897
    %3919 = vmatprep.subr.bf16.mxu0 0
    %3920 = vmatpush1.bf16.xpose.msra.mxu0 %v3900
    %3921 = vmatprep.subr.bf16.mxu0 0
    %3922 = vmatpush1.bf16.xpose.msra.mxu0 %v3903
    %3923 = vmatprep.subr.bf16.mxu0 0
    %3924 = vmatpush1.bf16.xpose.msra.mxu0 %v3906
    %3925 = vmatprep.subr.bf16.mxu0 0
    %3926 = vmatpush1.bf16.xpose.msra.mxu0 %v3909
    %3927 = vmatprep.subr.bf16.mxu0 0
    %3928 = vmatpush1.bf16.xpose.msra.mxu0 0
    %3929 = vmatprep.subr.bf16.mxu0 0
    %3930 = vmatpush1.bf16.xpose.msra.mxu0 0
    %3931 = vmatprep.subr.bf16.mxu0 0
    %3932 = vmatpush1.bf16.xpose.msra.mxu0 0
    %3933 = vmatprep.subr.bf16.mxu0 0
    %3934 = vmatpush1.bf16.xpose.msra.mxu0 0
    %3935 = vmatprep.subr.bf16.mxu0 0
    %3936 = vmatpush1.bf16.xpose.msra.mxu0 0
    %3937 = vmatprep.subr.bf16.mxu0 0
    %3938 = vmatpush1.bf16.xpose.msra.mxu0 0
    %3939 = vmatprep.subr.bf16.mxu0 0
    %3940 = vmatpush1.bf16.xpose.msra.mxu0 0
    %3941 = vmatprep.subr.bf16.mxu0 0
    %3942 = vmatpush1.bf16.xpose.msra.mxu0 0
    %3943 = vmatprep.mubr.bf16.mxu0 0
    %3944 = vmatmul.mubr.bf16.gmra.mrb[0].mxu0 %v3882
    %v3945 = vpop.f32.mrb[0].mxu0
    %v3946 = vadd.f32 0.0, %v3945
    %v3947 = vpop.f32.mrb[0].mxu0
    %v3948 = vpop.f32.mrb[0].mxu0
    %v3949 = vadd.f32 0.0, %v3948
    %v3950 = vpop.f32.mrb[0].mxu0
    %3951 = vmatprep.mubr.bf16.mxu0 0
    %3952 = vmatmul.mubr.bf16.gmra.mrb[0].mxu0 %v3885
    %v3953 = vpop.f32.mrb[0].mxu0
    %v3954 = vadd.f32 0.0, %v3953
    %v3955 = vpop.f32.mrb[0].mxu0
    %v3956 = vpop.f32.mrb[0].mxu0
    %v3957 = vpop.f32.mrb[0].mxu0
    %3958 = vdwg.mxu0
    %3959 = vxpose.xlu0.c.b16.start [1/8] %v3483, 128
    %3960 = vxpose.xlu0.c.b16.cont [2/8] %v3484, 128
    %3961 = vxpose.xlu0.c.b16.cont [3/8] 0, 128
    %3962 = vxpose.xlu0.c.b16.cont [4/8] 0, 128
    %3963 = vxpose.xlu0.c.b16.cont [5/8] 0, 128
    %3964 = vxpose.xlu0.c.b16.cont [6/8] 0, 128
    %3965 = vxpose.xlu0.c.b16.cont [7/8] 0, 128
    %3966 = vxpose.xlu0.c.b16.end [8/8] 0, 128
    %v3967 = vpop.trf.xlu0
    %v3968 = vpop.trf.xlu0
    %v3969 = vpop.trf.xlu0
    %v3970 = vpop.trf.xlu0
    %v3971 = vpop.trf.xlu0
    %v3972 = vpop.trf.xlu0
    %v3973 = vpop.trf.xlu0
    %v3974 = vpop.trf.xlu0
    %v3975 = vpack.c.b16 %v3551, %v3549
    %v3976 = vpack.c.b16 %v3555, %v3553
    %v3977 = vpack.c.b16 %v3559, %v3557
    %v3978 = vpack.c.b16 %v3563, %v3561
    %v3979 = vpack.c.b16 %v3567, %v3565
    %v3980 = vpack.c.b16 %v3571, %v3569
    %v3981 = vpack.c.b16 %v3575, %v3573
    %v3982 = vpack.c.b16 %v3579, %v3577
    %v3984 = vsel %vm3880, %v3967, 0
    %v3987 = vsel %vm3880, %v3968, 0
    %v3990 = vsel %vm3880, %v3975, 0
    %v3993 = vsel %vm3880, %v3976, 0
    %v3996 = vsel %vm3880, %v3977, 0
    %v3999 = vsel %vm3880, %v3978, 0
    %v4002 = vsel %vm3880, %v3979, 0
    %v4005 = vsel %vm3880, %v3980, 0
    %v4008 = vsel %vm3880, %v3981, 0
    %v4011 = vsel %vm3880, %v3982, 0
    %4013 = vmatprep.subr.bf16.mxu0 0
    %4014 = vmatpush1.bf16.xpose.msra.mxu0 %v3990
    %4015 = vmatprep.subr.bf16.mxu0 0
    %4016 = vmatpush1.bf16.xpose.msra.mxu0 %v3993
    %4017 = vmatprep.subr.bf16.mxu0 0
    %4018 = vmatpush1.bf16.xpose.msra.mxu0 %v3996
    %4019 = vmatprep.subr.bf16.mxu0 0
    %4020 = vmatpush1.bf16.xpose.msra.mxu0 %v3999
    %4021 = vmatprep.subr.bf16.mxu0 0
    %4022 = vmatpush1.bf16.xpose.msra.mxu0 %v4002
    %4023 = vmatprep.subr.bf16.mxu0 0
    %4024 = vmatpush1.bf16.xpose.msra.mxu0 %v4005
    %4025 = vmatprep.subr.bf16.mxu0 0
    %4026 = vmatpush1.bf16.xpose.msra.mxu0 %v4008
    %4027 = vmatprep.subr.bf16.mxu0 0
    %4028 = vmatpush1.bf16.xpose.msra.mxu0 %v4011
    %4029 = vmatprep.subr.bf16.mxu0 0
    %4030 = vmatpush1.bf16.xpose.msra.mxu0 0
    %4031 = vmatprep.subr.bf16.mxu0 0
    %4032 = vmatpush1.bf16.xpose.msra.mxu0 0
    %4033 = vmatprep.subr.bf16.mxu0 0
    %4034 = vmatpush1.bf16.xpose.msra.mxu0 0
    %4035 = vmatprep.subr.bf16.mxu0 0
    %4036 = vmatpush1.bf16.xpose.msra.mxu0 0
    %4037 = vmatprep.subr.bf16.mxu0 0
    %4038 = vmatpush1.bf16.xpose.msra.mxu0 0
    %4039 = vmatprep.subr.bf16.mxu0 0
    %4040 = vmatpush1.bf16.xpose.msra.mxu0 0
    %4041 = vmatprep.subr.bf16.mxu0 0
    %4042 = vmatpush1.bf16.xpose.msra.mxu0 0
    %4043 = vmatprep.subr.bf16.mxu0 0
    %4044 = vmatpush1.bf16.xpose.msra.mxu0 0
    %4045 = vmatprep.mubr.bf16.mxu0 0
    %4046 = vmatmul.mubr.bf16.gmra.mrb[0].mxu0 %v3984
    %v4047 = vpop.f32.mrb[0].mxu0
    %v4048 = vadd.f32 %v3946, %v4047
    %v4049 = vpop.f32.mrb[0].mxu0
    %v4050 = vpop.f32.mrb[0].mxu0
    %v4051 = vadd.f32 %v3949, %v4050
    %v4052 = vpop.f32.mrb[0].mxu0
    %4053 = vmatprep.mubr.bf16.mxu0 0
    %4054 = vmatmul.mubr.bf16.gmra.mrb[0].mxu0 %v3987
    %v4055 = vpop.f32.mrb[0].mxu0
    %v4056 = vadd.f32 %v3954, %v4055
    %v4057 = vpop.f32.mrb[0].mxu0
    %v4058 = vpop.f32.mrb[0].mxu0
    %v4059 = vpop.f32.mrb[0].mxu0
    %4060 = vdwg.mxu0
    %vm4061 = vcmask 1042432
    %vm4062 = vcmask 1046532
    %vm4063 = vmor %vm4061, %vm4062
    %v4064 = vrot.slane %v3581, 5
    %v4065 = vrot.slane %v4064, 4
    %v4066 = vrot.slane %v3582, 5
    %v4067 = vsel %vm4063, %v4065, %v4066
    %v4068 = vrot.slane %v3583, 5
    %v4069 = vrot.slane %v4068, 4
    %v4070 = vrot.slane %v3584, 5
    %v4071 = vsel %vm4063, %v4069, %v4070
    %v4072 = vrot.slane %v3585, 5
    %v4073 = vrot.slane %v4072, 4
    %v4074 = vrot.slane %v3586, 5
    %v4075 = vsel %vm4063, %v4073, %v4074
    %v4076 = vrot.slane %v3587, 5
    %v4077 = vrot.slane %v4076, 4
    %v4078 = vrot.slane %v3588, 5
    %v4079 = vsel %vm4063, %v4077, %v4078
    %v4080 = vrot.slane %v3589, 5
    %v4081 = vrot.slane %v4080, 4
    %v4082 = vrot.slane %v3590, 5
    %v4083 = vsel %vm4063, %v4081, %v4082
    %v4084 = vrot.slane %v3591, 5
    %v4085 = vrot.slane %v4084, 4
    %v4086 = vrot.slane %v3592, 5
    %v4087 = vsel %vm4063, %v4085, %v4086
    %v4088 = vrot.slane %v3593, 5
    %v4089 = vrot.slane %v4088, 4
    %v4090 = vrot.slane %v3594, 5
    %v4091 = vsel %vm4063, %v4089, %v4090
    %v4092 = vrot.slane %v3595, 5
    %v4093 = vrot.slane %v4092, 4
    %v4094 = vrot.slane %v3596, 5
    %v4095 = vsel %vm4063, %v4093, %v4094
    %v4096 = vrot.slane %v3597, 5
    %v4097 = vrot.slane %v4096, 4
    %v4098 = vrot.slane %v3598, 5
    %v4099 = vsel %vm4063, %v4097, %v4098
    %v4100 = vrot.slane %v3599, 5
    %v4101 = vrot.slane %v4100, 4
    %v4102 = vrot.slane %v3600, 5
    %v4103 = vsel %vm4063, %v4101, %v4102
    %v4104 = vrot.slane %v3601, 5
    %v4105 = vrot.slane %v4104, 4
    %v4106 = vrot.slane %v3602, 5
    %v4107 = vsel %vm4063, %v4105, %v4106
    %v4108 = vrot.slane %v3603, 5
    %v4109 = vrot.slane %v4108, 4
    %v4110 = vrot.slane %v3604, 5
    %v4111 = vsel %vm4063, %v4109, %v4110
    %v4112 = vrot.slane %v3605, 5
    %v4113 = vrot.slane %v4112, 4
    %v4114 = vrot.slane %v3606, 5
    %v4115 = vsel %vm4063, %v4113, %v4114
    %v4116 = vrot.slane %v3607, 5
    %v4117 = vrot.slane %v4116, 4
    %v4118 = vrot.slane %v3608, 5
    %v4119 = vsel %vm4063, %v4117, %v4118
    %v4120 = vrot.slane %v3609, 5
    %v4121 = vrot.slane %v4120, 4
    %v4122 = vrot.slane %v3610, 5
    %v4123 = vsel %vm4063, %v4121, %v4122
    %v4124 = vrot.slane %v3611, 5
    %v4125 = vrot.slane %v4124, 4
    %v4126 = vrot.slane %v3612, 5
    %v4127 = vsel %vm4063, %v4125, %v4126
    %4128 = vxpose.xlu0.c.b16.start [1/8] %v3487, 128
    %4129 = vxpose.xlu0.c.b16.cont [2/8] %v3488, 128
    %4130 = vxpose.xlu0.c.b16.cont [3/8] 0, 128
    %4131 = vxpose.xlu0.c.b16.cont [4/8] 0, 128
    %4132 = vxpose.xlu0.c.b16.cont [5/8] 0, 128
    %4133 = vxpose.xlu0.c.b16.cont [6/8] 0, 128
    %4134 = vxpose.xlu0.c.b16.cont [7/8] 0, 128
    %4135 = vxpose.xlu0.c.b16.end [8/8] 0, 128
    %v4136 = vpop.trf.xlu0
    %v4137 = vpop.trf.xlu0
    %v4138 = vpop.trf.xlu0
    %v4139 = vpop.trf.xlu0
    %v4140 = vpop.trf.xlu0
    %v4141 = vpop.trf.xlu0
    %v4142 = vpop.trf.xlu0
    %v4143 = vpop.trf.xlu0
    %v4144 = vunpack.c.l.b16 %v4067
    %v4145 = vunpack.c.l.b16 %v4071
    %v4146 = vunpack.c.l.b16 %v4075
    %v4147 = vunpack.c.l.b16 %v4079
    %v4148 = vunpack.c.l.b16 %v4083
    %v4149 = vunpack.c.l.b16 %v4087
    %v4150 = vunpack.c.l.b16 %v4091
    %v4151 = vunpack.c.l.b16 %v4095
    %v4152 = vunpack.c.l.b16 %v4099
    %v4153 = vunpack.c.l.b16 %v4103
    %v4154 = vunpack.c.l.b16 %v4107
    %v4155 = vunpack.c.l.b16 %v4111
    %v4156 = vunpack.c.l.b16 %v4115
    %v4157 = vunpack.c.l.b16 %v4119
    %v4158 = vunpack.c.l.b16 %v4123
    %v4159 = vunpack.c.l.b16 %v4127
    %v4160 = vpack.c.b16 %v4145, %v4144
    %v4161 = vpack.c.b16 %v4147, %v4146
    %v4162 = vpack.c.b16 %v4149, %v4148
    %v4163 = vpack.c.b16 %v4151, %v4150
    %v4164 = vpack.c.b16 %v4153, %v4152
    %v4165 = vpack.c.b16 %v4155, %v4154
    %v4166 = vpack.c.b16 %v4157, %v4156
    %v4167 = vpack.c.b16 %v4159, %v4158
    %v4169 = vsel %vm3880, %v4136, 0
    %v4172 = vsel %vm3880, %v4137, 0
    %v4175 = vsel %vm3880, %v4160, 0
    %v4178 = vsel %vm3880, %v4161, 0
    %v4181 = vsel %vm3880, %v4162, 0
    %v4184 = vsel %vm3880, %v4163, 0
    %v4187 = vsel %vm3880, %v4164, 0
    %v4190 = vsel %vm3880, %v4165, 0
    %v4193 = vsel %vm3880, %v4166, 0
    %v4196 = vsel %vm3880, %v4167, 0
    %4198 = vmatprep.subr.bf16.mxu0 0
    %4199 = vmatpush1.bf16.xpose.msra.mxu0 %v4175
    %4200 = vmatprep.subr.bf16.mxu0 0
    %4201 = vmatpush1.bf16.xpose.msra.mxu0 %v4178
    %4202 = vmatprep.subr.bf16.mxu0 0
    %4203 = vmatpush1.bf16.xpose.msra.mxu0 %v4181
    %4204 = vmatprep.subr.bf16.mxu0 0
    %4205 = vmatpush1.bf16.xpose.msra.mxu0 %v4184
    %4206 = vmatprep.subr.bf16.mxu0 0
    %4207 = vmatpush1.bf16.xpose.msra.mxu0 %v4187
    %4208 = vmatprep.subr.bf16.mxu0 0
    %4209 = vmatpush1.bf16.xpose.msra.mxu0 %v4190
    %4210 = vmatprep.subr.bf16.mxu0 0
    %4211 = vmatpush1.bf16.xpose.msra.mxu0 %v4193
    %4212 = vmatprep.subr.bf16.mxu0 0
    %4213 = vmatpush1.bf16.xpose.msra.mxu0 %v4196
    %4214 = vmatprep.subr.bf16.mxu0 0
    %4215 = vmatpush1.bf16.xpose.msra.mxu0 0
    %4216 = vmatprep.subr.bf16.mxu0 0
    %4217 = vmatpush1.bf16.xpose.msra.mxu0 0
    %4218 = vmatprep.subr.bf16.mxu0 0
    %4219 = vmatpush1.bf16.xpose.msra.mxu0 0
    %4220 = vmatprep.subr.bf16.mxu0 0
    %4221 = vmatpush1.bf16.xpose.msra.mxu0 0
    %4222 = vmatprep.subr.bf16.mxu0 0
    %4223 = vmatpush1.bf16.xpose.msra.mxu0 0
    %4224 = vmatprep.subr.bf16.mxu0 0
    %4225 = vmatpush1.bf16.xpose.msra.mxu0 0
    %4226 = vmatprep.subr.bf16.mxu0 0
    %4227 = vmatpush1.bf16.xpose.msra.mxu0 0
    %4228 = vmatprep.subr.bf16.mxu0 0
    %4229 = vmatpush1.bf16.xpose.msra.mxu0 0
    %4230 = vmatprep.mubr.bf16.mxu0 0
    %4231 = vmatmul.mubr.bf16.gmra.mrb[0].mxu0 %v4169
    %v4232 = vpop.f32.mrb[0].mxu0
    %v4233 = vadd.f32 0.0, %v4232
    %v4234 = vpop.f32.mrb[0].mxu0
    %v4235 = vpop.f32.mrb[0].mxu0
    %v4236 = vadd.f32 0.0, %v4235
    %v4237 = vpop.f32.mrb[0].mxu0
    %4238 = vmatprep.mubr.bf16.mxu0 0
    %4239 = vmatmul.mubr.bf16.gmra.mrb[0].mxu0 %v4172
    %v4240 = vpop.f32.mrb[0].mxu0
    %v4241 = vadd.f32 0.0, %v4240
    %v4242 = vpop.f32.mrb[0].mxu0
    %v4243 = vpop.f32.mrb[0].mxu0
    %v4244 = vpop.f32.mrb[0].mxu0
    %4245 = vdwg.mxu0
    %v4246 = vadd.f32 %v4048, %v4233
    %v4247 = vadd.f32 %v4051, %v4236
    %v4248 = vadd.f32 %v4056, %v4241
    %vm4249 = vsmask.f32 2304
    %vm4250 = vsmask.f32 6416
    %vm4251 = vmor %vm4249, %vm4250
    %v4252 = vrot.slane %v3617, 5
    %v4253 = vrot.slane %v3620, 6
    %v4254 = vor.u32 %v4252, %v4253
    %v4255 = vrot.slane %v4254, 4
    %v4256 = vshrl.u32 %v3582, 16
    %v4258 = vrot.slane %v4256, 5
    %v4259 = vrot.slane %v3626, 6
    %v4260 = vor.u32 %v4258, %v4259
    %v4261 = vsel %vm4251, %v4255, %v4260
    %v4262 = vrot.slane %v3631, 5
    %v4263 = vrot.slane %v3634, 6
    %v4264 = vor.u32 %v4262, %v4263
    %v4265 = vrot.slane %v4264, 4
    %v4266 = vshrl.u32 %v3584, 16
    %v4268 = vrot.slane %v4266, 5
    %v4269 = vrot.slane %v3640, 6
    %v4270 = vor.u32 %v4268, %v4269
    %v4271 = vsel %vm4251, %v4265, %v4270
    %v4272 = vrot.slane %v3645, 5
    %v4273 = vrot.slane %v3648, 6
    %v4274 = vor.u32 %v4272, %v4273
    %v4275 = vrot.slane %v4274, 4
    %v4276 = vshrl.u32 %v3586, 16
    %v4278 = vrot.slane %v4276, 5
    %v4279 = vrot.slane %v3654, 6
    %v4280 = vor.u32 %v4278, %v4279
    %v4281 = vsel %vm4251, %v4275, %v4280
    %v4282 = vrot.slane %v3659, 5
    %v4283 = vrot.slane %v3662, 6
    %v4284 = vor.u32 %v4282, %v4283
    %v4285 = vrot.slane %v4284, 4
    %v4286 = vshrl.u32 %v3588, 16
    %v4288 = vrot.slane %v4286, 5
    %v4289 = vrot.slane %v3668, 6
    %v4290 = vor.u32 %v4288, %v4289
    %v4291 = vsel %vm4251, %v4285, %v4290
    %v4292 = vrot.slane %v3673, 5
    %v4293 = vrot.slane %v3676, 6
    %v4294 = vor.u32 %v4292, %v4293
    %v4295 = vrot.slane %v4294, 4
    %v4296 = vshrl.u32 %v3590, 16
    %v4298 = vrot.slane %v4296, 5
    %v4299 = vrot.slane %v3682, 6
    %v4300 = vor.u32 %v4298, %v4299
    %v4301 = vsel %vm4251, %v4295, %v4300
    %v4302 = vrot.slane %v3687, 5
    %v4303 = vrot.slane %v3690, 6
    %v4304 = vor.u32 %v4302, %v4303
    %v4305 = vrot.slane %v4304, 4
    %v4306 = vshrl.u32 %v3592, 16
    %v4308 = vrot.slane %v4306, 5
    %v4309 = vrot.slane %v3696, 6
    %v4310 = vor.u32 %v4308, %v4309
    %v4311 = vsel %vm4251, %v4305, %v4310
    %v4312 = vrot.slane %v3701, 5
    %v4313 = vrot.slane %v3704, 6
    %v4314 = vor.u32 %v4312, %v4313
    %v4315 = vrot.slane %v4314, 4
    %v4316 = vshrl.u32 %v3594, 16
    %v4318 = vrot.slane %v4316, 5
    %v4319 = vrot.slane %v3710, 6
    %v4320 = vor.u32 %v4318, %v4319
    %v4321 = vsel %vm4251, %v4315, %v4320
    %v4322 = vrot.slane %v3715, 5
    %v4323 = vrot.slane %v3718, 6
    %v4324 = vor.u32 %v4322, %v4323
    %v4325 = vrot.slane %v4324, 4
    %v4326 = vshrl.u32 %v3596, 16
    %v4328 = vrot.slane %v4326, 5
    %v4329 = vrot.slane %v3724, 6
    %v4330 = vor.u32 %v4328, %v4329
    %v4331 = vsel %vm4251, %v4325, %v4330
    %v4332 = vrot.slane %v3729, 5
    %v4333 = vrot.slane %v3732, 6
    %v4334 = vor.u32 %v4332, %v4333
    %v4335 = vrot.slane %v4334, 4
    %v4336 = vshrl.u32 %v3598, 16
    %v4338 = vrot.slane %v4336, 5
    %v4339 = vrot.slane %v3738, 6
    %v4340 = vor.u32 %v4338, %v4339
    %v4341 = vsel %vm4251, %v4335, %v4340
    %v4342 = vrot.slane %v3743, 5
    %v4343 = vrot.slane %v3746, 6
    %v4344 = vor.u32 %v4342, %v4343
    %v4345 = vrot.slane %v4344, 4
    %v4346 = vshrl.u32 %v3600, 16
    %v4348 = vrot.slane %v4346, 5
    %v4349 = vrot.slane %v3752, 6
    %v4350 = vor.u32 %v4348, %v4349
    %v4351 = vsel %vm4251, %v4345, %v4350
    %v4352 = vrot.slane %v3757, 5
    %v4353 = vrot.slane %v3760, 6
    %v4354 = vor.u32 %v4352, %v4353
    %v4355 = vrot.slane %v4354, 4
    %v4356 = vshrl.u32 %v3602, 16
    %v4358 = vrot.slane %v4356, 5
    %v4359 = vrot.slane %v3766, 6
    %v4360 = vor.u32 %v4358, %v4359
    %v4361 = vsel %vm4251, %v4355, %v4360
    %v4362 = vrot.slane %v3771, 5
    %v4363 = vrot.slane %v3774, 6
    %v4364 = vor.u32 %v4362, %v4363
    %v4365 = vrot.slane %v4364, 4
    %v4366 = vshrl.u32 %v3604, 16
    %v4368 = vrot.slane %v4366, 5
    %v4369 = vrot.slane %v3780, 6
    %v4370 = vor.u32 %v4368, %v4369
    %v4371 = vsel %vm4251, %v4365, %v4370
    %v4372 = vrot.slane %v3785, 5
    %v4373 = vrot.slane %v3788, 6
    %v4374 = vor.u32 %v4372, %v4373
    %v4375 = vrot.slane %v4374, 4
    %v4376 = vshrl.u32 %v3606, 16
    %v4378 = vrot.slane %v4376, 5
    %v4379 = vrot.slane %v3794, 6
    %v4380 = vor.u32 %v4378, %v4379
    %v4381 = vsel %vm4251, %v4375, %v4380
    %v4382 = vrot.slane %v3799, 5
    %v4383 = vrot.slane %v3802, 6
    %v4384 = vor.u32 %v4382, %v4383
    %v4385 = vrot.slane %v4384, 4
    %v4386 = vshrl.u32 %v3608, 16
    %v4388 = vrot.slane %v4386, 5
    %v4389 = vrot.slane %v3808, 6
    %v4390 = vor.u32 %v4388, %v4389
    %v4391 = vsel %vm4251, %v4385, %v4390
    %v4392 = vrot.slane %v3813, 5
    %v4393 = vrot.slane %v3816, 6
    %v4394 = vor.u32 %v4392, %v4393
    %v4395 = vrot.slane %v4394, 4
    %v4396 = vshrl.u32 %v3610, 16
    %v4398 = vrot.slane %v4396, 5
    %v4399 = vrot.slane %v3822, 6
    %v4400 = vor.u32 %v4398, %v4399
    %v4401 = vsel %vm4251, %v4395, %v4400
    %v4402 = vrot.slane %v3827, 5
    %v4403 = vrot.slane %v3830, 6
    %v4404 = vor.u32 %v4402, %v4403
    %v4405 = vrot.slane %v4404, 4
    %v4406 = vshrl.u32 %v3612, 16
    %v4408 = vrot.slane %v4406, 5
    %v4409 = vrot.slane %v3836, 6
    %v4410 = vor.u32 %v4408, %v4409
    %v4411 = vsel %vm4251, %v4405, %v4410
    %4412 = vxpose.xlu0.c.b16.start [1/8] %v3489, 128
    %4413 = vxpose.xlu0.c.b16.cont [2/8] %v3490, 128
    %4414 = vxpose.xlu0.c.b16.cont [3/8] 0, 128
    %4415 = vxpose.xlu0.c.b16.cont [4/8] 0, 128
    %4416 = vxpose.xlu0.c.b16.cont [5/8] 0, 128
    %4417 = vxpose.xlu0.c.b16.cont [6/8] 0, 128
    %4418 = vxpose.xlu0.c.b16.cont [7/8] 0, 128
    %4419 = vxpose.xlu0.c.b16.end [8/8] 0, 128
    %v4420 = vpop.trf.xlu0
    %v4421 = vpop.trf.xlu0
    %v4422 = vpop.trf.xlu0
    %v4423 = vpop.trf.xlu0
    %v4424 = vpop.trf.xlu0
    %v4425 = vpop.trf.xlu0
    %v4426 = vpop.trf.xlu0
    %v4427 = vpop.trf.xlu0
    %v4428 = vunpack.c.l.b16 %v4261
    %v4429 = vunpack.c.l.b16 %v4271
    %v4430 = vunpack.c.l.b16 %v4281
    %v4431 = vunpack.c.l.b16 %v4291
    %v4432 = vunpack.c.l.b16 %v4301
    %v4433 = vunpack.c.l.b16 %v4311
    %v4434 = vunpack.c.l.b16 %v4321
    %v4435 = vunpack.c.l.b16 %v4331
    %v4436 = vunpack.c.l.b16 %v4341
    %v4437 = vunpack.c.l.b16 %v4351
    %v4438 = vunpack.c.l.b16 %v4361
    %v4439 = vunpack.c.l.b16 %v4371
    %v4440 = vunpack.c.l.b16 %v4381
    %v4441 = vunpack.c.l.b16 %v4391
    %v4442 = vunpack.c.l.b16 %v4401
    %v4443 = vunpack.c.l.b16 %v4411
    %v4444 = vpack.c.b16 %v4429, %v4428
    %v4445 = vpack.c.b16 %v4431, %v4430
    %v4446 = vpack.c.b16 %v4433, %v4432
    %v4447 = vpack.c.b16 %v4435, %v4434
    %v4448 = vpack.c.b16 %v4437, %v4436
    %v4449 = vpack.c.b16 %v4439, %v4438
    %v4450 = vpack.c.b16 %v4441, %v4440
    %v4451 = vpack.c.b16 %v4443, %v4442
    %v4453 = vsel %vm3880, %v4420, 0
    %v4456 = vsel %vm3880, %v4421, 0
    %v4459 = vsel %vm3880, %v4444, 0
    %v4462 = vsel %vm3880, %v4445, 0
    %v4465 = vsel %vm3880, %v4446, 0
    %v4468 = vsel %vm3880, %v4447, 0
    %v4471 = vsel %vm3880, %v4448, 0
    %v4474 = vsel %vm3880, %v4449, 0
    %v4477 = vsel %vm3880, %v4450, 0
    %v4480 = vsel %vm3880, %v4451, 0
    %4482 = vmatprep.subr.bf16.mxu0 0
    %4483 = vmatpush1.bf16.xpose.msra.mxu0 %v4459
    %4484 = vmatprep.subr.bf16.mxu0 0
    %4485 = vmatpush1.bf16.xpose.msra.mxu0 %v4462
    %4486 = vmatprep.subr.bf16.mxu0 0
    %4487 = vmatpush1.bf16.xpose.msra.mxu0 %v4465
    %4488 = vmatprep.subr.bf16.mxu0 0
    %4489 = vmatpush1.bf16.xpose.msra.mxu0 %v4468
    %4490 = vmatprep.subr.bf16.mxu0 0
    %4491 = vmatpush1.bf16.xpose.msra.mxu0 %v4471
    %4492 = vmatprep.subr.bf16.mxu0 0
    %4493 = vmatpush1.bf16.xpose.msra.mxu0 %v4474
    %4494 = vmatprep.subr.bf16.mxu0 0
    %4495 = vmatpush1.bf16.xpose.msra.mxu0 %v4477
    %4496 = vmatprep.subr.bf16.mxu0 0
    %4497 = vmatpush1.bf16.xpose.msra.mxu0 %v4480
    %4498 = vmatprep.subr.bf16.mxu0 0
    %4499 = vmatpush1.bf16.xpose.msra.mxu0 0
    %4500 = vmatprep.subr.bf16.mxu0 0
    %4501 = vmatpush1.bf16.xpose.msra.mxu0 0
    %4502 = vmatprep.subr.bf16.mxu0 0
    %4503 = vmatpush1.bf16.xpose.msra.mxu0 0
    %4504 = vmatprep.subr.bf16.mxu0 0
    %4505 = vmatpush1.bf16.xpose.msra.mxu0 0
    %4506 = vmatprep.subr.bf16.mxu0 0
    %4507 = vmatpush1.bf16.xpose.msra.mxu0 0
    %4508 = vmatprep.subr.bf16.mxu0 0
    %4509 = vmatpush1.bf16.xpose.msra.mxu0 0
    %4510 = vmatprep.subr.bf16.mxu0 0
    %4511 = vmatpush1.bf16.xpose.msra.mxu0 0
    %4512 = vmatprep.subr.bf16.mxu0 0
    %4513 = vmatpush1.bf16.xpose.msra.mxu0 0
    %4514 = vmatprep.mubr.bf16.mxu0 0
    %4515 = vmatmul.mubr.bf16.gmra.mrb[0].mxu0 %v4453
    %v4516 = vpop.f32.mrb[0].mxu0
    %v4517 = vadd.f32 0.0, %v4516
    %v4518 = vpop.f32.mrb[0].mxu0
    %v4519 = vpop.f32.mrb[0].mxu0
    %v4520 = vadd.f32 0.0, %v4519
    %v4521 = vpop.f32.mrb[0].mxu0
    %4522 = vmatprep.mubr.bf16.mxu0 0
    %4523 = vmatmul.mubr.bf16.gmra.mrb[0].mxu0 %v4456
    %v4524 = vpop.f32.mrb[0].mxu0
    %v4525 = vadd.f32 0.0, %v4524
    %v4526 = vpop.f32.mrb[0].mxu0
    %v4527 = vpop.f32.mrb[0].mxu0
    %v4528 = vpop.f32.mrb[0].mxu0
    %4529 = vdwg.mxu0
    %v4530 = vadd.f32 %v4246, %v4517
    %v4531 = vadd.f32 %v4247, %v4520
    %v4532 = vadd.f32 %v4248, %v4525
    %vm4533 = vcmask 1041408
    %vm4534 = vcmask 1045508
    %vm4535 = vmor %vm4533, %vm4534
    %v4536 = vrot.slane %v3581, 6
    %v4537 = vrot.slane %v4536, 4
    %v4538 = vrot.slane %v3582, 6
    %v4539 = vsel %vm4535, %v4537, %v4538
    %v4540 = vrot.slane %v3583, 6
    %v4541 = vrot.slane %v4540, 4
    %v4542 = vrot.slane %v3584, 6
    %v4543 = vsel %vm4535, %v4541, %v4542
    %v4544 = vrot.slane %v3585, 6
    %v4545 = vrot.slane %v4544, 4
    %v4546 = vrot.slane %v3586, 6
    %v4547 = vsel %vm4535, %v4545, %v4546
    %v4548 = vrot.slane %v3587, 6
    %v4549 = vrot.slane %v4548, 4
    %v4550 = vrot.slane %v3588, 6
    %v4551 = vsel %vm4535, %v4549, %v4550
    %v4552 = vrot.slane %v3589, 6
    %v4553 = vrot.slane %v4552, 4
    %v4554 = vrot.slane %v3590, 6
    %v4555 = vsel %vm4535, %v4553, %v4554
    %v4556 = vrot.slane %v3591, 6
    %v4557 = vrot.slane %v4556, 4
    %v4558 = vrot.slane %v3592, 6
    %v4559 = vsel %vm4535, %v4557, %v4558
    %v4560 = vrot.slane %v3593, 6
    %v4561 = vrot.slane %v4560, 4
    %v4562 = vrot.slane %v3594, 6
    %v4563 = vsel %vm4535, %v4561, %v4562
    %v4564 = vrot.slane %v3595, 6
    %v4565 = vrot.slane %v4564, 4
    %v4566 = vrot.slane %v3596, 6
    %v4567 = vsel %vm4535, %v4565, %v4566
    %v4568 = vrot.slane %v3597, 6
    %v4569 = vrot.slane %v4568, 4
    %v4570 = vrot.slane %v3598, 6
    %v4571 = vsel %vm4535, %v4569, %v4570
    %v4572 = vrot.slane %v3599, 6
    %v4573 = vrot.slane %v4572, 4
    %v4574 = vrot.slane %v3600, 6
    %v4575 = vsel %vm4535, %v4573, %v4574
    %v4576 = vrot.slane %v3601, 6
    %v4577 = vrot.slane %v4576, 4
    %v4578 = vrot.slane %v3602, 6
    %v4579 = vsel %vm4535, %v4577, %v4578
    %v4580 = vrot.slane %v3603, 6
    %v4581 = vrot.slane %v4580, 4
    %v4582 = vrot.slane %v3604, 6
    %v4583 = vsel %vm4535, %v4581, %v4582
    %v4584 = vrot.slane %v3605, 6
    %v4585 = vrot.slane %v4584, 4
    %v4586 = vrot.slane %v3606, 6
    %v4587 = vsel %vm4535, %v4585, %v4586
    %v4588 = vrot.slane %v3607, 6
    %v4589 = vrot.slane %v4588, 4
    %v4590 = vrot.slane %v3608, 6
    %v4591 = vsel %vm4535, %v4589, %v4590
    %v4592 = vrot.slane %v3609, 6
    %v4593 = vrot.slane %v4592, 4
    %v4594 = vrot.slane %v3610, 6
    %v4595 = vsel %vm4535, %v4593, %v4594
    %v4596 = vrot.slane %v3611, 6
    %v4597 = vrot.slane %v4596, 4
    %v4598 = vrot.slane %v3612, 6
    %v4599 = vsel %vm4535, %v4597, %v4598
    %4600 = vxpose.xlu0.c.b16.start [1/8] %v3491, 128
    %4601 = vxpose.xlu0.c.b16.cont [2/8] %v3492, 128
    %4602 = vxpose.xlu0.c.b16.cont [3/8] 0, 128
    %4603 = vxpose.xlu0.c.b16.cont [4/8] 0, 128
    %4604 = vxpose.xlu0.c.b16.cont [5/8] 0, 128
    %4605 = vxpose.xlu0.c.b16.cont [6/8] 0, 128
    %4606 = vxpose.xlu0.c.b16.cont [7/8] 0, 128
    %4607 = vxpose.xlu0.c.b16.end [8/8] 0, 128
    %v4608 = vpop.trf.xlu0
    %v4609 = vpop.trf.xlu0
    %v4610 = vpop.trf.xlu0
    %v4611 = vpop.trf.xlu0
    %v4612 = vpop.trf.xlu0
    %v4613 = vpop.trf.xlu0
    %v4614 = vpop.trf.xlu0
    %v4615 = vpop.trf.xlu0
    %v4616 = vunpack.c.l.b16 %v4539
    %v4617 = vunpack.c.l.b16 %v4543
    %v4618 = vunpack.c.l.b16 %v4547
    %v4619 = vunpack.c.l.b16 %v4551
    %v4620 = vunpack.c.l.b16 %v4555
    %v4621 = vunpack.c.l.b16 %v4559
    %v4622 = vunpack.c.l.b16 %v4563
    %v4623 = vunpack.c.l.b16 %v4567
    %v4624 = vunpack.c.l.b16 %v4571
    %v4625 = vunpack.c.l.b16 %v4575
    %v4626 = vunpack.c.l.b16 %v4579
    %v4627 = vunpack.c.l.b16 %v4583
    %v4628 = vunpack.c.l.b16 %v4587
    %v4629 = vunpack.c.l.b16 %v4591
    %v4630 = vunpack.c.l.b16 %v4595
    %v4631 = vunpack.c.l.b16 %v4599
    %v4632 = vpack.c.b16 %v4617, %v4616
    %v4633 = vpack.c.b16 %v4619, %v4618
    %v4634 = vpack.c.b16 %v4621, %v4620
    %v4635 = vpack.c.b16 %v4623, %v4622
    %v4636 = vpack.c.b16 %v4625, %v4624
    %v4637 = vpack.c.b16 %v4627, %v4626
    %v4638 = vpack.c.b16 %v4629, %v4628
    %v4639 = vpack.c.b16 %v4631, %v4630
    %v4641 = vsel %vm3880, %v4608, 0
    %v4644 = vsel %vm3880, %v4609, 0
    %v4647 = vsel %vm3880, %v4632, 0
    %v4650 = vsel %vm3880, %v4633, 0
    %v4653 = vsel %vm3880, %v4634, 0
    %v4656 = vsel %vm3880, %v4635, 0
    %v4659 = vsel %vm3880, %v4636, 0
    %v4662 = vsel %vm3880, %v4637, 0
    %v4665 = vsel %vm3880, %v4638, 0
    %v4668 = vsel %vm3880, %v4639, 0
    %4670 = vmatprep.subr.bf16.mxu0 0
    %4671 = vmatpush1.bf16.xpose.msra.mxu0 %v4647
    %4672 = vmatprep.subr.bf16.mxu0 0
    %4673 = vmatpush1.bf16.xpose.msra.mxu0 %v4650
    %4674 = vmatprep.subr.bf16.mxu0 0
    %4675 = vmatpush1.bf16.xpose.msra.mxu0 %v4653
    %4676 = vmatprep.subr.bf16.mxu0 0
    %4677 = vmatpush1.bf16.xpose.msra.mxu0 %v4656
    %4678 = vmatprep.subr.bf16.mxu0 0
    %4679 = vmatpush1.bf16.xpose.msra.mxu0 %v4659
    %4680 = vmatprep.subr.bf16.mxu0 0
    %4681 = vmatpush1.bf16.xpose.msra.mxu0 %v4662
    %4682 = vmatprep.subr.bf16.mxu0 0
    %4683 = vmatpush1.bf16.xpose.msra.mxu0 %v4665
    %4684 = vmatprep.subr.bf16.mxu0 0
    %4685 = vmatpush1.bf16.xpose.msra.mxu0 %v4668
    %4686 = vmatprep.subr.bf16.mxu0 0
    %4687 = vmatpush1.bf16.xpose.msra.mxu0 0
    %4688 = vmatprep.subr.bf16.mxu0 0
    %4689 = vmatpush1.bf16.xpose.msra.mxu0 0
    %4690 = vmatprep.subr.bf16.mxu0 0
    %4691 = vmatpush1.bf16.xpose.msra.mxu0 0
    %4692 = vmatprep.subr.bf16.mxu0 0
    %4693 = vmatpush1.bf16.xpose.msra.mxu0 0
    %4694 = vmatprep.subr.bf16.mxu0 0
    %4695 = vmatpush1.bf16.xpose.msra.mxu0 0
    %4696 = vmatprep.subr.bf16.mxu0 0
    %4697 = vmatpush1.bf16.xpose.msra.mxu0 0
    %4698 = vmatprep.subr.bf16.mxu0 0
    %4699 = vmatpush1.bf16.xpose.msra.mxu0 0
    %4700 = vmatprep.subr.bf16.mxu0 0
    %4701 = vmatpush1.bf16.xpose.msra.mxu0 0
    %4702 = vmatprep.mubr.bf16.mxu0 0
    %4703 = vmatmul.mubr.bf16.gmra.mrb[0].mxu0 %v4641
    %v4704 = vpop.f32.mrb[0].mxu0
    %v4705 = vadd.f32 0.0, %v4704
    %v4706 = vpop.f32.mrb[0].mxu0
    %v4707 = vpop.f32.mrb[0].mxu0
    %v4708 = vadd.f32 0.0, %v4707
    %v4709 = vpop.f32.mrb[0].mxu0
    %4710 = vmatprep.mubr.bf16.mxu0 0
    %4711 = vmatmul.mubr.bf16.gmra.mrb[0].mxu0 %v4644
    %v4712 = vpop.f32.mrb[0].mxu0
    %v4713 = vadd.f32 0.0, %v4712
    %v4714 = vpop.f32.mrb[0].mxu0
    %v4715 = vpop.f32.mrb[0].mxu0
    %v4716 = vpop.f32.mrb[0].mxu0
    %4717 = vdwg.mxu0
    %v4718 = vadd.f32 %v4530, %v4705
    %v4719 = vadd.f32 %v4531, %v4708
    %v4720 = vadd.f32 %v4532, %v4713
    %4721 = vxpose.xlu0.c.b16.start [1/8] %v3493, 128
    %4722 = vxpose.xlu0.c.b16.cont [2/8] %v3494, 128
    %4723 = vxpose.xlu0.c.b16.cont [3/8] 0, 128
    %4724 = vxpose.xlu0.c.b16.cont [4/8] 0, 128
    %4725 = vxpose.xlu0.c.b16.cont [5/8] 0, 128
    %4726 = vxpose.xlu0.c.b16.cont [6/8] 0, 128
    %4727 = vxpose.xlu0.c.b16.cont [7/8] 0, 128
    %4728 = vxpose.xlu0.c.b16.end [8/8] 0, 128
    %v4729 = vpop.trf.xlu0
    %v4730 = vpop.trf.xlu0
    %v4731 = vpop.trf.xlu0
    %v4732 = vpop.trf.xlu0
    %v4733 = vpop.trf.xlu0
    %v4734 = vpop.trf.xlu0
    %v4735 = vpop.trf.xlu0
    %v4736 = vpop.trf.xlu0
    %v4739 = vunpack.c.l.b16 %v3392
    %v4740 = vunpack.c.l.b16 %v3404
    %v4741 = vpack.c.b16 %v3553, %v3551
    %v4742 = vpack.c.b16 %v3557, %v3555
    %v4743 = vpack.c.b16 %v3561, %v3559
    %v4744 = vpack.c.b16 %v4739, %v3563
    %v4745 = vpack.c.b16 %v3569, %v3567
    %v4746 = vpack.c.b16 %v3573, %v3571
    %v4747 = vpack.c.b16 %v3577, %v3575
    %v4748 = vpack.c.b16 %v4740, %v3579
    %v4750 = vsel %vm3880, %v4729, 0
    %v4753 = vsel %vm3880, %v4730, 0
    %v4756 = vsel %vm3880, %v4741, 0
    %v4759 = vsel %vm3880, %v4742, 0
    %v4762 = vsel %vm3880, %v4743, 0
    %v4765 = vsel %vm3880, %v4744, 0
    %v4768 = vsel %vm3880, %v4745, 0
    %v4771 = vsel %vm3880, %v4746, 0
    %v4774 = vsel %vm3880, %v4747, 0
    %v4777 = vsel %vm3880, %v4748, 0
    %4779 = vmatprep.subr.bf16.mxu0 0
    %4780 = vmatpush1.bf16.xpose.msra.mxu0 %v4756
    %4781 = vmatprep.subr.bf16.mxu0 0
    %4782 = vmatpush1.bf16.xpose.msra.mxu0 %v4759
    %4783 = vmatprep.subr.bf16.mxu0 0
    %4784 = vmatpush1.bf16.xpose.msra.mxu0 %v4762
    %4785 = vmatprep.subr.bf16.mxu0 0
    %4786 = vmatpush1.bf16.xpose.msra.mxu0 %v4765
    %4787 = vmatprep.subr.bf16.mxu0 0
    %4788 = vmatpush1.bf16.xpose.msra.mxu0 %v4768
    %4789 = vmatprep.subr.bf16.mxu0 0
    %4790 = vmatpush1.bf16.xpose.msra.mxu0 %v4771
    %4791 = vmatprep.subr.bf16.mxu0 0
    %4792 = vmatpush1.bf16.xpose.msra.mxu0 %v4774
    %4793 = vmatprep.subr.bf16.mxu0 0
    %4794 = vmatpush1.bf16.xpose.msra.mxu0 %v4777
    %4795 = vmatprep.subr.bf16.mxu0 0
    %4796 = vmatpush1.bf16.xpose.msra.mxu0 0
    %4797 = vmatprep.subr.bf16.mxu0 0
    %4798 = vmatpush1.bf16.xpose.msra.mxu0 0
    %4799 = vmatprep.subr.bf16.mxu0 0
    %4800 = vmatpush1.bf16.xpose.msra.mxu0 0
    %4801 = vmatprep.subr.bf16.mxu0 0
    %4802 = vmatpush1.bf16.xpose.msra.mxu0 0
    %4803 = vmatprep.subr.bf16.mxu0 0
    %4804 = vmatpush1.bf16.xpose.msra.mxu0 0
    %4805 = vmatprep.subr.bf16.mxu0 0
    %4806 = vmatpush1.bf16.xpose.msra.mxu0 0
    %4807 = vmatprep.subr.bf16.mxu0 0
    %4808 = vmatpush1.bf16.xpose.msra.mxu0 0
    %4809 = vmatprep.subr.bf16.mxu0 0
    %4810 = vmatpush1.bf16.xpose.msra.mxu0 0
    %4811 = vmatprep.mubr.bf16.mxu0 0
    %4812 = vmatmul.mubr.bf16.gmra.mrb[0].mxu0 %v4750
    %v4813 = vpop.f32.mrb[0].mxu0
    %v4814 = vadd.f32 0.0, %v4813
    %v4815 = vpop.f32.mrb[0].mxu0
    %v4816 = vpop.f32.mrb[0].mxu0
    %v4817 = vadd.f32 0.0, %v4816
    %v4818 = vpop.f32.mrb[0].mxu0
    %4819 = vmatprep.mubr.bf16.mxu0 0
    %4820 = vmatmul.mubr.bf16.gmra.mrb[0].mxu0 %v4753
    %v4821 = vpop.f32.mrb[0].mxu0
    %v4822 = vadd.f32 0.0, %v4821
    %v4823 = vpop.f32.mrb[0].mxu0
    %v4824 = vpop.f32.mrb[0].mxu0
    %v4825 = vpop.f32.mrb[0].mxu0
    %4826 = vdwg.mxu0
    %v4827 = vadd.f32 %v4718, %v4814
    %v4828 = vadd.f32 %v4719, %v4817
    %v4829 = vadd.f32 %v4720, %v4822
    %v4830 = vunpack.c.h.b16 %v3392
    %v4831 = vunpack.c.h.b16 %v3404
    %v4832 = vpack.c.b16 %v4739, %v4739
    %v4833 = vpack.c.b16 %v4830, %v4830
    %v4834 = vpack.c.b16 %v4740, %v4740
    %v4835 = vpack.c.b16 %v4831, %v4831
    %v4837 = vshrl.u32 %v4832, 16
    %v4839 = vrot.slane %v4837, 4
    %v4840 = vshll.u32 %v4832, 16
    %v4842 = vrot.slane %v4840, 5
    %v4843 = vor.u32 %v4839, %v4842
    %v4844 = vrot.slane %v4843, 4
    %v4846 = vshll.u32 %v4833, 16
    %v4848 = vrot.slane %v4846, 5
    %v4849 = vsel %vm3615, %v4844, %v4848
    %v4851 = vshrl.u32 %v4834, 16
    %v4853 = vrot.slane %v4851, 4
    %v4854 = vshll.u32 %v4834, 16
    %v4856 = vrot.slane %v4854, 5
    %v4857 = vor.u32 %v4853, %v4856
    %v4858 = vrot.slane %v4857, 4
    %v4860 = vshll.u32 %v4835, 16
    %v4862 = vrot.slane %v4860, 5
    %v4863 = vsel %vm3615, %v4858, %v4862
    %4864 = vxpose.xlu0.c.b16.start [1/8] %v3495, 128
    %4865 = vxpose.xlu0.c.b16.cont [2/8] %v3496, 128
    %4866 = vxpose.xlu0.c.b16.cont [3/8] 0, 128
    %4867 = vxpose.xlu0.c.b16.cont [4/8] 0, 128
    %4868 = vxpose.xlu0.c.b16.cont [5/8] 0, 128
    %4869 = vxpose.xlu0.c.b16.cont [6/8] 0, 128
    %4870 = vxpose.xlu0.c.b16.cont [7/8] 0, 128
    %4871 = vxpose.xlu0.c.b16.end [8/8] 0, 128
    %v4872 = vpop.trf.xlu0
    %v4873 = vpop.trf.xlu0
    %v4874 = vpop.trf.xlu0
    %v4875 = vpop.trf.xlu0
    %v4876 = vpop.trf.xlu0
    %v4877 = vpop.trf.xlu0
    %v4878 = vpop.trf.xlu0
    %v4879 = vpop.trf.xlu0
    %v4880 = vunpack.c.l.b16 %v4849
    %v4881 = vunpack.c.l.b16 %v4863
    %v4882 = vpack.c.b16 %v3858, %v3857
    %v4883 = vpack.c.b16 %v3860, %v3859
    %v4884 = vpack.c.b16 %v3862, %v3861
    %v4885 = vpack.c.b16 %v4880, %v3863
    %v4886 = vpack.c.b16 %v3866, %v3865
    %v4887 = vpack.c.b16 %v3868, %v3867
    %v4888 = vpack.c.b16 %v3870, %v3869
    %v4889 = vpack.c.b16 %v4881, %v3871
    %v4891 = vsel %vm3880, %v4872, 0
    %v4894 = vsel %vm3880, %v4873, 0
    %v4897 = vsel %vm3880, %v4882, 0
    %v4900 = vsel %vm3880, %v4883, 0
    %v4903 = vsel %vm3880, %v4884, 0
    %v4906 = vsel %vm3880, %v4885, 0
    %v4909 = vsel %vm3880, %v4886, 0
    %v4912 = vsel %vm3880, %v4887, 0
    %v4915 = vsel %vm3880, %v4888, 0
    %v4918 = vsel %vm3880, %v4889, 0
    %4920 = vmatprep.subr.bf16.mxu0 0
    %4921 = vmatpush1.bf16.xpose.msra.mxu0 %v4897
    %4922 = vmatprep.subr.bf16.mxu0 0
    %4923 = vmatpush1.bf16.xpose.msra.mxu0 %v4900
    %4924 = vmatprep.subr.bf16.mxu0 0
    %4925 = vmatpush1.bf16.xpose.msra.mxu0 %v4903
    %4926 = vmatprep.subr.bf16.mxu0 0
    %4927 = vmatpush1.bf16.xpose.msra.mxu0 %v4906
    %4928 = vmatprep.subr.bf16.mxu0 0
    %4929 = vmatpush1.bf16.xpose.msra.mxu0 %v4909
    %4930 = vmatprep.subr.bf16.mxu0 0
    %4931 = vmatpush1.bf16.xpose.msra.mxu0 %v4912
    %4932 = vmatprep.subr.bf16.mxu0 0
    %4933 = vmatpush1.bf16.xpose.msra.mxu0 %v4915
    %4934 = vmatprep.subr.bf16.mxu0 0
    %4935 = vmatpush1.bf16.xpose.msra.mxu0 %v4918
    %4936 = vmatprep.subr.bf16.mxu0 0
    %4937 = vmatpush1.bf16.xpose.msra.mxu0 0
    %4938 = vmatprep.subr.bf16.mxu0 0
    %4939 = vmatpush1.bf16.xpose.msra.mxu0 0
    %4940 = vmatprep.subr.bf16.mxu0 0
    %4941 = vmatpush1.bf16.xpose.msra.mxu0 0
    %4942 = vmatprep.subr.bf16.mxu0 0
    %4943 = vmatpush1.bf16.xpose.msra.mxu0 0
    %4944 = vmatprep.subr.bf16.mxu0 0
    %4945 = vmatpush1.bf16.xpose.msra.mxu0 0
    %4946 = vmatprep.subr.bf16.mxu0 0
    %4947 = vmatpush1.bf16.xpose.msra.mxu0 0
    %4948 = vmatprep.subr.bf16.mxu0 0
    %4949 = vmatpush1.bf16.xpose.msra.mxu0 0
    %4950 = vmatprep.subr.bf16.mxu0 0
    %4951 = vmatpush1.bf16.xpose.msra.mxu0 0
    %4952 = vmatprep.mubr.bf16.mxu0 0
    %4953 = vmatmul.mubr.bf16.gmra.mrb[0].mxu0 %v4891
    %v4954 = vpop.f32.mrb[0].mxu0
    %v4955 = vadd.f32 0.0, %v4954
    %v4956 = vpop.f32.mrb[0].mxu0
    %v4957 = vpop.f32.mrb[0].mxu0
    %v4958 = vadd.f32 0.0, %v4957
    %v4959 = vpop.f32.mrb[0].mxu0
    %4960 = vmatprep.mubr.bf16.mxu0 0
    %4961 = vmatmul.mubr.bf16.gmra.mrb[0].mxu0 %v4894
    %v4962 = vpop.f32.mrb[0].mxu0
    %v4963 = vadd.f32 0.0, %v4962
    %v4964 = vpop.f32.mrb[0].mxu0
    %v4965 = vpop.f32.mrb[0].mxu0
    %v4966 = vpop.f32.mrb[0].mxu0
    %4967 = vdwg.mxu0
    %v4968 = vadd.f32 %v4827, %v4955
    %v4969 = vadd.f32 %v4828, %v4958
    %v4970 = vadd.f32 %v4829, %v4963
    %v4971 = vrot.slane %v4832, 5
    %v4972 = vrot.slane %v4971, 4
    %v4973 = vrot.slane %v4833, 5
    %v4974 = vsel %vm4063, %v4972, %v4973
    %v4975 = vrot.slane %v4834, 5
    %v4976 = vrot.slane %v4975, 4
    %v4977 = vrot.slane %v4835, 5
    %v4978 = vsel %vm4063, %v4976, %v4977
    %4979 = vxpose.xlu0.c.b16.start [1/8] %v3497, 128
    %4980 = vxpose.xlu0.c.b16.cont [2/8] %v3498, 128
    %4981 = vxpose.xlu0.c.b16.cont [3/8] 0, 128
    %4982 = vxpose.xlu0.c.b16.cont [4/8] 0, 128
    %4983 = vxpose.xlu0.c.b16.cont [5/8] 0, 128
    %4984 = vxpose.xlu0.c.b16.cont [6/8] 0, 128
    %4985 = vxpose.xlu0.c.b16.cont [7/8] 0, 128
    %4986 = vxpose.xlu0.c.b16.end [8/8] 0, 128
    %v4987 = vpop.trf.xlu0
    %v4988 = vpop.trf.xlu0
    %v4989 = vpop.trf.xlu0
    %v4990 = vpop.trf.xlu0
    %v4991 = vpop.trf.xlu0
    %v4992 = vpop.trf.xlu0
    %v4993 = vpop.trf.xlu0
    %v4994 = vpop.trf.xlu0
    %v4995 = vunpack.c.l.b16 %v4974
    %v4996 = vunpack.c.l.b16 %v4978
    %v4997 = vpack.c.b16 %v4146, %v4145
    %v4998 = vpack.c.b16 %v4148, %v4147
    %v4999 = vpack.c.b16 %v4150, %v4149
    %v5000 = vpack.c.b16 %v4995, %v4151
    %v5001 = vpack.c.b16 %v4154, %v4153
    %v5002 = vpack.c.b16 %v4156, %v4155
    %v5003 = vpack.c.b16 %v4158, %v4157
    %v5004 = vpack.c.b16 %v4996, %v4159
    %v5006 = vsel %vm3880, %v4987, 0
    %v5009 = vsel %vm3880, %v4988, 0
    %v5012 = vsel %vm3880, %v4997, 0
    %v5015 = vsel %vm3880, %v4998, 0
    %v5018 = vsel %vm3880, %v4999, 0
    %v5021 = vsel %vm3880, %v5000, 0
    %v5024 = vsel %vm3880, %v5001, 0
    %v5027 = vsel %vm3880, %v5002, 0
    %v5030 = vsel %vm3880, %v5003, 0
    %v5033 = vsel %vm3880, %v5004, 0
    %5035 = vmatprep.subr.bf16.mxu0 0
    %5036 = vmatpush1.bf16.xpose.msra.mxu0 %v5012
    %5037 = vmatprep.subr.bf16.mxu0 0
    %5038 = vmatpush1.bf16.xpose.msra.mxu0 %v5015
    %5039 = vmatprep.subr.bf16.mxu0 0
    %5040 = vmatpush1.bf16.xpose.msra.mxu0 %v5018
    %5041 = vmatprep.subr.bf16.mxu0 0
    %5042 = vmatpush1.bf16.xpose.msra.mxu0 %v5021
    %5043 = vmatprep.subr.bf16.mxu0 0
    %5044 = vmatpush1.bf16.xpose.msra.mxu0 %v5024
    %5045 = vmatprep.subr.bf16.mxu0 0
    %5046 = vmatpush1.bf16.xpose.msra.mxu0 %v5027
    %5047 = vmatprep.subr.bf16.mxu0 0
    %5048 = vmatpush1.bf16.xpose.msra.mxu0 %v5030
    %5049 = vmatprep.subr.bf16.mxu0 0
    %5050 = vmatpush1.bf16.xpose.msra.mxu0 %v5033
    %5051 = vmatprep.subr.bf16.mxu0 0
    %5052 = vmatpush1.bf16.xpose.msra.mxu0 0
    %5053 = vmatprep.subr.bf16.mxu0 0
    %5054 = vmatpush1.bf16.xpose.msra.mxu0 0
    %5055 = vmatprep.subr.bf16.mxu0 0
    %5056 = vmatpush1.bf16.xpose.msra.mxu0 0
    %5057 = vmatprep.subr.bf16.mxu0 0
    %5058 = vmatpush1.bf16.xpose.msra.mxu0 0
    %5059 = vmatprep.subr.bf16.mxu0 0
    %5060 = vmatpush1.bf16.xpose.msra.mxu0 0
    %5061 = vmatprep.subr.bf16.mxu0 0
    %5062 = vmatpush1.bf16.xpose.msra.mxu0 0
    %5063 = vmatprep.subr.bf16.mxu0 0
    %5064 = vmatpush1.bf16.xpose.msra.mxu0 0
    %5065 = vmatprep.subr.bf16.mxu0 0
    %5066 = vmatpush1.bf16.xpose.msra.mxu0 0
    %5067 = vmatprep.mubr.bf16.mxu0 0
    %5068 = vmatmul.mubr.bf16.gmra.mrb[0].mxu0 %v5006
    %v5069 = vpop.f32.mrb[0].mxu0
    %v5070 = vadd.f32 0.0, %v5069
    %v5071 = vpop.f32.mrb[0].mxu0
    %v5072 = vpop.f32.mrb[0].mxu0
    %v5073 = vadd.f32 0.0, %v5072
    %v5074 = vpop.f32.mrb[0].mxu0
    %5075 = vmatprep.mubr.bf16.mxu0 0
    %5076 = vmatmul.mubr.bf16.gmra.mrb[0].mxu0 %v5009
    %v5077 = vpop.f32.mrb[0].mxu0
    %v5078 = vadd.f32 0.0, %v5077
    %v5079 = vpop.f32.mrb[0].mxu0
    %v5080 = vpop.f32.mrb[0].mxu0
    %v5081 = vpop.f32.mrb[0].mxu0
    %5082 = vdwg.mxu0
    %v5083 = vadd.f32 %v4968, %v5070
    %v5084 = vadd.f32 %v4969, %v5073
    %v5085 = vadd.f32 %v4970, %v5078
    %v5086 = vrot.slane %v4837, 5
    %v5087 = vrot.slane %v4840, 6
    %v5088 = vor.u32 %v5086, %v5087
    %v5089 = vrot.slane %v5088, 4
    %v5090 = vshrl.u32 %v4833, 16
    %v5092 = vrot.slane %v5090, 5
    %v5093 = vrot.slane %v4846, 6
    %v5094 = vor.u32 %v5092, %v5093
    %v5095 = vsel %vm4251, %v5089, %v5094
    %v5096 = vrot.slane %v4851, 5
    %v5097 = vrot.slane %v4854, 6
    %v5098 = vor.u32 %v5096, %v5097
    %v5099 = vrot.slane %v5098, 4
    %v5100 = vshrl.u32 %v4835, 16
    %v5102 = vrot.slane %v5100, 5
    %v5103 = vrot.slane %v4860, 6
    %v5104 = vor.u32 %v5102, %v5103
    %v5105 = vsel %vm4251, %v5099, %v5104
    %5106 = vxpose.xlu0.c.b16.start [1/8] %v3499, 128
    %5107 = vxpose.xlu0.c.b16.cont [2/8] %v3500, 128
    %5108 = vxpose.xlu0.c.b16.cont [3/8] 0, 128
    %5109 = vxpose.xlu0.c.b16.cont [4/8] 0, 128
    %5110 = vxpose.xlu0.c.b16.cont [5/8] 0, 128
    %5111 = vxpose.xlu0.c.b16.cont [6/8] 0, 128
    %5112 = vxpose.xlu0.c.b16.cont [7/8] 0, 128
    %5113 = vxpose.xlu0.c.b16.end [8/8] 0, 128
    %v5114 = vpop.trf.xlu0
    %v5115 = vpop.trf.xlu0
    %v5116 = vpop.trf.xlu0
    %v5117 = vpop.trf.xlu0
    %v5118 = vpop.trf.xlu0
    %v5119 = vpop.trf.xlu0
    %v5120 = vpop.trf.xlu0
    %v5121 = vpop.trf.xlu0
    %v5122 = vunpack.c.l.b16 %v5095
    %v5123 = vunpack.c.l.b16 %v5105
    %v5124 = vpack.c.b16 %v4430, %v4429
    %v5125 = vpack.c.b16 %v4432, %v4431
    %v5126 = vpack.c.b16 %v4434, %v4433
    %v5127 = vpack.c.b16 %v5122, %v4435
    %v5128 = vpack.c.b16 %v4438, %v4437
    %v5129 = vpack.c.b16 %v4440, %v4439
    %v5130 = vpack.c.b16 %v4442, %v4441
    %v5131 = vpack.c.b16 %v5123, %v4443
    %v5133 = vsel %vm3880, %v5114, 0
    %v5136 = vsel %vm3880, %v5115, 0
    %v5139 = vsel %vm3880, %v5124, 0
    %v5142 = vsel %vm3880, %v5125, 0
    %v5145 = vsel %vm3880, %v5126, 0
    %v5148 = vsel %vm3880, %v5127, 0
    %v5151 = vsel %vm3880, %v5128, 0
    %v5154 = vsel %vm3880, %v5129, 0
    %v5157 = vsel %vm3880, %v5130, 0
    %v5160 = vsel %vm3880, %v5131, 0
    %5162 = vmatprep.subr.bf16.mxu0 0
    %5163 = vmatpush1.bf16.xpose.msra.mxu0 %v5139
    %5164 = vmatprep.subr.bf16.mxu0 0
    %5165 = vmatpush1.bf16.xpose.msra.mxu0 %v5142
    %5166 = vmatprep.subr.bf16.mxu0 0
    %5167 = vmatpush1.bf16.xpose.msra.mxu0 %v5145
    %5168 = vmatprep.subr.bf16.mxu0 0
    %5169 = vmatpush1.bf16.xpose.msra.mxu0 %v5148
    %5170 = vmatprep.subr.bf16.mxu0 0
    %5171 = vmatpush1.bf16.xpose.msra.mxu0 %v5151
    %5172 = vmatprep.subr.bf16.mxu0 0
    %5173 = vmatpush1.bf16.xpose.msra.mxu0 %v5154
    %5174 = vmatprep.subr.bf16.mxu0 0
    %5175 = vmatpush1.bf16.xpose.msra.mxu0 %v5157
    %5176 = vmatprep.subr.bf16.mxu0 0
    %5177 = vmatpush1.bf16.xpose.msra.mxu0 %v5160
    %5178 = vmatprep.subr.bf16.mxu0 0
    %5179 = vmatpush1.bf16.xpose.msra.mxu0 0
    %5180 = vmatprep.subr.bf16.mxu0 0
    %5181 = vmatpush1.bf16.xpose.msra.mxu0 0
    %5182 = vmatprep.subr.bf16.mxu0 0
    %5183 = vmatpush1.bf16.xpose.msra.mxu0 0
    %5184 = vmatprep.subr.bf16.mxu0 0
    %5185 = vmatpush1.bf16.xpose.msra.mxu0 0
    %5186 = vmatprep.subr.bf16.mxu0 0
    %5187 = vmatpush1.bf16.xpose.msra.mxu0 0
    %5188 = vmatprep.subr.bf16.mxu0 0
    %5189 = vmatpush1.bf16.xpose.msra.mxu0 0
    %5190 = vmatprep.subr.bf16.mxu0 0
    %5191 = vmatpush1.bf16.xpose.msra.mxu0 0
    %5192 = vmatprep.subr.bf16.mxu0 0
    %5193 = vmatpush1.bf16.xpose.msra.mxu0 0
    %5194 = vmatprep.mubr.bf16.mxu0 0
    %5195 = vmatmul.mubr.bf16.gmra.mrb[0].mxu0 %v5133
    %v5196 = vpop.f32.mrb[0].mxu0
    %v5197 = vadd.f32 0.0, %v5196
    %v5198 = vpop.f32.mrb[0].mxu0
    %v5199 = vpop.f32.mrb[0].mxu0
    %v5200 = vadd.f32 0.0, %v5199
    %v5201 = vpop.f32.mrb[0].mxu0
    %5202 = vmatprep.mubr.bf16.mxu0 0
    %5203 = vmatmul.mubr.bf16.gmra.mrb[0].mxu0 %v5136
    %v5204 = vpop.f32.mrb[0].mxu0
    %v5205 = vadd.f32 0.0, %v5204
    %v5206 = vpop.f32.mrb[0].mxu0
    %v5207 = vpop.f32.mrb[0].mxu0
    %v5208 = vpop.f32.mrb[0].mxu0
    %5209 = vdwg.mxu0
    %v5210 = vadd.f32 %v5083, %v5197
    %v5211 = vadd.f32 %v5084, %v5200
    %v5212 = vadd.f32 %v5085, %v5205
    %v5213 = vrot.slane %v4832, 6
    %v5214 = vrot.slane %v5213, 4
    %v5215 = vrot.slane %v4833, 6
    %v5216 = vsel %vm4535, %v5214, %v5215
    %v5217 = vrot.slane %v4834, 6
    %v5218 = vrot.slane %v5217, 4
    %v5219 = vrot.slane %v4835, 6
    %v5220 = vsel %vm4535, %v5218, %v5219
    %5221 = vxpose.xlu0.c.b16.start [1/8] %v3501, 128
    %5222 = vxpose.xlu0.c.b16.cont [2/8] %v3502, 128
    %5223 = vxpose.xlu0.c.b16.cont [3/8] 0, 128
    %5224 = vxpose.xlu0.c.b16.cont [4/8] 0, 128
    %5225 = vxpose.xlu0.c.b16.cont [5/8] 0, 128
    %5226 = vxpose.xlu0.c.b16.cont [6/8] 0, 128
    %5227 = vxpose.xlu0.c.b16.cont [7/8] 0, 128
    %5228 = vxpose.xlu0.c.b16.end [8/8] 0, 128
    %v5229 = vpop.trf.xlu0
    %v5230 = vpop.trf.xlu0
    %v5231 = vpop.trf.xlu0
    %v5232 = vpop.trf.xlu0
    %v5233 = vpop.trf.xlu0
    %v5234 = vpop.trf.xlu0
    %v5235 = vpop.trf.xlu0
    %v5236 = vpop.trf.xlu0
    %v5237 = vunpack.c.l.b16 %v5216
    %v5238 = vunpack.c.l.b16 %v5220
    %v5239 = vpack.c.b16 %v4618, %v4617
    %v5240 = vpack.c.b16 %v4620, %v4619
    %v5241 = vpack.c.b16 %v4622, %v4621
    %v5242 = vpack.c.b16 %v5237, %v4623
    %v5243 = vpack.c.b16 %v4626, %v4625
    %v5244 = vpack.c.b16 %v4628, %v4627
    %v5245 = vpack.c.b16 %v4630, %v4629
    %v5246 = vpack.c.b16 %v5238, %v4631
    %v5248 = vsel %vm3880, %v5229, 0
    %v5251 = vsel %vm3880, %v5230, 0
    %v5254 = vsel %vm3880, %v5239, 0
    %v5257 = vsel %vm3880, %v5240, 0
    %v5260 = vsel %vm3880, %v5241, 0
    %v5263 = vsel %vm3880, %v5242, 0
    %v5266 = vsel %vm3880, %v5243, 0
    %v5269 = vsel %vm3880, %v5244, 0
    %v5272 = vsel %vm3880, %v5245, 0
    %v5275 = vsel %vm3880, %v5246, 0
    %5277 = vmatprep.subr.bf16.mxu0 0
    %5278 = vmatpush1.bf16.xpose.msra.mxu0 %v5254
    %5279 = vmatprep.subr.bf16.mxu0 0
    %5280 = vmatpush1.bf16.xpose.msra.mxu0 %v5257
    %5281 = vmatprep.subr.bf16.mxu0 0
    %5282 = vmatpush1.bf16.xpose.msra.mxu0 %v5260
    %5283 = vmatprep.subr.bf16.mxu0 0
    %5284 = vmatpush1.bf16.xpose.msra.mxu0 %v5263
    %5285 = vmatprep.subr.bf16.mxu0 0
    %5286 = vmatpush1.bf16.xpose.msra.mxu0 %v5266
    %5287 = vmatprep.subr.bf16.mxu0 0
    %5288 = vmatpush1.bf16.xpose.msra.mxu0 %v5269
    %5289 = vmatprep.subr.bf16.mxu0 0
    %5290 = vmatpush1.bf16.xpose.msra.mxu0 %v5272
    %5291 = vmatprep.subr.bf16.mxu0 0
    %5292 = vmatpush1.bf16.xpose.msra.mxu0 %v5275
    %5293 = vmatprep.subr.bf16.mxu0 0
    %5294 = vmatpush1.bf16.xpose.msra.mxu0 0
    %5295 = vmatprep.subr.bf16.mxu0 0
    %5296 = vmatpush1.bf16.xpose.msra.mxu0 0
    %5297 = vmatprep.subr.bf16.mxu0 0
    %5298 = vmatpush1.bf16.xpose.msra.mxu0 0
    %5299 = vmatprep.subr.bf16.mxu0 0
    %5300 = vmatpush1.bf16.xpose.msra.mxu0 0
    %5301 = vmatprep.subr.bf16.mxu0 0
    %5302 = vmatpush1.bf16.xpose.msra.mxu0 0
    %5303 = vmatprep.subr.bf16.mxu0 0
    %5304 = vmatpush1.bf16.xpose.msra.mxu0 0
    %5305 = vmatprep.subr.bf16.mxu0 0
    %5306 = vmatpush1.bf16.xpose.msra.mxu0 0
    %5307 = vmatprep.subr.bf16.mxu0 0
    %5308 = vmatpush1.bf16.xpose.msra.mxu0 0
    %5309 = vmatprep.mubr.bf16.mxu0 0
    %5310 = vmatmul.mubr.bf16.gmra.mrb[0].mxu0 %v5248
    %v5311 = vpop.f32.mrb[0].mxu0
    %v5312 = vadd.f32 0.0, %v5311
    %v5313 = vpop.f32.mrb[0].mxu0
    %v5314 = vpop.f32.mrb[0].mxu0
    %v5315 = vadd.f32 0.0, %v5314
    %v5316 = vpop.f32.mrb[0].mxu0
    %5317 = vmatprep.mubr.bf16.mxu0 0
    %5318 = vmatmul.mubr.bf16.gmra.mrb[0].mxu0 %v5251
    %v5319 = vpop.f32.mrb[0].mxu0
    %v5320 = vadd.f32 0.0, %v5319
    %v5321 = vpop.f32.mrb[0].mxu0
    %v5322 = vpop.f32.mrb[0].mxu0
    %v5323 = vpop.f32.mrb[0].mxu0
    %5324 = vdwg.mxu0
    %v5325 = vadd.f32 %v5210, %v5312
    %v5326 = vadd.f32 %v5211, %v5315
    %v5327 = vadd.f32 %v5212, %v5320
    %5328 = vxpose.xlu0.c.b16.start [1/8] %v3503, 128
    %5329 = vxpose.xlu0.c.b16.cont [2/8] %v3504, 128
    %5330 = vxpose.xlu0.c.b16.cont [3/8] 0, 128
    %5331 = vxpose.xlu0.c.b16.cont [4/8] 0, 128
    %5332 = vxpose.xlu0.c.b16.cont [5/8] 0, 128
    %5333 = vxpose.xlu0.c.b16.cont [6/8] 0, 128
    %5334 = vxpose.xlu0.c.b16.cont [7/8] 0, 128
    %5335 = vxpose.xlu0.c.b16.end [8/8] 0, 128
    %v5336 = vpop.trf.xlu0
    %v5337 = vpop.trf.xlu0
    %v5338 = vpop.trf.xlu0
    %v5339 = vpop.trf.xlu0
    %v5340 = vpop.trf.xlu0
    %v5341 = vpop.trf.xlu0
    %v5342 = vpop.trf.xlu0
    %v5343 = vpop.trf.xlu0
    %v5346 = vunpack.c.l.b16 %v3393
    %v5347 = vunpack.c.l.b16 %v3405
    %v5348 = vpack.c.b16 %v5346, %v4739
    %v5349 = vpack.c.b16 %v5347, %v4740
    %v5351 = vsel %vm3880, %v5336, 0
    %v5354 = vsel %vm3880, %v5337, 0
    %v5357 = vsel %vm3880, %v5348, 0
    %v5360 = vsel %vm3880, %v5349, 0
    %5362 = vmatprep.subr.bf16.mxu0 0
    %5363 = vmatpush1.bf16.xpose.msra.mxu0 %v3993
    %5364 = vmatprep.subr.bf16.mxu0 0
    %5365 = vmatpush1.bf16.xpose.msra.mxu0 %v3996
    %5366 = vmatprep.subr.bf16.mxu0 0
    %5367 = vmatpush1.bf16.xpose.msra.mxu0 %v3999
    %5368 = vmatprep.subr.bf16.mxu0 0
    %5369 = vmatpush1.bf16.xpose.msra.mxu0 %v5357
    %5370 = vmatprep.subr.bf16.mxu0 0
    %5371 = vmatpush1.bf16.xpose.msra.mxu0 %v4005
    %5372 = vmatprep.subr.bf16.mxu0 0
    %5373 = vmatpush1.bf16.xpose.msra.mxu0 %v4008
    %5374 = vmatprep.subr.bf16.mxu0 0
    %5375 = vmatpush1.bf16.xpose.msra.mxu0 %v4011
    %5376 = vmatprep.subr.bf16.mxu0 0
    %5377 = vmatpush1.bf16.xpose.msra.mxu0 %v5360
    %5378 = vmatprep.subr.bf16.mxu0 0
    %5379 = vmatpush1.bf16.xpose.msra.mxu0 0
    %5380 = vmatprep.subr.bf16.mxu0 0
    %5381 = vmatpush1.bf16.xpose.msra.mxu0 0
    %5382 = vmatprep.subr.bf16.mxu0 0
    %5383 = vmatpush1.bf16.xpose.msra.mxu0 0
    %5384 = vmatprep.subr.bf16.mxu0 0
    %5385 = vmatpush1.bf16.xpose.msra.mxu0 0
    %5386 = vmatprep.subr.bf16.mxu0 0
    %5387 = vmatpush1.bf16.xpose.msra.mxu0 0
    %5388 = vmatprep.subr.bf16.mxu0 0
    %5389 = vmatpush1.bf16.xpose.msra.mxu0 0
    %5390 = vmatprep.subr.bf16.mxu0 0
    %5391 = vmatpush1.bf16.xpose.msra.mxu0 0
    %5392 = vmatprep.subr.bf16.mxu0 0
    %5393 = vmatpush1.bf16.xpose.msra.mxu0 0
    %5394 = vmatprep.mubr.bf16.mxu0 0
    %5395 = vmatmul.mubr.bf16.gmra.mrb[0].mxu0 %v5351
    %v5396 = vpop.f32.mrb[0].mxu0
    %v5397 = vadd.f32 0.0, %v5396
    %v5398 = vpop.f32.mrb[0].mxu0
    %v5399 = vpop.f32.mrb[0].mxu0
    %v5400 = vadd.f32 0.0, %v5399
    %v5401 = vpop.f32.mrb[0].mxu0
    %5402 = vmatprep.mubr.bf16.mxu0 0
    %5403 = vmatmul.mubr.bf16.gmra.mrb[0].mxu0 %v5354
    %v5404 = vpop.f32.mrb[0].mxu0
    %v5405 = vadd.f32 0.0, %v5404
    %v5406 = vpop.f32.mrb[0].mxu0
    %v5407 = vpop.f32.mrb[0].mxu0
    %v5408 = vpop.f32.mrb[0].mxu0
    %5409 = vdwg.mxu0
    %v5410 = vadd.f32 %v5325, %v5397
    %v5411 = vadd.f32 %v5326, %v5400
    %v5412 = vadd.f32 %v5327, %v5405
    %v5413 = vunpack.c.h.b16 %v3393
    %v5414 = vunpack.c.h.b16 %v3405
    %v5415 = vpack.c.b16 %v5346, %v5346
    %v5416 = vpack.c.b16 %v5413, %v5413
    %v5417 = vpack.c.b16 %v5347, %v5347
    %v5418 = vpack.c.b16 %v5414, %v5414
    %v5420 = vshrl.u32 %v5415, 16
    %v5422 = vrot.slane %v5420, 4
    %v5423 = vshll.u32 %v5415, 16
    %v5425 = vrot.slane %v5423, 5
    %v5426 = vor.u32 %v5422, %v5425
    %v5427 = vrot.slane %v5426, 4
    %v5429 = vshll.u32 %v5416, 16
    %v5431 = vrot.slane %v5429, 5
    %v5432 = vsel %vm3615, %v5427, %v5431
    %v5434 = vshrl.u32 %v5417, 16
    %v5436 = vrot.slane %v5434, 4
    %v5437 = vshll.u32 %v5417, 16
    %v5439 = vrot.slane %v5437, 5
    %v5440 = vor.u32 %v5436, %v5439
    %v5441 = vrot.slane %v5440, 4
    %v5443 = vshll.u32 %v5418, 16
    %v5445 = vrot.slane %v5443, 5
    %v5446 = vsel %vm3615, %v5441, %v5445
    %5447 = vxpose.xlu0.c.b16.start [1/8] %v3505, 128
    %5448 = vxpose.xlu0.c.b16.cont [2/8] %v3506, 128
    %5449 = vxpose.xlu0.c.b16.cont [3/8] 0, 128
    %5450 = vxpose.xlu0.c.b16.cont [4/8] 0, 128
    %5451 = vxpose.xlu0.c.b16.cont [5/8] 0, 128
    %5452 = vxpose.xlu0.c.b16.cont [6/8] 0, 128
    %5453 = vxpose.xlu0.c.b16.cont [7/8] 0, 128
    %5454 = vxpose.xlu0.c.b16.end [8/8] 0, 128
    %v5455 = vpop.trf.xlu0
    %v5456 = vpop.trf.xlu0
    %v5457 = vpop.trf.xlu0
    %v5458 = vpop.trf.xlu0
    %v5459 = vpop.trf.xlu0
    %v5460 = vpop.trf.xlu0
    %v5461 = vpop.trf.xlu0
    %v5462 = vpop.trf.xlu0
    %v5463 = vunpack.c.l.b16 %v5432
    %v5464 = vunpack.c.l.b16 %v5446
    %v5465 = vpack.c.b16 %v5463, %v4880
    %v5466 = vpack.c.b16 %v5464, %v4881
    %v5468 = vsel %vm3880, %v5455, 0
    %v5471 = vsel %vm3880, %v5456, 0
    %v5474 = vsel %vm3880, %v5465, 0
    %v5477 = vsel %vm3880, %v5466, 0
    %5479 = vmatprep.subr.bf16.mxu0 0
    %5480 = vmatpush1.bf16.xpose.msra.mxu0 %v3891
    %5481 = vmatprep.subr.bf16.mxu0 0
    %5482 = vmatpush1.bf16.xpose.msra.mxu0 %v3894
    %5483 = vmatprep.subr.bf16.mxu0 0
    %5484 = vmatpush1.bf16.xpose.msra.mxu0 %v3897
    %5485 = vmatprep.subr.bf16.mxu0 0
    %5486 = vmatpush1.bf16.xpose.msra.mxu0 %v5474
    %5487 = vmatprep.subr.bf16.mxu0 0
    %5488 = vmatpush1.bf16.xpose.msra.mxu0 %v3903
    %5489 = vmatprep.subr.bf16.mxu0 0
    %5490 = vmatpush1.bf16.xpose.msra.mxu0 %v3906
    %5491 = vmatprep.subr.bf16.mxu0 0
    %5492 = vmatpush1.bf16.xpose.msra.mxu0 %v3909
    %5493 = vmatprep.subr.bf16.mxu0 0
    %5494 = vmatpush1.bf16.xpose.msra.mxu0 %v5477
    %5495 = vmatprep.subr.bf16.mxu0 0
    %5496 = vmatpush1.bf16.xpose.msra.mxu0 0
    %5497 = vmatprep.subr.bf16.mxu0 0
    %5498 = vmatpush1.bf16.xpose.msra.mxu0 0
    %5499 = vmatprep.subr.bf16.mxu0 0
    %5500 = vmatpush1.bf16.xpose.msra.mxu0 0
    %5501 = vmatprep.subr.bf16.mxu0 0
    %5502 = vmatpush1.bf16.xpose.msra.mxu0 0
    %5503 = vmatprep.subr.bf16.mxu0 0
    %5504 = vmatpush1.bf16.xpose.msra.mxu0 0
    %5505 = vmatprep.subr.bf16.mxu0 0
    %5506 = vmatpush1.bf16.xpose.msra.mxu0 0
    %5507 = vmatprep.subr.bf16.mxu0 0
    %5508 = vmatpush1.bf16.xpose.msra.mxu0 0
    %5509 = vmatprep.subr.bf16.mxu0 0
    %5510 = vmatpush1.bf16.xpose.msra.mxu0 0
    %5511 = vmatprep.mubr.bf16.mxu0 0
    %5512 = vmatmul.mubr.bf16.gmra.mrb[0].mxu0 %v5468
    %v5513 = vpop.f32.mrb[0].mxu0
    %v5514 = vadd.f32 0.0, %v5513
    %v5515 = vpop.f32.mrb[0].mxu0
    %v5516 = vpop.f32.mrb[0].mxu0
    %v5517 = vadd.f32 0.0, %v5516
    %v5518 = vpop.f32.mrb[0].mxu0
    %5519 = vmatprep.mubr.bf16.mxu0 0
    %5520 = vmatmul.mubr.bf16.gmra.mrb[0].mxu0 %v5471
    %v5521 = vpop.f32.mrb[0].mxu0
    %v5522 = vadd.f32 0.0, %v5521
    %v5523 = vpop.f32.mrb[0].mxu0
    %v5524 = vpop.f32.mrb[0].mxu0
    %v5525 = vpop.f32.mrb[0].mxu0
    %5526 = vdwg.mxu0
    %v5527 = vadd.f32 %v5410, %v5514
    %v5528 = vadd.f32 %v5411, %v5517
    %v5529 = vadd.f32 %v5412, %v5522
    %v5530 = vrot.slane %v5415, 5
    %v5531 = vrot.slane %v5530, 4
    %v5532 = vrot.slane %v5416, 5
    %v5533 = vsel %vm4063, %v5531, %v5532
    %v5534 = vrot.slane %v5417, 5
    %v5535 = vrot.slane %v5534, 4
    %v5536 = vrot.slane %v5418, 5
    %v5537 = vsel %vm4063, %v5535, %v5536
    %5538 = vxpose.xlu0.c.b16.start [1/8] %v3507, 128
    %5539 = vxpose.xlu0.c.b16.cont [2/8] %v3508, 128
    %5540 = vxpose.xlu0.c.b16.cont [3/8] 0, 128
    %5541 = vxpose.xlu0.c.b16.cont [4/8] 0, 128
    %5542 = vxpose.xlu0.c.b16.cont [5/8] 0, 128
    %5543 = vxpose.xlu0.c.b16.cont [6/8] 0, 128
    %5544 = vxpose.xlu0.c.b16.cont [7/8] 0, 128
    %5545 = vxpose.xlu0.c.b16.end [8/8] 0, 128
    %v5546 = vpop.trf.xlu0
    %v5547 = vpop.trf.xlu0
    %v5548 = vpop.trf.xlu0
    %v5549 = vpop.trf.xlu0
    %v5550 = vpop.trf.xlu0
    %v5551 = vpop.trf.xlu0
    %v5552 = vpop.trf.xlu0
    %v5553 = vpop.trf.xlu0
    %v5554 = vunpack.c.l.b16 %v5533
    %v5555 = vunpack.c.l.b16 %v5537
    %v5556 = vpack.c.b16 %v5554, %v4995
    %v5557 = vpack.c.b16 %v5555, %v4996
    %v5559 = vsel %vm3880, %v5546, 0
    %v5562 = vsel %vm3880, %v5547, 0
    %v5565 = vsel %vm3880, %v5556, 0
    %v5568 = vsel %vm3880, %v5557, 0
    %5570 = vmatprep.subr.bf16.mxu0 0
    %5571 = vmatpush1.bf16.xpose.msra.mxu0 %v4178
    %5572 = vmatprep.subr.bf16.mxu0 0
    %5573 = vmatpush1.bf16.xpose.msra.mxu0 %v4181
    %5574 = vmatprep.subr.bf16.mxu0 0
    %5575 = vmatpush1.bf16.xpose.msra.mxu0 %v4184
    %5576 = vmatprep.subr.bf16.mxu0 0
    %5577 = vmatpush1.bf16.xpose.msra.mxu0 %v5565
    %5578 = vmatprep.subr.bf16.mxu0 0
    %5579 = vmatpush1.bf16.xpose.msra.mxu0 %v4190
    %5580 = vmatprep.subr.bf16.mxu0 0
    %5581 = vmatpush1.bf16.xpose.msra.mxu0 %v4193
    %5582 = vmatprep.subr.bf16.mxu0 0
    %5583 = vmatpush1.bf16.xpose.msra.mxu0 %v4196
    %5584 = vmatprep.subr.bf16.mxu0 0
    %5585 = vmatpush1.bf16.xpose.msra.mxu0 %v5568
    %5586 = vmatprep.subr.bf16.mxu0 0
    %5587 = vmatpush1.bf16.xpose.msra.mxu0 0
    %5588 = vmatprep.subr.bf16.mxu0 0
    %5589 = vmatpush1.bf16.xpose.msra.mxu0 0
    %5590 = vmatprep.subr.bf16.mxu0 0
    %5591 = vmatpush1.bf16.xpose.msra.mxu0 0
    %5592 = vmatprep.subr.bf16.mxu0 0
    %5593 = vmatpush1.bf16.xpose.msra.mxu0 0
    %5594 = vmatprep.subr.bf16.mxu0 0
    %5595 = vmatpush1.bf16.xpose.msra.mxu0 0
    %5596 = vmatprep.subr.bf16.mxu0 0
    %5597 = vmatpush1.bf16.xpose.msra.mxu0 0
    %5598 = vmatprep.subr.bf16.mxu0 0
    %5599 = vmatpush1.bf16.xpose.msra.mxu0 0
    %5600 = vmatprep.subr.bf16.mxu0 0
    %5601 = vmatpush1.bf16.xpose.msra.mxu0 0
    %5602 = vmatprep.mubr.bf16.mxu0 0
    %5603 = vmatmul.mubr.bf16.gmra.mrb[0].mxu0 %v5559
    %v5604 = vpop.f32.mrb[0].mxu0
    %v5605 = vadd.f32 0.0, %v5604
    %v5606 = vpop.f32.mrb[0].mxu0
    %v5607 = vpop.f32.mrb[0].mxu0
    %v5608 = vadd.f32 0.0, %v5607
    %v5609 = vpop.f32.mrb[0].mxu0
    %5610 = vmatprep.mubr.bf16.mxu0 0
    %5611 = vmatmul.mubr.bf16.gmra.mrb[0].mxu0 %v5562
    %v5612 = vpop.f32.mrb[0].mxu0
    %v5613 = vadd.f32 0.0, %v5612
    %v5614 = vpop.f32.mrb[0].mxu0
    %v5615 = vpop.f32.mrb[0].mxu0
    %v5616 = vpop.f32.mrb[0].mxu0
    %5617 = vdwg.mxu0
    %v5618 = vadd.f32 %v5527, %v5605
    %v5619 = vadd.f32 %v5528, %v5608
    %v5620 = vadd.f32 %v5529, %v5613
    %v5621 = vrot.slane %v5420, 5
    %v5622 = vrot.slane %v5423, 6
    %v5623 = vor.u32 %v5621, %v5622
    %v5624 = vrot.slane %v5623, 4
    %v5625 = vshrl.u32 %v5416, 16
    %v5627 = vrot.slane %v5625, 5
    %v5628 = vrot.slane %v5429, 6
    %v5629 = vor.u32 %v5627, %v5628
    %v5630 = vsel %vm4251, %v5624, %v5629
    %v5631 = vrot.slane %v5434, 5
    %v5632 = vrot.slane %v5437, 6
    %v5633 = vor.u32 %v5631, %v5632
    %v5634 = vrot.slane %v5633, 4
    %v5635 = vshrl.u32 %v5418, 16
    %v5637 = vrot.slane %v5635, 5
    %v5638 = vrot.slane %v5443, 6
    %v5639 = vor.u32 %v5637, %v5638
    %v5640 = vsel %vm4251, %v5634, %v5639
    %5641 = vxpose.xlu0.c.b16.start [1/8] %v3509, 128
    %5642 = vxpose.xlu0.c.b16.cont [2/8] %v3510, 128
    %5643 = vxpose.xlu0.c.b16.cont [3/8] 0, 128
    %5644 = vxpose.xlu0.c.b16.cont [4/8] 0, 128
    %5645 = vxpose.xlu0.c.b16.cont [5/8] 0, 128
    %5646 = vxpose.xlu0.c.b16.cont [6/8] 0, 128
    %5647 = vxpose.xlu0.c.b16.cont [7/8] 0, 128
    %5648 = vxpose.xlu0.c.b16.end [8/8] 0, 128
    %v5649 = vpop.trf.xlu0
    %v5650 = vpop.trf.xlu0
    %v5651 = vpop.trf.xlu0
    %v5652 = vpop.trf.xlu0
    %v5653 = vpop.trf.xlu0
    %v5654 = vpop.trf.xlu0
    %v5655 = vpop.trf.xlu0
    %v5656 = vpop.trf.xlu0
    %v5657 = vunpack.c.l.b16 %v5630
    %v5658 = vunpack.c.l.b16 %v5640
    %v5659 = vpack.c.b16 %v5657, %v5122
    %v5660 = vpack.c.b16 %v5658, %v5123
    %v5662 = vsel %vm3880, %v5649, 0
    %v5665 = vsel %vm3880, %v5650, 0
    %v5668 = vsel %vm3880, %v5659, 0
    %v5671 = vsel %vm3880, %v5660, 0
    %5673 = vmatprep.subr.bf16.mxu0 0
    %5674 = vmatpush1.bf16.xpose.msra.mxu0 %v4462
    %5675 = vmatprep.subr.bf16.mxu0 0
    %5676 = vmatpush1.bf16.xpose.msra.mxu0 %v4465
    %5677 = vmatprep.subr.bf16.mxu0 0
    %5678 = vmatpush1.bf16.xpose.msra.mxu0 %v4468
    %5679 = vmatprep.subr.bf16.mxu0 0
    %5680 = vmatpush1.bf16.xpose.msra.mxu0 %v5668
    %5681 = vmatprep.subr.bf16.mxu0 0
    %5682 = vmatpush1.bf16.xpose.msra.mxu0 %v4474
    %5683 = vmatprep.subr.bf16.mxu0 0
    %5684 = vmatpush1.bf16.xpose.msra.mxu0 %v4477
    %5685 = vmatprep.subr.bf16.mxu0 0
    %5686 = vmatpush1.bf16.xpose.msra.mxu0 %v4480
    %5687 = vmatprep.subr.bf16.mxu0 0
    %5688 = vmatpush1.bf16.xpose.msra.mxu0 %v5671
    %5689 = vmatprep.subr.bf16.mxu0 0
    %5690 = vmatpush1.bf16.xpose.msra.mxu0 0
    %5691 = vmatprep.subr.bf16.mxu0 0
    %5692 = vmatpush1.bf16.xpose.msra.mxu0 0
    %5693 = vmatprep.subr.bf16.mxu0 0
    %5694 = vmatpush1.bf16.xpose.msra.mxu0 0
    %5695 = vmatprep.subr.bf16.mxu0 0
    %5696 = vmatpush1.bf16.xpose.msra.mxu0 0
    %5697 = vmatprep.subr.bf16.mxu0 0
    %5698 = vmatpush1.bf16.xpose.msra.mxu0 0
    %5699 = vmatprep.subr.bf16.mxu0 0
    %5700 = vmatpush1.bf16.xpose.msra.mxu0 0
    %5701 = vmatprep.subr.bf16.mxu0 0
    %5702 = vmatpush1.bf16.xpose.msra.mxu0 0
    %5703 = vmatprep.subr.bf16.mxu0 0
    %5704 = vmatpush1.bf16.xpose.msra.mxu0 0
    %5705 = vmatprep.mubr.bf16.mxu0 0
    %5706 = vmatmul.mubr.bf16.gmra.mrb[0].mxu0 %v5662
    %v5707 = vpop.f32.mrb[0].mxu0
    %v5708 = vadd.f32 0.0, %v5707
    %v5709 = vpop.f32.mrb[0].mxu0
    %v5710 = vpop.f32.mrb[0].mxu0
    %v5711 = vadd.f32 0.0, %v5710
    %v5712 = vpop.f32.mrb[0].mxu0
    %5713 = vmatprep.mubr.bf16.mxu0 0
    %5714 = vmatmul.mubr.bf16.gmra.mrb[0].mxu0 %v5665
    %v5715 = vpop.f32.mrb[0].mxu0
    %v5716 = vadd.f32 0.0, %v5715
    %v5717 = vpop.f32.mrb[0].mxu0
    %v5718 = vpop.f32.mrb[0].mxu0
    %v5719 = vpop.f32.mrb[0].mxu0
    %5720 = vdwg.mxu0
    %v5721 = vadd.f32 %v5618, %v5708
    %v5722 = vadd.f32 %v5619, %v5711
    %v5723 = vadd.f32 %v5620, %v5716
    %v5724 = vrot.slane %v5415, 6
    %v5725 = vrot.slane %v5724, 4
    %v5726 = vrot.slane %v5416, 6
    %v5727 = vsel %vm4535, %v5725, %v5726
    %v5728 = vrot.slane %v5417, 6
    %v5729 = vrot.slane %v5728, 4
    %v5730 = vrot.slane %v5418, 6
    %v5731 = vsel %vm4535, %v5729, %v5730
    %5732 = vxpose.xlu0.c.b16.start [1/8] %v3511, 128
    %5733 = vxpose.xlu0.c.b16.cont [2/8] %v3512, 128
    %5734 = vxpose.xlu0.c.b16.cont [3/8] 0, 128
    %5735 = vxpose.xlu0.c.b16.cont [4/8] 0, 128
    %5736 = vxpose.xlu0.c.b16.cont [5/8] 0, 128
    %5737 = vxpose.xlu0.c.b16.cont [6/8] 0, 128
    %5738 = vxpose.xlu0.c.b16.cont [7/8] 0, 128
    %5739 = vxpose.xlu0.c.b16.end [8/8] 0, 128
    %v5740 = vpop.trf.xlu0
    %v5741 = vpop.trf.xlu0
    %v5742 = vpop.trf.xlu0
    %v5743 = vpop.trf.xlu0
    %v5744 = vpop.trf.xlu0
    %v5745 = vpop.trf.xlu0
    %v5746 = vpop.trf.xlu0
    %v5747 = vpop.trf.xlu0
    %v5748 = vunpack.c.l.b16 %v5727
    %v5749 = vunpack.c.l.b16 %v5731
    %v5750 = vpack.c.b16 %v5748, %v5237
    %v5751 = vpack.c.b16 %v5749, %v5238
    %v5753 = vsel %vm3880, %v5740, 0
    %v5756 = vsel %vm3880, %v5741, 0
    %v5759 = vsel %vm3880, %v5750, 0
    %v5762 = vsel %vm3880, %v5751, 0
    %5764 = vmatprep.subr.bf16.mxu0 0
    %5765 = vmatpush1.bf16.xpose.msra.mxu0 %v4650
    %5766 = vmatprep.subr.bf16.mxu0 0
    %5767 = vmatpush1.bf16.xpose.msra.mxu0 %v4653
    %5768 = vmatprep.subr.bf16.mxu0 0
    %5769 = vmatpush1.bf16.xpose.msra.mxu0 %v4656
    %5770 = vmatprep.subr.bf16.mxu0 0
    %5771 = vmatpush1.bf16.xpose.msra.mxu0 %v5759
    %5772 = vmatprep.subr.bf16.mxu0 0
    %5773 = vmatpush1.bf16.xpose.msra.mxu0 %v4662
    %5774 = vmatprep.subr.bf16.mxu0 0
    %5775 = vmatpush1.bf16.xpose.msra.mxu0 %v4665
    %5776 = vmatprep.subr.bf16.mxu0 0
    %5777 = vmatpush1.bf16.xpose.msra.mxu0 %v4668
    %5778 = vmatprep.subr.bf16.mxu0 0
    %5779 = vmatpush1.bf16.xpose.msra.mxu0 %v5762
    %5780 = vmatprep.subr.bf16.mxu0 0
    %5781 = vmatpush1.bf16.xpose.msra.mxu0 0
    %5782 = vmatprep.subr.bf16.mxu0 0
    %5783 = vmatpush1.bf16.xpose.msra.mxu0 0
    %5784 = vmatprep.subr.bf16.mxu0 0
    %5785 = vmatpush1.bf16.xpose.msra.mxu0 0
    %5786 = vmatprep.subr.bf16.mxu0 0
    %5787 = vmatpush1.bf16.xpose.msra.mxu0 0
    %5788 = vmatprep.subr.bf16.mxu0 0
    %5789 = vmatpush1.bf16.xpose.msra.mxu0 0
    %5790 = vmatprep.subr.bf16.mxu0 0
    %5791 = vmatpush1.bf16.xpose.msra.mxu0 0
    %5792 = vmatprep.subr.bf16.mxu0 0
    %5793 = vmatpush1.bf16.xpose.msra.mxu0 0
    %5794 = vmatprep.subr.bf16.mxu0 0
    %5795 = vmatpush1.bf16.xpose.msra.mxu0 0
    %5796 = vmatprep.mubr.bf16.mxu0 0
    %5797 = vmatmul.mubr.bf16.gmra.mrb[0].mxu0 %v5753
    %v5798 = vpop.f32.mrb[0].mxu0
    %v5799 = vadd.f32 0.0, %v5798
    %v5800 = vpop.f32.mrb[0].mxu0
    %v5801 = vpop.f32.mrb[0].mxu0
    %v5802 = vadd.f32 0.0, %v5801
    %v5803 = vpop.f32.mrb[0].mxu0
    %5804 = vmatprep.mubr.bf16.mxu0 0
    %5805 = vmatmul.mubr.bf16.gmra.mrb[0].mxu0 %v5756
    %v5806 = vpop.f32.mrb[0].mxu0
    %v5807 = vadd.f32 0.0, %v5806
    %v5808 = vpop.f32.mrb[0].mxu0
    %v5809 = vpop.f32.mrb[0].mxu0
    %v5810 = vpop.f32.mrb[0].mxu0
    %5811 = vdwg.mxu0
    %v5812 = vadd.f32 %v5721, %v5799
    %v5813 = vadd.f32 %v5722, %v5802
    %v5814 = vadd.f32 %v5723, %v5807
    %5815 = vxpose.xlu0.c.b16.start [1/8] %v3513, 128
    %5816 = vxpose.xlu0.c.b16.cont [2/8] %v3514, 128
    %5817 = vxpose.xlu0.c.b16.cont [3/8] 0, 128
    %5818 = vxpose.xlu0.c.b16.cont [4/8] 0, 128
    %5819 = vxpose.xlu0.c.b16.cont [5/8] 0, 128
    %5820 = vxpose.xlu0.c.b16.cont [6/8] 0, 128
    %5821 = vxpose.xlu0.c.b16.cont [7/8] 0, 128
    %5822 = vxpose.xlu0.c.b16.end [8/8] 0, 128
    %v5823 = vpop.trf.xlu0
    %v5824 = vpop.trf.xlu0
    %v5825 = vpop.trf.xlu0
    %v5826 = vpop.trf.xlu0
    %v5827 = vpop.trf.xlu0
    %v5828 = vpop.trf.xlu0
    %v5829 = vpop.trf.xlu0
    %v5830 = vpop.trf.xlu0
    %v5833 = vunpack.c.l.b16 %v3394
    %v5834 = vunpack.c.l.b16 %v3406
    %v5835 = vpack.c.b16 %v5833, %v5346
    %v5836 = vpack.c.b16 %v5834, %v5347
    %v5838 = vsel %vm3880, %v5823, 0
    %v5841 = vsel %vm3880, %v5824, 0
    %v5844 = vsel %vm3880, %v5835, 0
    %v5847 = vsel %vm3880, %v5836, 0
    %5849 = vmatprep.subr.bf16.mxu0 0
    %5850 = vmatpush1.bf16.xpose.msra.mxu0 %v4759
    %5851 = vmatprep.subr.bf16.mxu0 0
    %5852 = vmatpush1.bf16.xpose.msra.mxu0 %v4762
    %5853 = vmatprep.subr.bf16.mxu0 0
    %5854 = vmatpush1.bf16.xpose.msra.mxu0 %v4765
    %5855 = vmatprep.subr.bf16.mxu0 0
    %5856 = vmatpush1.bf16.xpose.msra.mxu0 %v5844
    %5857 = vmatprep.subr.bf16.mxu0 0
    %5858 = vmatpush1.bf16.xpose.msra.mxu0 %v4771
    %5859 = vmatprep.subr.bf16.mxu0 0
    %5860 = vmatpush1.bf16.xpose.msra.mxu0 %v4774
    %5861 = vmatprep.subr.bf16.mxu0 0
    %5862 = vmatpush1.bf16.xpose.msra.mxu0 %v4777
    %5863 = vmatprep.subr.bf16.mxu0 0
    %5864 = vmatpush1.bf16.xpose.msra.mxu0 %v5847
    %5865 = vmatprep.subr.bf16.mxu0 0
    %5866 = vmatpush1.bf16.xpose.msra.mxu0 0
    %5867 = vmatprep.subr.bf16.mxu0 0
    %5868 = vmatpush1.bf16.xpose.msra.mxu0 0
    %5869 = vmatprep.subr.bf16.mxu0 0
    %5870 = vmatpush1.bf16.xpose.msra.mxu0 0
    %5871 = vmatprep.subr.bf16.mxu0 0
    %5872 = vmatpush1.bf16.xpose.msra.mxu0 0
    %5873 = vmatprep.subr.bf16.mxu0 0
    %5874 = vmatpush1.bf16.xpose.msra.mxu0 0
    %5875 = vmatprep.subr.bf16.mxu0 0
    %5876 = vmatpush1.bf16.xpose.msra.mxu0 0
    %5877 = vmatprep.subr.bf16.mxu0 0
    %5878 = vmatpush1.bf16.xpose.msra.mxu0 0
    %5879 = vmatprep.subr.bf16.mxu0 0
    %5880 = vmatpush1.bf16.xpose.msra.mxu0 0
    %5881 = vmatprep.mubr.bf16.mxu0 0
    %5882 = vmatmul.mubr.bf16.gmra.mrb[0].mxu0 %v5838
    %v5883 = vpop.f32.mrb[0].mxu0
    %v5884 = vadd.f32 0.0, %v5883
    %v5885 = vpop.f32.mrb[0].mxu0
    %v5886 = vpop.f32.mrb[0].mxu0
    %v5887 = vadd.f32 0.0, %v5886
    %v5888 = vpop.f32.mrb[0].mxu0
    %5889 = vmatprep.mubr.bf16.mxu0 0
    %5890 = vmatmul.mubr.bf16.gmra.mrb[0].mxu0 %v5841
    %v5891 = vpop.f32.mrb[0].mxu0
    %v5892 = vadd.f32 0.0, %v5891
    %v5893 = vpop.f32.mrb[0].mxu0
    %v5894 = vpop.f32.mrb[0].mxu0
    %v5895 = vpop.f32.mrb[0].mxu0
    %5896 = vdwg.mxu0
    %v5897 = vadd.f32 %v5812, %v5884
    %v5898 = vadd.f32 %v5813, %v5887
    %v5899 = vadd.f32 %v5814, %v5892
    %v5900 = vunpack.c.h.b16 %v3394
    %v5901 = vunpack.c.h.b16 %v3406
    %v5902 = vpack.c.b16 %v5833, %v5833
    %v5903 = vpack.c.b16 %v5900, %v5900
    %v5904 = vpack.c.b16 %v5834, %v5834
    %v5905 = vpack.c.b16 %v5901, %v5901
    %v5907 = vshrl.u32 %v5902, 16
    %v5909 = vrot.slane %v5907, 4
    %v5910 = vshll.u32 %v5902, 16
    %v5912 = vrot.slane %v5910, 5
    %v5913 = vor.u32 %v5909, %v5912
    %v5914 = vrot.slane %v5913, 4
    %v5916 = vshll.u32 %v5903, 16
    %v5918 = vrot.slane %v5916, 5
    %v5919 = vsel %vm3615, %v5914, %v5918
    %v5921 = vshrl.u32 %v5904, 16
    %v5923 = vrot.slane %v5921, 4
    %v5924 = vshll.u32 %v5904, 16
    %v5926 = vrot.slane %v5924, 5
    %v5927 = vor.u32 %v5923, %v5926
    %v5928 = vrot.slane %v5927, 4
    %v5930 = vshll.u32 %v5905, 16
    %v5932 = vrot.slane %v5930, 5
    %v5933 = vsel %vm3615, %v5928, %v5932
    %5934 = vxpose.xlu0.c.b16.start [1/8] %v3515, 128
    %5935 = vxpose.xlu0.c.b16.cont [2/8] %v3516, 128
    %5936 = vxpose.xlu0.c.b16.cont [3/8] 0, 128
    %5937 = vxpose.xlu0.c.b16.cont [4/8] 0, 128
    %5938 = vxpose.xlu0.c.b16.cont [5/8] 0, 128
    %5939 = vxpose.xlu0.c.b16.cont [6/8] 0, 128
    %5940 = vxpose.xlu0.c.b16.cont [7/8] 0, 128
    %5941 = vxpose.xlu0.c.b16.end [8/8] 0, 128
    %v5942 = vpop.trf.xlu0
    %v5943 = vpop.trf.xlu0
    %v5944 = vpop.trf.xlu0
    %v5945 = vpop.trf.xlu0
    %v5946 = vpop.trf.xlu0
    %v5947 = vpop.trf.xlu0
    %v5948 = vpop.trf.xlu0
    %v5949 = vpop.trf.xlu0
    %v5950 = vunpack.c.l.b16 %v5919
    %v5951 = vunpack.c.l.b16 %v5933
    %v5952 = vpack.c.b16 %v5950, %v5463
    %v5953 = vpack.c.b16 %v5951, %v5464
    %v5955 = vsel %vm3880, %v5942, 0
    %v5958 = vsel %vm3880, %v5943, 0
    %v5961 = vsel %vm3880, %v5952, 0
    %v5964 = vsel %vm3880, %v5953, 0
    %5966 = vmatprep.subr.bf16.mxu0 0
    %5967 = vmatpush1.bf16.xpose.msra.mxu0 %v4900
    %5968 = vmatprep.subr.bf16.mxu0 0
    %5969 = vmatpush1.bf16.xpose.msra.mxu0 %v4903
    %5970 = vmatprep.subr.bf16.mxu0 0
    %5971 = vmatpush1.bf16.xpose.msra.mxu0 %v4906
    %5972 = vmatprep.subr.bf16.mxu0 0
    %5973 = vmatpush1.bf16.xpose.msra.mxu0 %v5961
    %5974 = vmatprep.subr.bf16.mxu0 0
    %5975 = vmatpush1.bf16.xpose.msra.mxu0 %v4912
    %5976 = vmatprep.subr.bf16.mxu0 0
    %5977 = vmatpush1.bf16.xpose.msra.mxu0 %v4915
    %5978 = vmatprep.subr.bf16.mxu0 0
    %5979 = vmatpush1.bf16.xpose.msra.mxu0 %v4918
    %5980 = vmatprep.subr.bf16.mxu0 0
    %5981 = vmatpush1.bf16.xpose.msra.mxu0 %v5964
    %5982 = vmatprep.subr.bf16.mxu0 0
    %5983 = vmatpush1.bf16.xpose.msra.mxu0 0
    %5984 = vmatprep.subr.bf16.mxu0 0
    %5985 = vmatpush1.bf16.xpose.msra.mxu0 0
    %5986 = vmatprep.subr.bf16.mxu0 0
    %5987 = vmatpush1.bf16.xpose.msra.mxu0 0
    %5988 = vmatprep.subr.bf16.mxu0 0
    %5989 = vmatpush1.bf16.xpose.msra.mxu0 0
    %5990 = vmatprep.subr.bf16.mxu0 0
    %5991 = vmatpush1.bf16.xpose.msra.mxu0 0
    %5992 = vmatprep.subr.bf16.mxu0 0
    %5993 = vmatpush1.bf16.xpose.msra.mxu0 0
    %5994 = vmatprep.subr.bf16.mxu0 0
    %5995 = vmatpush1.bf16.xpose.msra.mxu0 0
    %5996 = vmatprep.subr.bf16.mxu0 0
    %5997 = vmatpush1.bf16.xpose.msra.mxu0 0
    %5998 = vmatprep.mubr.bf16.mxu0 0
    %5999 = vmatmul.mubr.bf16.gmra.mrb[0].mxu0 %v5955
    %v6000 = vpop.f32.mrb[0].mxu0
    %v6001 = vadd.f32 0.0, %v6000
    %v6002 = vpop.f32.mrb[0].mxu0
    %v6003 = vpop.f32.mrb[0].mxu0
    %v6004 = vadd.f32 0.0, %v6003
    %v6005 = vpop.f32.mrb[0].mxu0
    %6006 = vmatprep.mubr.bf16.mxu0 0
    %6007 = vmatmul.mubr.bf16.gmra.mrb[0].mxu0 %v5958
    %v6008 = vpop.f32.mrb[0].mxu0
    %v6009 = vadd.f32 0.0, %v6008
    %v6010 = vpop.f32.mrb[0].mxu0
    %v6011 = vpop.f32.mrb[0].mxu0
    %v6012 = vpop.f32.mrb[0].mxu0
    %6013 = vdwg.mxu0
    %v6014 = vadd.f32 %v5897, %v6001
    %v6015 = vadd.f32 %v5898, %v6004
    %v6016 = vadd.f32 %v5899, %v6009
    %v6017 = vrot.slane %v5902, 5
    %v6018 = vrot.slane %v6017, 4
    %v6019 = vrot.slane %v5903, 5
    %v6020 = vsel %vm4063, %v6018, %v6019
    %v6021 = vrot.slane %v5904, 5
    %v6022 = vrot.slane %v6021, 4
    %v6023 = vrot.slane %v5905, 5
    %v6024 = vsel %vm4063, %v6022, %v6023
    %6025 = vxpose.xlu0.c.b16.start [1/8] %v3517, 128
    %6026 = vxpose.xlu0.c.b16.cont [2/8] %v3518, 128
    %6027 = vxpose.xlu0.c.b16.cont [3/8] 0, 128
    %6028 = vxpose.xlu0.c.b16.cont [4/8] 0, 128
    %6029 = vxpose.xlu0.c.b16.cont [5/8] 0, 128
    %6030 = vxpose.xlu0.c.b16.cont [6/8] 0, 128
    %6031 = vxpose.xlu0.c.b16.cont [7/8] 0, 128
    %6032 = vxpose.xlu0.c.b16.end [8/8] 0, 128
    %v6033 = vpop.trf.xlu0
    %v6034 = vpop.trf.xlu0
    %v6035 = vpop.trf.xlu0
    %v6036 = vpop.trf.xlu0
    %v6037 = vpop.trf.xlu0
    %v6038 = vpop.trf.xlu0
    %v6039 = vpop.trf.xlu0
    %v6040 = vpop.trf.xlu0
    %v6041 = vunpack.c.l.b16 %v6020
    %v6042 = vunpack.c.l.b16 %v6024
    %v6043 = vpack.c.b16 %v6041, %v5554
    %v6044 = vpack.c.b16 %v6042, %v5555
    %v6046 = vsel %vm3880, %v6033, 0
    %v6049 = vsel %vm3880, %v6034, 0
    %v6052 = vsel %vm3880, %v6043, 0
    %v6055 = vsel %vm3880, %v6044, 0
    %6057 = vmatprep.subr.bf16.mxu0 0
    %6058 = vmatpush1.bf16.xpose.msra.mxu0 %v5015
    %6059 = vmatprep.subr.bf16.mxu0 0
    %6060 = vmatpush1.bf16.xpose.msra.mxu0 %v5018
    %6061 = vmatprep.subr.bf16.mxu0 0
    %6062 = vmatpush1.bf16.xpose.msra.mxu0 %v5021
    %6063 = vmatprep.subr.bf16.mxu0 0
    %6064 = vmatpush1.bf16.xpose.msra.mxu0 %v6052
    %6065 = vmatprep.subr.bf16.mxu0 0
    %6066 = vmatpush1.bf16.xpose.msra.mxu0 %v5027
    %6067 = vmatprep.subr.bf16.mxu0 0
    %6068 = vmatpush1.bf16.xpose.msra.mxu0 %v5030
    %6069 = vmatprep.subr.bf16.mxu0 0
    %6070 = vmatpush1.bf16.xpose.msra.mxu0 %v5033
    %6071 = vmatprep.subr.bf16.mxu0 0
    %6072 = vmatpush1.bf16.xpose.msra.mxu0 %v6055
    %6073 = vmatprep.subr.bf16.mxu0 0
    %6074 = vmatpush1.bf16.xpose.msra.mxu0 0
    %6075 = vmatprep.subr.bf16.mxu0 0
    %6076 = vmatpush1.bf16.xpose.msra.mxu0 0
    %6077 = vmatprep.subr.bf16.mxu0 0
    %6078 = vmatpush1.bf16.xpose.msra.mxu0 0
    %6079 = vmatprep.subr.bf16.mxu0 0
    %6080 = vmatpush1.bf16.xpose.msra.mxu0 0
    %6081 = vmatprep.subr.bf16.mxu0 0
    %6082 = vmatpush1.bf16.xpose.msra.mxu0 0
    %6083 = vmatprep.subr.bf16.mxu0 0
    %6084 = vmatpush1.bf16.xpose.msra.mxu0 0
    %6085 = vmatprep.subr.bf16.mxu0 0
    %6086 = vmatpush1.bf16.xpose.msra.mxu0 0
    %6087 = vmatprep.subr.bf16.mxu0 0
    %6088 = vmatpush1.bf16.xpose.msra.mxu0 0
    %6089 = vmatprep.mubr.bf16.mxu0 0
    %6090 = vmatmul.mubr.bf16.gmra.mrb[0].mxu0 %v6046
    %v6091 = vpop.f32.mrb[0].mxu0
    %v6092 = vadd.f32 0.0, %v6091
    %v6093 = vpop.f32.mrb[0].mxu0
    %v6094 = vpop.f32.mrb[0].mxu0
    %v6095 = vadd.f32 0.0, %v6094
    %v6096 = vpop.f32.mrb[0].mxu0
    %6097 = vmatprep.mubr.bf16.mxu0 0
    %6098 = vmatmul.mubr.bf16.gmra.mrb[0].mxu0 %v6049
    %v6099 = vpop.f32.mrb[0].mxu0
    %v6100 = vadd.f32 0.0, %v6099
    %v6101 = vpop.f32.mrb[0].mxu0
    %v6102 = vpop.f32.mrb[0].mxu0
    %v6103 = vpop.f32.mrb[0].mxu0
    %6104 = vdwg.mxu0
    %v6105 = vadd.f32 %v6014, %v6092
    %v6106 = vadd.f32 %v6015, %v6095
    %v6107 = vadd.f32 %v6016, %v6100
    %v6108 = vrot.slane %v5907, 5
    %v6109 = vrot.slane %v5910, 6
    %v6110 = vor.u32 %v6108, %v6109
    %v6111 = vrot.slane %v6110, 4
    %v6112 = vshrl.u32 %v5903, 16
    %v6114 = vrot.slane %v6112, 5
    %v6115 = vrot.slane %v5916, 6
    %v6116 = vor.u32 %v6114, %v6115
    %v6117 = vsel %vm4251, %v6111, %v6116
    %v6118 = vrot.slane %v5921, 5
    %v6119 = vrot.slane %v5924, 6
    %v6120 = vor.u32 %v6118, %v6119
    %v6121 = vrot.slane %v6120, 4
    %v6122 = vshrl.u32 %v5905, 16
    %v6124 = vrot.slane %v6122, 5
    %v6125 = vrot.slane %v5930, 6
    %v6126 = vor.u32 %v6124, %v6125
    %v6127 = vsel %vm4251, %v6121, %v6126
    %6128 = vxpose.xlu0.c.b16.start [1/8] %v3519, 128
    %6129 = vxpose.xlu0.c.b16.cont [2/8] %v3520, 128
    %6130 = vxpose.xlu0.c.b16.cont [3/8] 0, 128
    %6131 = vxpose.xlu0.c.b16.cont [4/8] 0, 128
    %6132 = vxpose.xlu0.c.b16.cont [5/8] 0, 128
    %6133 = vxpose.xlu0.c.b16.cont [6/8] 0, 128
    %6134 = vxpose.xlu0.c.b16.cont [7/8] 0, 128
    %6135 = vxpose.xlu0.c.b16.end [8/8] 0, 128
    %v6136 = vpop.trf.xlu0
    %v6137 = vpop.trf.xlu0
    %v6138 = vpop.trf.xlu0
    %v6139 = vpop.trf.xlu0
    %v6140 = vpop.trf.xlu0
    %v6141 = vpop.trf.xlu0
    %v6142 = vpop.trf.xlu0
    %v6143 = vpop.trf.xlu0
    %v6144 = vunpack.c.l.b16 %v6117
    %v6145 = vunpack.c.l.b16 %v6127
    %v6146 = vpack.c.b16 %v6144, %v5657
    %v6147 = vpack.c.b16 %v6145, %v5658
    %v6149 = vsel %vm3880, %v6136, 0
    %v6152 = vsel %vm3880, %v6137, 0
    %v6155 = vsel %vm3880, %v6146, 0
    %v6158 = vsel %vm3880, %v6147, 0
    %6160 = vmatprep.subr.bf16.mxu0 0
    %6161 = vmatpush1.bf16.xpose.msra.mxu0 %v5142
    %6162 = vmatprep.subr.bf16.mxu0 0
    %6163 = vmatpush1.bf16.xpose.msra.mxu0 %v5145
    %6164 = vmatprep.subr.bf16.mxu0 0
    %6165 = vmatpush1.bf16.xpose.msra.mxu0 %v5148
    %6166 = vmatprep.subr.bf16.mxu0 0
    %6167 = vmatpush1.bf16.xpose.msra.mxu0 %v6155
    %6168 = vmatprep.subr.bf16.mxu0 0
    %6169 = vmatpush1.bf16.xpose.msra.mxu0 %v5154
    %6170 = vmatprep.subr.bf16.mxu0 0
    %6171 = vmatpush1.bf16.xpose.msra.mxu0 %v5157
    %6172 = vmatprep.subr.bf16.mxu0 0
    %6173 = vmatpush1.bf16.xpose.msra.mxu0 %v5160
    %6174 = vmatprep.subr.bf16.mxu0 0
    %6175 = vmatpush1.bf16.xpose.msra.mxu0 %v6158
    %6176 = vmatprep.subr.bf16.mxu0 0
    %6177 = vmatpush1.bf16.xpose.msra.mxu0 0
    %6178 = vmatprep.subr.bf16.mxu0 0
    %6179 = vmatpush1.bf16.xpose.msra.mxu0 0
    %6180 = vmatprep.subr.bf16.mxu0 0
    %6181 = vmatpush1.bf16.xpose.msra.mxu0 0
    %6182 = vmatprep.subr.bf16.mxu0 0
    %6183 = vmatpush1.bf16.xpose.msra.mxu0 0
    %6184 = vmatprep.subr.bf16.mxu0 0
    %6185 = vmatpush1.bf16.xpose.msra.mxu0 0
    %6186 = vmatprep.subr.bf16.mxu0 0
    %6187 = vmatpush1.bf16.xpose.msra.mxu0 0
    %6188 = vmatprep.subr.bf16.mxu0 0
    %6189 = vmatpush1.bf16.xpose.msra.mxu0 0
    %6190 = vmatprep.subr.bf16.mxu0 0
    %6191 = vmatpush1.bf16.xpose.msra.mxu0 0
    %6192 = vmatprep.mubr.bf16.mxu0 0
    %6193 = vmatmul.mubr.bf16.gmra.mrb[0].mxu0 %v6149
    %v6194 = vpop.f32.mrb[0].mxu0
    %v6195 = vadd.f32 0.0, %v6194
    %v6196 = vpop.f32.mrb[0].mxu0
    %v6197 = vpop.f32.mrb[0].mxu0
    %v6198 = vadd.f32 0.0, %v6197
    %v6199 = vpop.f32.mrb[0].mxu0
    %6200 = vmatprep.mubr.bf16.mxu0 0
    %6201 = vmatmul.mubr.bf16.gmra.mrb[0].mxu0 %v6152
    %v6202 = vpop.f32.mrb[0].mxu0
    %v6203 = vadd.f32 0.0, %v6202
    %v6204 = vpop.f32.mrb[0].mxu0
    %v6205 = vpop.f32.mrb[0].mxu0
    %v6206 = vpop.f32.mrb[0].mxu0
    %6207 = vdwg.mxu0
    %v6208 = vadd.f32 %v6105, %v6195
    %v6209 = vadd.f32 %v6106, %v6198
    %v6210 = vadd.f32 %v6107, %v6203
    %v6211 = vrot.slane %v5902, 6
    %v6212 = vrot.slane %v6211, 4
    %v6213 = vrot.slane %v5903, 6
    %v6214 = vsel %vm4535, %v6212, %v6213
    %v6215 = vrot.slane %v5904, 6
    %v6216 = vrot.slane %v6215, 4
    %v6217 = vrot.slane %v5905, 6
    %v6218 = vsel %vm4535, %v6216, %v6217
    %6219 = vxpose.xlu0.c.b16.start [1/8] %v3521, 128
    %6220 = vxpose.xlu0.c.b16.cont [2/8] %v3522, 128
    %6221 = vxpose.xlu0.c.b16.cont [3/8] 0, 128
    %6222 = vxpose.xlu0.c.b16.cont [4/8] 0, 128
    %6223 = vxpose.xlu0.c.b16.cont [5/8] 0, 128
    %6224 = vxpose.xlu0.c.b16.cont [6/8] 0, 128
    %6225 = vxpose.xlu0.c.b16.cont [7/8] 0, 128
    %6226 = vxpose.xlu0.c.b16.end [8/8] 0, 128
    %v6227 = vpop.trf.xlu0
    %v6228 = vpop.trf.xlu0
    %v6229 = vpop.trf.xlu0
    %v6230 = vpop.trf.xlu0
    %v6231 = vpop.trf.xlu0
    %v6232 = vpop.trf.xlu0
    %v6233 = vpop.trf.xlu0
    %v6234 = vpop.trf.xlu0
    %v6235 = vunpack.c.l.b16 %v6214
    %v6236 = vunpack.c.l.b16 %v6218
    %v6237 = vpack.c.b16 %v6235, %v5748
    %v6238 = vpack.c.b16 %v6236, %v5749
    %v6240 = vsel %vm3880, %v6227, 0
    %v6243 = vsel %vm3880, %v6228, 0
    %v6246 = vsel %vm3880, %v6237, 0
    %v6249 = vsel %vm3880, %v6238, 0
    %6251 = vmatprep.subr.bf16.mxu0 0
    %6252 = vmatpush1.bf16.xpose.msra.mxu0 %v5257
    %6253 = vmatprep.subr.bf16.mxu0 0
    %6254 = vmatpush1.bf16.xpose.msra.mxu0 %v5260
    %6255 = vmatprep.subr.bf16.mxu0 0
    %6256 = vmatpush1.bf16.xpose.msra.mxu0 %v5263
    %6257 = vmatprep.subr.bf16.mxu0 0
    %6258 = vmatpush1.bf16.xpose.msra.mxu0 %v6246
    %6259 = vmatprep.subr.bf16.mxu0 0
    %6260 = vmatpush1.bf16.xpose.msra.mxu0 %v5269
    %6261 = vmatprep.subr.bf16.mxu0 0
    %6262 = vmatpush1.bf16.xpose.msra.mxu0 %v5272
    %6263 = vmatprep.subr.bf16.mxu0 0
    %6264 = vmatpush1.bf16.xpose.msra.mxu0 %v5275
    %6265 = vmatprep.subr.bf16.mxu0 0
    %6266 = vmatpush1.bf16.xpose.msra.mxu0 %v6249
    %6267 = vmatprep.subr.bf16.mxu0 0
    %6268 = vmatpush1.bf16.xpose.msra.mxu0 0
    %6269 = vmatprep.subr.bf16.mxu0 0
    %6270 = vmatpush1.bf16.xpose.msra.mxu0 0
    %6271 = vmatprep.subr.bf16.mxu0 0
    %6272 = vmatpush1.bf16.xpose.msra.mxu0 0
    %6273 = vmatprep.subr.bf16.mxu0 0
    %6274 = vmatpush1.bf16.xpose.msra.mxu0 0
    %6275 = vmatprep.subr.bf16.mxu0 0
    %6276 = vmatpush1.bf16.xpose.msra.mxu0 0
    %6277 = vmatprep.subr.bf16.mxu0 0
    %6278 = vmatpush1.bf16.xpose.msra.mxu0 0
    %6279 = vmatprep.subr.bf16.mxu0 0
    %6280 = vmatpush1.bf16.xpose.msra.mxu0 0
    %6281 = vmatprep.subr.bf16.mxu0 0
    %6282 = vmatpush1.bf16.xpose.msra.mxu0 0
    %6283 = vmatprep.mubr.bf16.mxu0 0
    %6284 = vmatmul.mubr.bf16.gmra.mrb[0].mxu0 %v6240
    %v6285 = vpop.f32.mrb[0].mxu0
    %v6286 = vadd.f32 0.0, %v6285
    %v6287 = vpop.f32.mrb[0].mxu0
    %v6288 = vpop.f32.mrb[0].mxu0
    %v6289 = vadd.f32 0.0, %v6288
    %v6290 = vpop.f32.mrb[0].mxu0
    %6291 = vmatprep.mubr.bf16.mxu0 0
    %6292 = vmatmul.mubr.bf16.gmra.mrb[0].mxu0 %v6243
    %v6293 = vpop.f32.mrb[0].mxu0
    %v6294 = vadd.f32 0.0, %v6293
    %v6295 = vpop.f32.mrb[0].mxu0
    %v6296 = vpop.f32.mrb[0].mxu0
    %v6297 = vpop.f32.mrb[0].mxu0
    %6298 = vdwg.mxu0
    %v6299 = vadd.f32 %v6208, %v6286
    %v6300 = vadd.f32 %v6209, %v6289
    %v6301 = vadd.f32 %v6210, %v6294
    %6302 = vxpose.xlu0.c.b16.start [1/8] %v3523, 128
    %6303 = vxpose.xlu0.c.b16.cont [2/8] %v3524, 128
    %6304 = vxpose.xlu0.c.b16.cont [3/8] 0, 128
    %6305 = vxpose.xlu0.c.b16.cont [4/8] 0, 128
    %6306 = vxpose.xlu0.c.b16.cont [5/8] 0, 128
    %6307 = vxpose.xlu0.c.b16.cont [6/8] 0, 128
    %6308 = vxpose.xlu0.c.b16.cont [7/8] 0, 128
    %6309 = vxpose.xlu0.c.b16.end [8/8] 0, 128
    %v6310 = vpop.trf.xlu0
    %v6311 = vpop.trf.xlu0
    %v6312 = vpop.trf.xlu0
    %v6313 = vpop.trf.xlu0
    %v6314 = vpop.trf.xlu0
    %v6315 = vpop.trf.xlu0
    %v6316 = vpop.trf.xlu0
    %v6317 = vpop.trf.xlu0
    %v6320 = vunpack.c.l.b16 %v3395
    %v6321 = vunpack.c.l.b16 %v3407
    %v6322 = vpack.c.b16 %v6320, %v5833
    %v6323 = vpack.c.b16 %v6321, %v5834
    %v6325 = vsel %vm3880, %v6310, 0
    %v6328 = vsel %vm3880, %v6311, 0
    %v6331 = vsel %vm3880, %v6322, 0
    %v6334 = vsel %vm3880, %v6323, 0
    %6336 = vmatprep.subr.bf16.mxu0 0
    %6337 = vmatpush1.bf16.xpose.msra.mxu0 %v3996
    %6338 = vmatprep.subr.bf16.mxu0 0
    %6339 = vmatpush1.bf16.xpose.msra.mxu0 %v3999
    %6340 = vmatprep.subr.bf16.mxu0 0
    %6341 = vmatpush1.bf16.xpose.msra.mxu0 %v5357
    %6342 = vmatprep.subr.bf16.mxu0 0
    %6343 = vmatpush1.bf16.xpose.msra.mxu0 %v6331
    %6344 = vmatprep.subr.bf16.mxu0 0
    %6345 = vmatpush1.bf16.xpose.msra.mxu0 %v4008
    %6346 = vmatprep.subr.bf16.mxu0 0
    %6347 = vmatpush1.bf16.xpose.msra.mxu0 %v4011
    %6348 = vmatprep.subr.bf16.mxu0 0
    %6349 = vmatpush1.bf16.xpose.msra.mxu0 %v5360
    %6350 = vmatprep.subr.bf16.mxu0 0
    %6351 = vmatpush1.bf16.xpose.msra.mxu0 %v6334
    %6352 = vmatprep.subr.bf16.mxu0 0
    %6353 = vmatpush1.bf16.xpose.msra.mxu0 0
    %6354 = vmatprep.subr.bf16.mxu0 0
    %6355 = vmatpush1.bf16.xpose.msra.mxu0 0
    %6356 = vmatprep.subr.bf16.mxu0 0
    %6357 = vmatpush1.bf16.xpose.msra.mxu0 0
    %6358 = vmatprep.subr.bf16.mxu0 0
    %6359 = vmatpush1.bf16.xpose.msra.mxu0 0
    %6360 = vmatprep.subr.bf16.mxu0 0
    %6361 = vmatpush1.bf16.xpose.msra.mxu0 0
    %6362 = vmatprep.subr.bf16.mxu0 0
    %6363 = vmatpush1.bf16.xpose.msra.mxu0 0
    %6364 = vmatprep.subr.bf16.mxu0 0
    %6365 = vmatpush1.bf16.xpose.msra.mxu0 0
    %6366 = vmatprep.subr.bf16.mxu0 0
    %6367 = vmatpush1.bf16.xpose.msra.mxu0 0
    %6368 = vmatprep.mubr.bf16.mxu0 0
    %6369 = vmatmul.mubr.bf16.gmra.mrb[0].mxu0 %v6325
    %v6370 = vpop.f32.mrb[0].mxu0
    %v6371 = vadd.f32 0.0, %v6370
    %v6372 = vpop.f32.mrb[0].mxu0
    %v6373 = vpop.f32.mrb[0].mxu0
    %v6374 = vadd.f32 0.0, %v6373
    %v6375 = vpop.f32.mrb[0].mxu0
    %6376 = vmatprep.mubr.bf16.mxu0 0
    %6377 = vmatmul.mubr.bf16.gmra.mrb[0].mxu0 %v6328
    %v6378 = vpop.f32.mrb[0].mxu0
    %v6379 = vadd.f32 0.0, %v6378
    %v6380 = vpop.f32.mrb[0].mxu0
    %v6381 = vpop.f32.mrb[0].mxu0
    %v6382 = vpop.f32.mrb[0].mxu0
    %6383 = vdwg.mxu0
    %v6384 = vadd.f32 %v6299, %v6371
    %v6385 = vadd.f32 %v6300, %v6374
    %v6386 = vadd.f32 %v6301, %v6379
    %v6387 = vunpack.c.h.b16 %v3395
    %v6388 = vunpack.c.h.b16 %v3407
    %v6389 = vpack.c.b16 %v6320, %v6320
    %v6390 = vpack.c.b16 %v6387, %v6387
    %v6391 = vpack.c.b16 %v6321, %v6321
    %v6392 = vpack.c.b16 %v6388, %v6388
    %v6394 = vshrl.u32 %v6389, 16
    %v6396 = vrot.slane %v6394, 4
    %v6397 = vshll.u32 %v6389, 16
    %v6399 = vrot.slane %v6397, 5
    %v6400 = vor.u32 %v6396, %v6399
    %v6401 = vrot.slane %v6400, 4
    %v6403 = vshll.u32 %v6390, 16
    %v6405 = vrot.slane %v6403, 5
    %v6406 = vsel %vm3615, %v6401, %v6405
    %v6408 = vshrl.u32 %v6391, 16
    %v6410 = vrot.slane %v6408, 4
    %v6411 = vshll.u32 %v6391, 16
    %v6413 = vrot.slane %v6411, 5
    %v6414 = vor.u32 %v6410, %v6413
    %v6415 = vrot.slane %v6414, 4
    %v6417 = vshll.u32 %v6392, 16
    %v6419 = vrot.slane %v6417, 5
    %v6420 = vsel %vm3615, %v6415, %v6419
    %6421 = vxpose.xlu0.c.b16.start [1/8] %v3525, 128
    %6422 = vxpose.xlu0.c.b16.cont [2/8] %v3526, 128
    %6423 = vxpose.xlu0.c.b16.cont [3/8] 0, 128
    %6424 = vxpose.xlu0.c.b16.cont [4/8] 0, 128
    %6425 = vxpose.xlu0.c.b16.cont [5/8] 0, 128
    %6426 = vxpose.xlu0.c.b16.cont [6/8] 0, 128
    %6427 = vxpose.xlu0.c.b16.cont [7/8] 0, 128
    %6428 = vxpose.xlu0.c.b16.end [8/8] 0, 128
    %v6429 = vpop.trf.xlu0
    %v6430 = vpop.trf.xlu0
    %v6431 = vpop.trf.xlu0
    %v6432 = vpop.trf.xlu0
    %v6433 = vpop.trf.xlu0
    %v6434 = vpop.trf.xlu0
    %v6435 = vpop.trf.xlu0
    %v6436 = vpop.trf.xlu0
    %v6437 = vunpack.c.l.b16 %v6406
    %v6438 = vunpack.c.l.b16 %v6420
    %v6439 = vpack.c.b16 %v6437, %v5950
    %v6440 = vpack.c.b16 %v6438, %v5951
    %v6442 = vsel %vm3880, %v6429, 0
    %v6445 = vsel %vm3880, %v6430, 0
    %v6448 = vsel %vm3880, %v6439, 0
    %v6451 = vsel %vm3880, %v6440, 0
    %6453 = vmatprep.subr.bf16.mxu0 0
    %6454 = vmatpush1.bf16.xpose.msra.mxu0 %v3894
    %6455 = vmatprep.subr.bf16.mxu0 0
    %6456 = vmatpush1.bf16.xpose.msra.mxu0 %v3897
    %6457 = vmatprep.subr.bf16.mxu0 0
    %6458 = vmatpush1.bf16.xpose.msra.mxu0 %v5474
    %6459 = vmatprep.subr.bf16.mxu0 0
    %6460 = vmatpush1.bf16.xpose.msra.mxu0 %v6448
    %6461 = vmatprep.subr.bf16.mxu0 0
    %6462 = vmatpush1.bf16.xpose.msra.mxu0 %v3906
    %6463 = vmatprep.subr.bf16.mxu0 0
    %6464 = vmatpush1.bf16.xpose.msra.mxu0 %v3909
    %6465 = vmatprep.subr.bf16.mxu0 0
    %6466 = vmatpush1.bf16.xpose.msra.mxu0 %v5477
    %6467 = vmatprep.subr.bf16.mxu0 0
    %6468 = vmatpush1.bf16.xpose.msra.mxu0 %v6451
    %6469 = vmatprep.subr.bf16.mxu0 0
    %6470 = vmatpush1.bf16.xpose.msra.mxu0 0
    %6471 = vmatprep.subr.bf16.mxu0 0
    %6472 = vmatpush1.bf16.xpose.msra.mxu0 0
    %6473 = vmatprep.subr.bf16.mxu0 0
    %6474 = vmatpush1.bf16.xpose.msra.mxu0 0
    %6475 = vmatprep.subr.bf16.mxu0 0
    %6476 = vmatpush1.bf16.xpose.msra.mxu0 0
    %6477 = vmatprep.subr.bf16.mxu0 0
    %6478 = vmatpush1.bf16.xpose.msra.mxu0 0
    %6479 = vmatprep.subr.bf16.mxu0 0
    %6480 = vmatpush1.bf16.xpose.msra.mxu0 0
    %6481 = vmatprep.subr.bf16.mxu0 0
    %6482 = vmatpush1.bf16.xpose.msra.mxu0 0
    %6483 = vmatprep.subr.bf16.mxu0 0
    %6484 = vmatpush1.bf16.xpose.msra.mxu0 0
    %6485 = vmatprep.mubr.bf16.mxu0 0
    %6486 = vmatmul.mubr.bf16.gmra.mrb[0].mxu0 %v6442
    %v6487 = vpop.f32.mrb[0].mxu0
    %v6488 = vadd.f32 0.0, %v6487
    %v6489 = vpop.f32.mrb[0].mxu0
    %v6490 = vpop.f32.mrb[0].mxu0
    %v6491 = vadd.f32 0.0, %v6490
    %v6492 = vpop.f32.mrb[0].mxu0
    %6493 = vmatprep.mubr.bf16.mxu0 0
    %6494 = vmatmul.mubr.bf16.gmra.mrb[0].mxu0 %v6445
    %v6495 = vpop.f32.mrb[0].mxu0
    %v6496 = vadd.f32 0.0, %v6495
    %v6497 = vpop.f32.mrb[0].mxu0
    %v6498 = vpop.f32.mrb[0].mxu0
    %v6499 = vpop.f32.mrb[0].mxu0
    %6500 = vdwg.mxu0
    %v6501 = vadd.f32 %v6384, %v6488
    %v6502 = vadd.f32 %v6385, %v6491
    %v6503 = vadd.f32 %v6386, %v6496
    %v6504 = vrot.slane %v6389, 5
    %v6505 = vrot.slane %v6504, 4
    %v6506 = vrot.slane %v6390, 5
    %v6507 = vsel %vm4063, %v6505, %v6506
    %v6508 = vrot.slane %v6391, 5
    %v6509 = vrot.slane %v6508, 4
    %v6510 = vrot.slane %v6392, 5
    %v6511 = vsel %vm4063, %v6509, %v6510
    %6512 = vxpose.xlu0.c.b16.start [1/8] %v3527, 128
    %6513 = vxpose.xlu0.c.b16.cont [2/8] %v3528, 128
    %6514 = vxpose.xlu0.c.b16.cont [3/8] 0, 128
    %6515 = vxpose.xlu0.c.b16.cont [4/8] 0, 128
    %6516 = vxpose.xlu0.c.b16.cont [5/8] 0, 128
    %6517 = vxpose.xlu0.c.b16.cont [6/8] 0, 128
    %6518 = vxpose.xlu0.c.b16.cont [7/8] 0, 128
    %6519 = vxpose.xlu0.c.b16.end [8/8] 0, 128
    %v6520 = vpop.trf.xlu0
    %v6521 = vpop.trf.xlu0
    %v6522 = vpop.trf.xlu0
    %v6523 = vpop.trf.xlu0
    %v6524 = vpop.trf.xlu0
    %v6525 = vpop.trf.xlu0
    %v6526 = vpop.trf.xlu0
    %v6527 = vpop.trf.xlu0
    %v6528 = vunpack.c.l.b16 %v6507
    %v6529 = vunpack.c.l.b16 %v6511
    %v6530 = vpack.c.b16 %v6528, %v6041
    %v6531 = vpack.c.b16 %v6529, %v6042
    %v6533 = vsel %vm3880, %v6520, 0
    %v6536 = vsel %vm3880, %v6521, 0
    %v6539 = vsel %vm3880, %v6530, 0
    %v6542 = vsel %vm3880, %v6531, 0
    %6544 = vmatprep.subr.bf16.mxu0 0
    %6545 = vmatpush1.bf16.xpose.msra.mxu0 %v4181
    %6546 = vmatprep.subr.bf16.mxu0 0
    %6547 = vmatpush1.bf16.xpose.msra.mxu0 %v4184
    %6548 = vmatprep.subr.bf16.mxu0 0
    %6549 = vmatpush1.bf16.xpose.msra.mxu0 %v5565
    %6550 = vmatprep.subr.bf16.mxu0 0
    %6551 = vmatpush1.bf16.xpose.msra.mxu0 %v6539
    %6552 = vmatprep.subr.bf16.mxu0 0
    %6553 = vmatpush1.bf16.xpose.msra.mxu0 %v4193
    %6554 = vmatprep.subr.bf16.mxu0 0
    %6555 = vmatpush1.bf16.xpose.msra.mxu0 %v4196
    %6556 = vmatprep.subr.bf16.mxu0 0
    %6557 = vmatpush1.bf16.xpose.msra.mxu0 %v5568
    %6558 = vmatprep.subr.bf16.mxu0 0
    %6559 = vmatpush1.bf16.xpose.msra.mxu0 %v6542
    %6560 = vmatprep.subr.bf16.mxu0 0
    %6561 = vmatpush1.bf16.xpose.msra.mxu0 0
    %6562 = vmatprep.subr.bf16.mxu0 0
    %6563 = vmatpush1.bf16.xpose.msra.mxu0 0
    %6564 = vmatprep.subr.bf16.mxu0 0
    %6565 = vmatpush1.bf16.xpose.msra.mxu0 0
    %6566 = vmatprep.subr.bf16.mxu0 0
    %6567 = vmatpush1.bf16.xpose.msra.mxu0 0
    %6568 = vmatprep.subr.bf16.mxu0 0
    %6569 = vmatpush1.bf16.xpose.msra.mxu0 0
    %6570 = vmatprep.subr.bf16.mxu0 0
    %6571 = vmatpush1.bf16.xpose.msra.mxu0 0
    %6572 = vmatprep.subr.bf16.mxu0 0
    %6573 = vmatpush1.bf16.xpose.msra.mxu0 0
    %6574 = vmatprep.subr.bf16.mxu0 0
    %6575 = vmatpush1.bf16.xpose.msra.mxu0 0
    %6576 = vmatprep.mubr.bf16.mxu0 0
    %6577 = vmatmul.mubr.bf16.gmra.mrb[0].mxu0 %v6533
    %v6578 = vpop.f32.mrb[0].mxu0
    %v6579 = vadd.f32 0.0, %v6578
    %v6580 = vpop.f32.mrb[0].mxu0
    %v6581 = vpop.f32.mrb[0].mxu0
    %v6582 = vadd.f32 0.0, %v6581
    %v6583 = vpop.f32.mrb[0].mxu0
    %6584 = vmatprep.mubr.bf16.mxu0 0
    %6585 = vmatmul.mubr.bf16.gmra.mrb[0].mxu0 %v6536
    %v6586 = vpop.f32.mrb[0].mxu0
    %v6587 = vadd.f32 0.0, %v6586
    %v6588 = vpop.f32.mrb[0].mxu0
    %v6589 = vpop.f32.mrb[0].mxu0
    %v6590 = vpop.f32.mrb[0].mxu0
    %6591 = vdwg.mxu0
    %v6592 = vadd.f32 %v6501, %v6579
    %v6593 = vadd.f32 %v6502, %v6582
    %v6594 = vadd.f32 %v6503, %v6587
    %v6595 = vrot.slane %v6394, 5
    %v6596 = vrot.slane %v6397, 6
    %v6597 = vor.u32 %v6595, %v6596
    %v6598 = vrot.slane %v6597, 4
    %v6599 = vshrl.u32 %v6390, 16
    %v6601 = vrot.slane %v6599, 5
    %v6602 = vrot.slane %v6403, 6
    %v6603 = vor.u32 %v6601, %v6602
    %v6604 = vsel %vm4251, %v6598, %v6603
    %v6605 = vrot.slane %v6408, 5
    %v6606 = vrot.slane %v6411, 6
    %v6607 = vor.u32 %v6605, %v6606
    %v6608 = vrot.slane %v6607, 4
    %v6609 = vshrl.u32 %v6392, 16
    %v6611 = vrot.slane %v6609, 5
    %v6612 = vrot.slane %v6417, 6
    %v6613 = vor.u32 %v6611, %v6612
    %v6614 = vsel %vm4251, %v6608, %v6613
    %6615 = vxpose.xlu0.c.b16.start [1/8] %v3529, 128
    %6616 = vxpose.xlu0.c.b16.cont [2/8] %v3530, 128
    %6617 = vxpose.xlu0.c.b16.cont [3/8] 0, 128
    %6618 = vxpose.xlu0.c.b16.cont [4/8] 0, 128
    %6619 = vxpose.xlu0.c.b16.cont [5/8] 0, 128
    %6620 = vxpose.xlu0.c.b16.cont [6/8] 0, 128
    %6621 = vxpose.xlu0.c.b16.cont [7/8] 0, 128
    %6622 = vxpose.xlu0.c.b16.end [8/8] 0, 128
    %v6623 = vpop.trf.xlu0
    %v6624 = vpop.trf.xlu0
    %v6625 = vpop.trf.xlu0
    %v6626 = vpop.trf.xlu0
    %v6627 = vpop.trf.xlu0
    %v6628 = vpop.trf.xlu0
    %v6629 = vpop.trf.xlu0
    %v6630 = vpop.trf.xlu0
    %v6631 = vunpack.c.l.b16 %v6604
    %v6632 = vunpack.c.l.b16 %v6614
    %v6633 = vpack.c.b16 %v6631, %v6144
    %v6634 = vpack.c.b16 %v6632, %v6145
    %v6636 = vsel %vm3880, %v6623, 0
    %v6639 = vsel %vm3880, %v6624, 0
    %v6642 = vsel %vm3880, %v6633, 0
    %v6645 = vsel %vm3880, %v6634, 0
    %6647 = vmatprep.subr.bf16.mxu0 0
    %6648 = vmatpush1.bf16.xpose.msra.mxu0 %v4465
    %6649 = vmatprep.subr.bf16.mxu0 0
    %6650 = vmatpush1.bf16.xpose.msra.mxu0 %v4468
    %6651 = vmatprep.subr.bf16.mxu0 0
    %6652 = vmatpush1.bf16.xpose.msra.mxu0 %v5668
    %6653 = vmatprep.subr.bf16.mxu0 0
    %6654 = vmatpush1.bf16.xpose.msra.mxu0 %v6642
    %6655 = vmatprep.subr.bf16.mxu0 0
    %6656 = vmatpush1.bf16.xpose.msra.mxu0 %v4477
    %6657 = vmatprep.subr.bf16.mxu0 0
    %6658 = vmatpush1.bf16.xpose.msra.mxu0 %v4480
    %6659 = vmatprep.subr.bf16.mxu0 0
    %6660 = vmatpush1.bf16.xpose.msra.mxu0 %v5671
    %6661 = vmatprep.subr.bf16.mxu0 0
    %6662 = vmatpush1.bf16.xpose.msra.mxu0 %v6645
    %6663 = vmatprep.subr.bf16.mxu0 0
    %6664 = vmatpush1.bf16.xpose.msra.mxu0 0
    %6665 = vmatprep.subr.bf16.mxu0 0
    %6666 = vmatpush1.bf16.xpose.msra.mxu0 0
    %6667 = vmatprep.subr.bf16.mxu0 0
    %6668 = vmatpush1.bf16.xpose.msra.mxu0 0
    %6669 = vmatprep.subr.bf16.mxu0 0
    %6670 = vmatpush1.bf16.xpose.msra.mxu0 0
    %6671 = vmatprep.subr.bf16.mxu0 0
    %6672 = vmatpush1.bf16.xpose.msra.mxu0 0
    %6673 = vmatprep.subr.bf16.mxu0 0
    %6674 = vmatpush1.bf16.xpose.msra.mxu0 0
    %6675 = vmatprep.subr.bf16.mxu0 0
    %6676 = vmatpush1.bf16.xpose.msra.mxu0 0
    %6677 = vmatprep.subr.bf16.mxu0 0
    %6678 = vmatpush1.bf16.xpose.msra.mxu0 0
    %6679 = vmatprep.mubr.bf16.mxu0 0
    %6680 = vmatmul.mubr.bf16.gmra.mrb[0].mxu0 %v6636
    %v6681 = vpop.f32.mrb[0].mxu0
    %v6682 = vadd.f32 0.0, %v6681
    %v6683 = vpop.f32.mrb[0].mxu0
    %v6684 = vpop.f32.mrb[0].mxu0
    %v6685 = vadd.f32 0.0, %v6684
    %v6686 = vpop.f32.mrb[0].mxu0
    %6687 = vmatprep.mubr.bf16.mxu0 0
    %6688 = vmatmul.mubr.bf16.gmra.mrb[0].mxu0 %v6639
    %v6689 = vpop.f32.mrb[0].mxu0
    %v6690 = vadd.f32 0.0, %v6689
    %v6691 = vpop.f32.mrb[0].mxu0
    %v6692 = vpop.f32.mrb[0].mxu0
    %v6693 = vpop.f32.mrb[0].mxu0
    %6694 = vdwg.mxu0
    %v6695 = vadd.f32 %v6592, %v6682
    %v6696 = vadd.f32 %v6593, %v6685
    %v6697 = vadd.f32 %v6594, %v6690
    %v6698 = vrot.slane %v6389, 6
    %v6699 = vrot.slane %v6698, 4
    %v6700 = vrot.slane %v6390, 6
    %v6701 = vsel %vm4535, %v6699, %v6700
    %v6702 = vrot.slane %v6391, 6
    %v6703 = vrot.slane %v6702, 4
    %v6704 = vrot.slane %v6392, 6
    %v6705 = vsel %vm4535, %v6703, %v6704
    %6706 = vxpose.xlu0.c.b16.start [1/8] %v3531, 128
    %6707 = vxpose.xlu0.c.b16.cont [2/8] %v3532, 128
    %6708 = vxpose.xlu0.c.b16.cont [3/8] 0, 128
    %6709 = vxpose.xlu0.c.b16.cont [4/8] 0, 128
    %6710 = vxpose.xlu0.c.b16.cont [5/8] 0, 128
    %6711 = vxpose.xlu0.c.b16.cont [6/8] 0, 128
    %6712 = vxpose.xlu0.c.b16.cont [7/8] 0, 128
    %6713 = vxpose.xlu0.c.b16.end [8/8] 0, 128
    %v6714 = vpop.trf.xlu0
    %v6715 = vpop.trf.xlu0
    %v6716 = vpop.trf.xlu0
    %v6717 = vpop.trf.xlu0
    %v6718 = vpop.trf.xlu0
    %v6719 = vpop.trf.xlu0
    %v6720 = vpop.trf.xlu0
    %v6721 = vpop.trf.xlu0
    %v6722 = vunpack.c.l.b16 %v6701
    %v6723 = vunpack.c.l.b16 %v6705
    %v6724 = vpack.c.b16 %v6722, %v6235
    %v6725 = vpack.c.b16 %v6723, %v6236
    %v6727 = vsel %vm3880, %v6714, 0
    %v6730 = vsel %vm3880, %v6715, 0
    %v6733 = vsel %vm3880, %v6724, 0
    %v6736 = vsel %vm3880, %v6725, 0
    %6738 = vmatprep.subr.bf16.mxu0 0
    %6739 = vmatpush1.bf16.xpose.msra.mxu0 %v4653
    %6740 = vmatprep.subr.bf16.mxu0 0
    %6741 = vmatpush1.bf16.xpose.msra.mxu0 %v4656
    %6742 = vmatprep.subr.bf16.mxu0 0
    %6743 = vmatpush1.bf16.xpose.msra.mxu0 %v5759
    %6744 = vmatprep.subr.bf16.mxu0 0
    %6745 = vmatpush1.bf16.xpose.msra.mxu0 %v6733
    %6746 = vmatprep.subr.bf16.mxu0 0
    %6747 = vmatpush1.bf16.xpose.msra.mxu0 %v4665
    %6748 = vmatprep.subr.bf16.mxu0 0
    %6749 = vmatpush1.bf16.xpose.msra.mxu0 %v4668
    %6750 = vmatprep.subr.bf16.mxu0 0
    %6751 = vmatpush1.bf16.xpose.msra.mxu0 %v5762
    %6752 = vmatprep.subr.bf16.mxu0 0
    %6753 = vmatpush1.bf16.xpose.msra.mxu0 %v6736
    %6754 = vmatprep.subr.bf16.mxu0 0
    %6755 = vmatpush1.bf16.xpose.msra.mxu0 0
    %6756 = vmatprep.subr.bf16.mxu0 0
    %6757 = vmatpush1.bf16.xpose.msra.mxu0 0
    %6758 = vmatprep.subr.bf16.mxu0 0
    %6759 = vmatpush1.bf16.xpose.msra.mxu0 0
    %6760 = vmatprep.subr.bf16.mxu0 0
    %6761 = vmatpush1.bf16.xpose.msra.mxu0 0
    %6762 = vmatprep.subr.bf16.mxu0 0
    %6763 = vmatpush1.bf16.xpose.msra.mxu0 0
    %6764 = vmatprep.subr.bf16.mxu0 0
    %6765 = vmatpush1.bf16.xpose.msra.mxu0 0
    %6766 = vmatprep.subr.bf16.mxu0 0
    %6767 = vmatpush1.bf16.xpose.msra.mxu0 0
    %6768 = vmatprep.subr.bf16.mxu0 0
    %6769 = vmatpush1.bf16.xpose.msra.mxu0 0
    %6770 = vmatprep.mubr.bf16.mxu0 0
    %6771 = vmatmul.mubr.bf16.gmra.mrb[0].mxu0 %v6727
    %v6772 = vpop.f32.mrb[0].mxu0
    %v6773 = vadd.f32 0.0, %v6772
    %v6774 = vpop.f32.mrb[0].mxu0
    %v6775 = vpop.f32.mrb[0].mxu0
    %v6776 = vadd.f32 0.0, %v6775
    %v6777 = vpop.f32.mrb[0].mxu0
    %6778 = vmatprep.mubr.bf16.mxu0 0
    %6779 = vmatmul.mubr.bf16.gmra.mrb[0].mxu0 %v6730
    %v6780 = vpop.f32.mrb[0].mxu0
    %v6781 = vadd.f32 0.0, %v6780
    %v6782 = vpop.f32.mrb[0].mxu0
    %v6783 = vpop.f32.mrb[0].mxu0
    %v6784 = vpop.f32.mrb[0].mxu0
    %6785 = vdwg.mxu0
    %v6786 = vadd.f32 %v6695, %v6773
    %v6787 = vadd.f32 %v6696, %v6776
    %v6788 = vadd.f32 %v6697, %v6781
    %v6789 = vld [vmem:[%s4] sm:$0xff]
    %v6790 = vld [vmem:[%s4 + $0x8] sm:$0xff]
    %v6791 = vld [vmem:[%s4 + $0x10] sm:$0xf]
    %6793 = vset.pattern.permute.xlu0 0
    %6794 = vperm.xlu0 %6793, %v6789
    %v6795 = vpop.permute.xlu0 %6794
    %6798 = vset.pattern.permute.xlu0 0
    %6799 = vperm.xlu0 %6798, %v6790
    %v6800 = vpop.permute.xlu0 %6799
    %6803 = vset.pattern.permute.xlu0 0
    %6804 = vperm.xlu0 %6803, %v6791
    %v6805 = vpop.permute.xlu0 %6804
    %v6807 = vadd.f32 %v6786, %v6795
    %v6808 = vadd.f32 %v6787, %v6800
    %v6809 = vadd.f32 %v6788, %v6805
    %v6810 = vmax.f32 %v6807, 0.0
    %v6811 = vmax.f32 %v6808, 0.0
    %v6812 = vmax.f32 %v6809, 0.0
    %6813 = vst [vmem:[%s5] sm:$0xff] %v6810
    %6814 = vst [vmem:[%s5 + $0x8] sm:$0xff] %v6811
    %6815 = vst [vmem:[%s5 + $0x10] sm:$0xf] %v6812
    // Predicated region
    $region26: #{model_forward.1} parent=1 // pred_check
      _
    $region27: #{model_forward.1} parent=1 // pred_check_branch
      %6817 = sbr.rel (0) target = $region29
    $region28: #{model_forward.1} parent=1 // pred_region
      _
    $region29: #{model_forward.1} parent=1 // pred_fallthru
      _
    // Predicated region
    $region30: #{model_forward.1} parent=1 // pred_check
      _
    $region31: #{model_forward.1} parent=1 // pred_check_branch
      %6819 = sbr.rel (0) target = $region33
    $region32: #{model_forward.1} parent=1 // pred_region
      _
    $region33: #{model_forward.1} parent=1 // pred_fallthru
      _
    %6820 = vsyncpa [#allocation3], 1

</llo_original>
